<compile_context>
chip_gen: v5e
topology: v5e:2x2
jax: 0.10.0
libtpu: 0.0.40
codegen_flags: <defaults>
</compile_context>

<pallas_src>
import functools

import jax
import jax.numpy as jnp
from jax.experimental import pallas as pl
from jax.experimental.pallas import tpu as pltpu


def _round_up(x, m):
    return (x + m - 1) // m * m


# ---------------------------------------------------------------------------
# Pallas kernels
# ---------------------------------------------------------------------------
def _gemm_bias_relu_kernel(a_ref, b_ref, bias_ref, o_ref, *, relu):
    """out = [relu]( (A @ B) + bias )   (BN scale pre-folded into B).

    A, B are bf16; accumulation and epilogue are f32.  Single K step (the
    whole padded K fits one block), so no scratch accumulator is needed.
    """
    acc = jnp.dot(a_ref[...], b_ref[...], preferred_element_type=jnp.float32)
    out = acc + bias_ref[...]
    if relu:
        out = jnp.maximum(out, 0.0)
    o_ref[...] = out.astype(o_ref.dtype)


def _block2_head_kernel(a_ref, b_ref, bias_ref, res_ref, fcw_ref, fcb_ref,
                        o_ref, acc_ref, *, denom):
    """Fused:  y = relu(conv2_gemm + bias + identity)   (never hits HBM)
               pooled[n] = mean_S(y)                    (VMEM accumulator)
               logits = pooled @ fc_w + fc_b            (on the last step)

    Grid = (N, S_steps): n is the batch sample, s tiles the flattened
    spatial-temporal axis.  acc_ref (Nb, Coutp) f32 persists across the grid;
    batch routing uses a one-hot outer product (no dynamic VMEM indexing).
    """
    n = pl.program_id(0)
    s = pl.program_id(1)

    @pl.when(jnp.logical_and(n == 0, s == 0))
    def _():
        acc_ref[...] = jnp.zeros_like(acc_ref)

    y = jnp.dot(a_ref[0], b_ref[...], preferred_element_type=jnp.float32)
    y = y + bias_ref[...] + res_ref[0].astype(jnp.float32)
    y = jnp.maximum(y, 0.0)

    nb = acc_ref.shape[0]
    onehot = (jax.lax.broadcasted_iota(jnp.int32, (nb, 1), 0) == n
              ).astype(jnp.float32)
    acc_ref[...] += onehot * jnp.sum(y, axis=0, keepdims=True)

    @pl.when(jnp.logical_and(n == pl.num_programs(0) - 1,
                             s == pl.num_programs(1) - 1))
    def _():
        pooled = acc_ref[...] * (1.0 / denom)
        o_ref[...] = (jnp.dot(pooled, fcw_ref[...],
                              preferred_element_type=jnp.float32)
                      + fcb_ref[...])


# ---------------------------------------------------------------------------
# Kernel wrappers
# ---------------------------------------------------------------------------
def fused_gemm_bias_relu(a, b, bias, relu=True, tm=512, tn=128):
    """a:(M,K) bf16 @ b:(K,N) bf16 + bias [+ReLU], f32 accumulate.

    K is taken in a single step (block = full padded K, a multiple of 128 so
    A loads are lane-dense).  tn=128 matches the 128-lane vreg; tm=512 keeps
    >=2 blocks on the i axis at these shapes so 'parallel' semantics can
    shard across v7x's two TensorCores.
    """
    a = a.astype(jnp.bfloat16)
    b = b.astype(jnp.bfloat16)
    bias = bias.astype(jnp.float32)

    M, K = a.shape
    K2, N = b.shape
    assert K == K2 and N % tn == 0

    Mp = _round_up(M, 8)
    tm = min(tm, Mp)
    Mp = _round_up(Mp, tm)
    if Mp != M:
        a = jnp.pad(a, ((0, Mp - M), (0, 0)))

    out = pl.pallas_call(
        functools.partial(_gemm_bias_relu_kernel, relu=relu),
        out_shape=jax.ShapeDtypeStruct((Mp, N), jnp.bfloat16),
        grid_spec=pltpu.PrefetchScalarGridSpec(
            num_scalar_prefetch=0,
            grid=(Mp // tm, N // tn),
            in_specs=[
                pl.BlockSpec((tm, K), lambda i, j: (i, 0)),
                pl.BlockSpec((K, tn), lambda i, j: (0, j)),
                pl.BlockSpec((1, tn), lambda i, j: (0, j)),
            ],
            out_specs=pl.BlockSpec((tm, tn), lambda i, j: (i, j)),
        ),
        compiler_params=pltpu.CompilerParams(
            dimension_semantics=("parallel", "parallel")),
    )(a, b, bias)
    return out[:M]


def block2_and_head(x, identity, layer, fc_w, fc_b, num_classes, ts=512):
    """Last block conv (+BN +identity +ReLU) fused with avg-pool + FC.

    x:        (N, T, H, W, Cin)  bf16 (output of block conv1)
    identity: (N, T, H, W, Cout) bf16 (residual)
    Returns (N, num_classes) f32 class scores.
    """
    N = x.shape[0]
    patches, (To, Ho, Wo) = _im2col3d(x, layer['ksize'], (1, 1, 1), (1, 1, 1))
    S = To * Ho * Wo
    M, K = patches.shape
    Kp, Coutp = layer['w'].shape
    cout = layer['cout']
    if Kp != K:
        patches = jnp.pad(patches, ((0, 0), (0, Kp - K)))
    a = patches.reshape(N, S, Kp).astype(jnp.bfloat16)

    res = identity.reshape(N, S, cout)
    res = jnp.pad(res, ((0, 0), (0, 0), (0, Coutp - cout))).astype(jnp.bfloat16)

    assert S % 8 == 0
    ts = min(ts, S)
    while S % ts:          # pick a tile that divides S (no pooled-row masking)
        ts -= 8

    Nb = _round_up(N, 8)
    Ncp = fc_w.shape[1]

    out = pl.pallas_call(
        functools.partial(_block2_head_kernel, denom=float(S)),
        out_shape=jax.ShapeDtypeStruct((Nb, Ncp), jnp.float32),
        grid_spec=pltpu.PrefetchScalarGridSpec(
            num_scalar_prefetch=0,
            grid=(N, S // ts),
            in_specs=[
                pl.BlockSpec((1, ts, Kp), lambda n, s: (n, s, 0)),
                pl.BlockSpec((Kp, Coutp), lambda n, s: (0, 0)),
                pl.BlockSpec((1, Coutp), lambda n, s: (0, 0)),
                pl.BlockSpec((1, ts, Coutp), lambda n, s: (n, s, 0)),
                pl.BlockSpec((Coutp, Ncp), lambda n, s: (0, 0)),
                pl.BlockSpec((1, Ncp), lambda n, s: (0, 0)),
            ],
            out_specs=pl.BlockSpec((Nb, Ncp), lambda n, s: (0, 0)),
            scratch_shapes=[pltpu.VMEM((Nb, Coutp), jnp.float32)],
        ),
        compiler_params=pltpu.CompilerParams(
            dimension_semantics=("arbitrary", "arbitrary")),
    )(a, layer['w'], layer['bias'], res, fc_w, fc_b)
    return out[:N, :num_classes]


# ---------------------------------------------------------------------------
# Conv3D via im2col (plain-JAX glue) + fused Pallas GEMM
# ---------------------------------------------------------------------------
def _im2col3d(x, ksize, stride, padding):
    # x: (N, T, H, W, C)
    N, T, H, W, C = x.shape
    kt, kh, kw = ksize
    st, sh, sw = stride
    pt, ph, pw = padding
    xp = jnp.pad(x, ((0, 0), (pt, pt), (ph, ph), (pw, pw), (0, 0)))
    To = (T + 2 * pt - kt) // st + 1
    Ho = (H + 2 * ph - kh) // sh + 1
    Wo = (W + 2 * pw - kw) // sw + 1
    cols = []
    for dt in range(kt):
        for dh in range(kh):
            for dw in range(kw):
                cols.append(xp[:, dt:dt + (To - 1) * st + 1:st,
                               dh:dh + (Ho - 1) * sh + 1:sh,
                               dw:dw + (Wo - 1) * sw + 1:sw, :])
    patches = jnp.stack(cols, axis=4)            # (N, To, Ho, Wo, kt*kh*kw, C)
    patches = patches.reshape(N * To * Ho * Wo, kt * kh * kw * C)
    return patches, (To, Ho, Wo)


def _w_to_mat(w):
    # PyTorch conv3d weight (Cout, Cin, kt, kh, kw) -> (kt*kh*kw*Cin, Cout)
    Cout, Cin, kt, kh, kw = w.shape
    return jnp.transpose(w, (2, 3, 4, 1, 0)).reshape(kt * kh * kw * Cin, Cout)


def conv3d_bn_act(x, layer, stride, padding, relu=True):
    # x: (N, T, H, W, Cin) bf16 -> (N, To, Ho, Wo, Cout) bf16;
    # BN is folded into the (pre-padded, bf16) weight matrix + f32 bias.
    patches, (To, Ho, Wo) = _im2col3d(x, layer['ksize'], stride, padding)
    M, K = patches.shape
    Kp, Np = layer['w'].shape
    cout = layer['cout']
    if Kp != K:
        patches = jnp.pad(patches, ((0, 0), (0, Kp - K)))
    out = fused_gemm_bias_relu(patches, layer['w'], layer['bias'], relu=relu)
    return out[:, :cout].reshape(x.shape[0], To, Ho, Wo, cout)


# ---------------------------------------------------------------------------
# Parameter preparation (done ONCE, outside the jit'd forward):
# fold BN scale into weights, pad K to x128 / Cout to x128, cast to bf16.
# ---------------------------------------------------------------------------
def _prepare_conv(w, scale, shift):
    Cout, Cin, kt, kh, kw = w.shape
    K = kt * kh * kw * Cin
    Kp = _round_up(K, 128)         # lane-dense A-operand loads, x16 sublanes for B
    Np = _round_up(Cout, 128)      # lane-dense output tiles
    wm = _w_to_mat(w) * scale[None, :]                       # fold BN scale
    wm = jnp.pad(wm, ((0, Kp - K), (0, Np - Cout))).astype(jnp.bfloat16)
    b = jnp.pad(shift, (0, Np - Cout)).reshape(1, Np).astype(jnp.float32)
    return {'w': wm, 'bias': b, 'ksize': (kt, kh, kw),
            'cin': Cin, 'cout': Cout}


def prepare_kernel_params(params, num_classes):
    kp = {
        'stem': _prepare_conv(params['stem_w'], params['stem_scale'],
                              params['stem_shift']),
        'b1': _prepare_conv(params['b1_w'], params['b1_scale'],
                            params['b1_shift']),
        'b2': _prepare_conv(params['b2_w'], params['b2_scale'],
                            params['b2_shift']),
    }
    Coutp = kp['b2']['w'].shape[1]           # padded channel width of block out
    Ncp = _round_up(num_classes, 128)
    fc_w_t = params['fc_w'].T.astype(jnp.float32)        # (C, num_classes)
    kp['fc_w'] = jnp.pad(fc_w_t, ((0, Coutp - fc_w_t.shape[0]),
                                  (0, Ncp - num_classes)))
    kp['fc_b'] = jnp.pad(params['fc_b'].astype(jnp.float32),
                         (0, Ncp - num_classes)).reshape(1, Ncp)
    kp['num_classes'] = int(num_classes)
    return kp


# ---------------------------------------------------------------------------
# Recognizer forward (== ResNet3DRecognizer.forward)
# ---------------------------------------------------------------------------
def resnet3d_recognizer_forward(kp, imgs):
    assert len(imgs.shape) == 5                      # (N, C, T, H, W) like PyTorch
    # NCDHW -> NDHWC (channels on the TPU lane axis), bf16 activations.
    x = jnp.transpose(imgs, (0, 2, 3, 4, 1)).astype(jnp.bfloat16)

    # ---- backbone ----
    x = conv3d_bn_act(x, kp['stem'], stride=(1, 2, 2), padding=(1, 1, 1),
                      relu=True)
    identity = x
    y = conv3d_bn_act(x, kp['b1'], stride=(1, 1, 1), padding=(1, 1, 1),
                      relu=True)

    # ---- last block conv fused with residual + ReLU + avg-pool + FC ----
    # (dropout in the head is identity at eval)
    logits = block2_and_head(y, identity, kp['b2'], kp['fc_w'], kp['fc_b'],
                             num_classes=kp['num_classes'])
    # 'probs' keeps the original module's key; these are class scores
    # (the reference head applies softmax only if cfg enables it).
    return {'probs': logits}


# ---------------------------------------------------------------------------
# Deterministic parameter init (BN folded into per-channel scale/shift;
# fix_bn / partial_bn freezing => eval-mode running statistics).
# ---------------------------------------------------------------------------
def init_params(key, in_ch=3, stem_ch=16, num_classes=10):
    keys = jax.random.split(key, 8)

    def bn(k, c):
        k1, k2, k3, k4 = jax.random.split(k, 4)
        gamma = 1.0 + 0.1 * jax.random.normal(k1, (c,), jnp.float32)
        beta = 0.1 * jax.random.normal(k2, (c,), jnp.float32)
        mean = 0.05 * jax.random.normal(k3, (c,), jnp.float32)
        var = 1.0 + 0.1 * jnp.abs(jax.random.normal(k4, (c,), jnp.float32))
        scale = gamma / jnp.sqrt(var + 1e-5)
        shift = beta - mean * scale
        return scale, shift

    p = {}
    p['stem_w'] = 0.1 * jax.random.normal(keys[0], (stem_ch, in_ch, 3, 3, 3), jnp.float32)
    p['stem_scale'], p['stem_shift'] = bn(keys[1], stem_ch)
    p['b1_w'] = 0.1 * jax.random.normal(keys[2], (stem_ch, stem_ch, 3, 3, 3), jnp.float32)
    p['b1_scale'], p['b1_shift'] = bn(keys[3], stem_ch)
    p['b2_w'] = 0.1 * jax.random.normal(keys[4], (stem_ch, stem_ch, 3, 3, 3), jnp.float32)
    p['b2_scale'], p['b2_shift'] = bn(keys[5], stem_ch)
    p['fc_w'] = 0.1 * jax.random.normal(keys[6], (num_classes, stem_ch), jnp.float32)
    p['fc_b'] = 0.01 * jax.random.normal(keys[7], (num_classes,), jnp.float32)
    return p


# ---------------------------------------------------------------------------
# Pure-JAX f32 reference (same math, no Pallas, unprepared params)
# ---------------------------------------------------------------------------
def _ref_conv(x, w, scale, shift, stride, padding, relu, residual=None):
    patches, (To, Ho, Wo) = _im2col3d(x, w.shape[2:], stride, padding)
    out = patches @ _w_to_mat(w)
    out = out * scale[None, :] + shift[None, :]
    out = out.reshape(x.shape[0], To, Ho, Wo, w.shape[0])
    if residual is not None:
        out = out + residual
    if relu:
        out = jnp.maximum(out, 0.0)
    return out


def _ref_forward(params, imgs):
    x = jnp.transpose(imgs, (0, 2, 3, 4, 1)).astype(jnp.float32)
    x = _ref_conv(x, params['stem_w'], params['stem_scale'], params['stem_shift'],
                  (1, 2, 2), (1, 1, 1), True)
    identity = x
    y = _ref_conv(x, params['b1_w'], params['b1_scale'], params['b1_shift'],
                  (1, 1, 1), (1, 1, 1), True)
    y = _ref_conv(y, params['b2_w'], params['b2_scale'], params['b2_shift'],
                  (1, 1, 1), (1, 1, 1), True, residual=identity)
    N, T, H, W, C = y.shape
    pooled = jnp.mean(y.reshape(N, T * H * W, C), axis=1)
    logits = pooled @ params['fc_w'].T + params['fc_b'][None, :]
    return {'probs': logits}


if __name__ == "__main__":
    key = jax.random.PRNGKey(0)
    pkey, xkey = jax.random.split(key)
    params = init_params(pkey)
    kparams = prepare_kernel_params(params, num_classes=params['fc_w'].shape[0])

    # imgs: (N, C, T, H, W) = (2, 3, 8, 16, 16), matching PyTorch's 5-D input.
    imgs = jax.random.normal(xkey, (2, 3, 8, 16, 16), jnp.float32)

    fwd = jax.jit(functools.partial(resnet3d_recognizer_forward, kparams))
    out = fwd(imgs)
    probs = jax.block_until_ready(out['probs'])
    assert probs.shape == (2, 10)

    ref = _ref_forward(params, imgs)['probs']
    max_err = float(jnp.max(jnp.abs(probs - ref)))
    assert max_err < 5e-2, f"mismatch vs reference: {max_err}"

    print("KERNEL_OK")
</pallas_src>

<mosaic_0001>
module attributes {stable_mosaic.version = 11 : i64} {
  func.func @_gemm_bias_relu_kernel(%arg0: i32, %arg1: i32, %arg2: memref<512x128xbf16, #tpu.memory_space<vmem>>, %arg3: memref<128x128xbf16, #tpu.memory_space<vmem>>, %arg4: memref<1x128xf32, #tpu.memory_space<vmem>>, %arg5: memref<512x128xbf16, #tpu.memory_space<vmem>>) attributes {dimension_semantics = [#tpu.dimension_semantics<parallel>, #tpu.dimension_semantics<parallel>], iteration_bounds = array<i64: 2, 1>, scalar_prefetch = 0 : i64, scratch_operands = 0 : i64, tpu.core_type = #tpu.core_type<tc>, window_params = [{transform_indices = @transform_0, window_bounds = array<i64: 512, 128>}, {transform_indices = @transform_1, window_bounds = array<i64: 128, 128>}, {transform_indices = @transform_2, window_bounds = array<i64: 1, 128>}, {transform_indices = @transform_3, window_bounds = array<i64: 512, 128>}]} {
    %c0 = arith.constant 0 : index
    %c0_0 = arith.constant 0 : index
    %0 = vector.load %arg2[%c0, %c0_0] : memref<512x128xbf16, #tpu.memory_space<vmem>>, vector<512x128xbf16>
    %c0_1 = arith.constant 0 : index
    %c0_2 = arith.constant 0 : index
    %1 = vector.load %arg3[%c0_1, %c0_2] : memref<128x128xbf16, #tpu.memory_space<vmem>>, vector<128x128xbf16>
    %cst = arith.constant dense<0.000000e+00> : vector<512x128xf32>
    %2 = tpu.matmul %0, %1, %cst {dimension_numbers = #tpu.dot_dimension_numbers<[1], [0], [0], [1], [0, 0, 1, 1], [], []>} : vector<512x128xbf16>, vector<128x128xbf16>, vector<512x128xf32> -> vector<512x128xf32>
    %c0_3 = arith.constant 0 : index
    %c0_4 = arith.constant 0 : index
    %3 = vector.load %arg4[%c0_3, %c0_4] : memref<1x128xf32, #tpu.memory_space<vmem>>, vector<1x128xf32>
    %4 = vector.broadcast %3 : vector<1x128xf32> to vector<512x128xf32>
    %5 = arith.addf %2, %4 : vector<512x128xf32>
    %cst_5 = arith.constant 0.000000e+00 : f32
    %6 = vector.broadcast %cst_5 : f32 to vector<512x128xf32>
    %7 = arith.maximumf %5, %6 : vector<512x128xf32>
    %8 = arith.truncf %7 : vector<512x128xf32> to vector<512x128xbf16>
    %c0_6 = arith.constant 0 : index
    %c0_7 = arith.constant 0 : index
    %9 = vector.load %arg5[%c0_6, %c0_7] : memref<512x128xbf16, #tpu.memory_space<vmem>>, vector<512x128xbf16>
    tpu.vector_store %arg5[%c0_6, %c0_7], %8 {strides = array<i32>} : memref<512x128xbf16, #tpu.memory_space<vmem>>, vector<512x128xbf16>,
    return
  }
  func.func @transform_0(%arg0: i32, %arg1: i32) -> (i32, i32) {
    %c0_i32 = arith.constant 0 : i32
    %c0_i32_0 = arith.constant 0 : i32
    return %arg0, %c0_i32 : i32, i32
  }
  func.func @transform_1(%arg0: i32, %arg1: i32) -> (i32, i32) {
    %c0_i32 = arith.constant 0 : i32
    %c0_i32_0 = arith.constant 0 : i32
    return %c0_i32, %arg1 : i32, i32
  }
  func.func @transform_2(%arg0: i32, %arg1: i32) -> (i32, i32) {
    %c0_i32 = arith.constant 0 : i32
    %c0_i32_0 = arith.constant 0 : i32
    return %c0_i32, %arg1 : i32, i32
  }
  func.func @transform_3(%arg0: i32, %arg1: i32) -> (i32, i32) {
    %c0_i32 = arith.constant 0 : i32
    return %arg0, %arg1 : i32, i32
  }
}

module attributes {stable_mosaic.version = 11 : i64} {
  func.func @_gemm_bias_relu_kernel(%arg0: i32, %arg1: i32, %arg2: memref<512x512xbf16, #tpu.memory_space<vmem>>, %arg3: memref<512x128xbf16, #tpu.memory_space<vmem>>, %arg4: memref<1x128xf32, #tpu.memory_space<vmem>>, %arg5: memref<512x128xbf16, #tpu.memory_space<vmem>>) attributes {dimension_semantics = [#tpu.dimension_semantics<parallel>, #tpu.dimension_semantics<parallel>], iteration_bounds = array<i64: 2, 1>, scalar_prefetch = 0 : i64, scratch_operands = 0 : i64, tpu.core_type = #tpu.core_type<tc>, window_params = [{transform_indices = @transform_0, window_bounds = array<i64: 512, 512>}, {transform_indices = @transform_1, window_bounds = array<i64: 512, 128>}, {transform_indices = @transform_2, window_bounds = array<i64: 1, 128>}, {transform_indices = @transform_3, window_bounds = array<i64: 512, 128>}]} {
    %c0 = arith.constant 0 : index
    %c0_0 = arith.constant 0 : index
    %0 = vector.load %arg2[%c0, %c0_0] : memref<512x512xbf16, #tpu.memory_space<vmem>>, vector<512x512xbf16>
    %c0_1 = arith.constant 0 : index
    %c0_2 = arith.constant 0 : index
    %1 = vector.load %arg3[%c0_1, %c0_2] : memref<512x128xbf16, #tpu.memory_space<vmem>>, vector<512x128xbf16>
    %cst = arith.constant dense<0.000000e+00> : vector<512x128xf32>
    %2 = tpu.matmul %0, %1, %cst {dimension_numbers = #tpu.dot_dimension_numbers<[1], [0], [0], [1], [0, 0, 1, 1], [], []>} : vector<512x512xbf16>, vector<512x128xbf16>, vector<512x128xf32> -> vector<512x128xf32>
    %c0_3 = arith.constant 0 : index
    %c0_4 = arith.constant 0 : index
    %3 = vector.load %arg4[%c0_3, %c0_4] : memref<1x128xf32, #tpu.memory_space<vmem>>, vector<1x128xf32>
    %4 = vector.broadcast %3 : vector<1x128xf32> to vector<512x128xf32>
    %5 = arith.addf %2, %4 : vector<512x128xf32>
    %cst_5 = arith.constant 0.000000e+00 : f32
    %6 = vector.broadcast %cst_5 : f32 to vector<512x128xf32>
    %7 = arith.maximumf %5, %6 : vector<512x128xf32>
    %8 = arith.truncf %7 : vector<512x128xf32> to vector<512x128xbf16>
    %c0_6 = arith.constant 0 : index
    %c0_7 = arith.constant 0 : index
    %9 = vector.load %arg5[%c0_6, %c0_7] : memref<512x128xbf16, #tpu.memory_space<vmem>>, vector<512x128xbf16>
    tpu.vector_store %arg5[%c0_6, %c0_7], %8 {strides = array<i32>} : memref<512x128xbf16, #tpu.memory_space<vmem>>, vector<512x128xbf16>,
    return
  }
  func.func @transform_0(%arg0: i32, %arg1: i32) -> (i32, i32) {
    %c0_i32 = arith.constant 0 : i32
    %c0_i32_0 = arith.constant 0 : i32
    return %arg0, %c0_i32 : i32, i32
  }
  func.func @transform_1(%arg0: i32, %arg1: i32) -> (i32, i32) {
    %c0_i32 = arith.constant 0 : i32
    %c0_i32_0 = arith.constant 0 : i32
    return %c0_i32, %arg1 : i32, i32
  }
  func.func @transform_2(%arg0: i32, %arg1: i32) -> (i32, i32) {
    %c0_i32 = arith.constant 0 : i32
    %c0_i32_0 = arith.constant 0 : i32
    return %c0_i32, %arg1 : i32, i32
  }
  func.func @transform_3(%arg0: i32, %arg1: i32) -> (i32, i32) {
    %c0_i32 = arith.constant 0 : i32
    return %arg0, %arg1 : i32, i32
  }
}

module attributes {stable_mosaic.version = 11 : i64} {
  func.func @_block2_head_kernel(%arg0: i32, %arg1: i32, %arg2: memref<1x512x512xbf16, #tpu.memory_space<vmem>>, %arg3: memref<512x128xbf16, #tpu.memory_space<vmem>>, %arg4: memref<1x128xf32, #tpu.memory_space<vmem>>, %arg5: memref<1x512x128xbf16, #tpu.memory_space<vmem>>, %arg6: memref<128x128xf32, #tpu.memory_space<vmem>>, %arg7: memref<1x128xf32, #tpu.memory_space<vmem>>, %arg8: memref<8x128xf32, #tpu.memory_space<vmem>>, %arg9: memref<8x128xf32, #tpu.memory_space<vmem>>) attributes {dimension_semantics = [#tpu.dimension_semantics<arbitrary>, #tpu.dimension_semantics<arbitrary>], iteration_bounds = array<i64: 2, 1>, scalar_prefetch = 0 : i64, scratch_operands = 1 : i64, tpu.core_type = #tpu.core_type<tc>, window_params = [{transform_indices = @transform_0, window_bounds = array<i64: 1, 512, 512>}, {pipeline_mode = #tpu.pipeline_mode<synchronous>, transform_indices = @transform_1, window_bounds = array<i64: 512, 128>}, {pipeline_mode = #tpu.pipeline_mode<synchronous>, transform_indices = @transform_2, window_bounds = array<i64: 1, 128>}, {transform_indices = @transform_3, window_bounds = array<i64: 1, 512, 128>}, {pipeline_mode = #tpu.pipeline_mode<synchronous>, transform_indices = @transform_4, window_bounds = array<i64: 128, 128>}, {pipeline_mode = #tpu.pipeline_mode<synchronous>, transform_indices = @transform_5, window_bounds = array<i64: 1, 128>}, {pipeline_mode = #tpu.pipeline_mode<synchronous>, transform_indices = @transform_6, window_bounds = array<i64: 8, 128>}]} {
    %c0_i32 = arith.constant 0 : i32
    %0 = arith.cmpi eq, %arg0, %c0_i32 : i32
    %c0_i32_0 = arith.constant 0 : i32
    %1 = arith.cmpi eq, %arg1, %c0_i32_0 : i32
    %2 = arith.andi %0, %1 : i1
    %3 = arith.extui %2 : i1 to i32
    %c0_i32_1 = arith.constant 0 : i32
    %4 = arith.cmpi ne, %3, %c0_i32_1 : i32
    scf.if %4 {
      %cst_19 = arith.constant 0.000000e+00 : f32
      %36 = vector.broadcast %cst_19 : f32 to vector<8x128xf32>
      %c0_20 = arith.constant 0 : index
      %c0_21 = arith.constant 0 : index
      %37 = vector.load %arg9[%c0_20, %c0_21] : memref<8x128xf32, #tpu.memory_space<vmem>>, vector<8x128xf32>
      tpu.vector_store %arg9[%c0_20, %c0_21], %36 {strides = array<i32>} : memref<8x128xf32, #tpu.memory_space<vmem>>, vector<8x128xf32>,
    } else {
    }
    %c0 = arith.constant 0 : index
    %c0_2 = arith.constant 0 : index
    %c0_3 = arith.constant 0 : index
    %5 = vector.load %arg2[%c0, %c0_2, %c0_3] : memref<1x512x512xbf16, #tpu.memory_space<vmem>>, vector<1x512x512xbf16>
    %6 = vector.shape_cast %5 : vector<1x512x512xbf16> to vector<512x512xbf16>
    %c0_4 = arith.constant 0 : index
    %c0_5 = arith.constant 0 : index
    %7 = vector.load %arg3[%c0_4, %c0_5] : memref<512x128xbf16, #tpu.memory_space<vmem>>, vector<512x128xbf16>
    %cst = arith.constant dense<0.000000e+00> : vector<512x128xf32>
    %8 = tpu.matmul %6, %7, %cst {dimension_numbers = #tpu.dot_dimension_numbers<[1], [0], [0], [1], [0, 0, 1, 1], [], []>} : vector<512x512xbf16>, vector<512x128xbf16>, vector<512x128xf32> -> vector<512x128xf32>
    %c0_6 = arith.constant 0 : index
    %c0_7 = arith.constant 0 : index
    %9 = vector.load %arg4[%c0_6, %c0_7] : memref<1x128xf32, #tpu.memory_space<vmem>>, vector<1x128xf32>
    %10 = vector.broadcast %9 : vector<1x128xf32> to vector<512x128xf32>
    %11 = arith.addf %8, %10 : vector<512x128xf32>
    %c0_8 = arith.constant 0 : index
    %c0_9 = arith.constant 0 : index
    %c0_10 = arith.constant 0 : index
    %12 = vector.load %arg5[%c0_8, %c0_9, %c0_10] : memref<1x512x128xbf16, #tpu.memory_space<vmem>>, vector<1x512x128xbf16>
    %13 = vector.shape_cast %12 : vector<1x512x128xbf16> to vector<512x128xbf16>
    %14 = arith.extf %13 : vector<512x128xbf16> to vector<512x128xf32>
    %15 = arith.addf %11, %14 : vector<512x128xf32>
    %cst_11 = arith.constant 0.000000e+00 : f32
    %16 = vector.broadcast %cst_11 : f32 to vector<512x128xf32>
    %17 = arith.maximumf %15, %16 : vector<512x128xf32>
    %18 = tpu.iota {dimensions = array<i32: 0>} : vector<8x1xi32>
    %19 = vector.broadcast %arg0 : i32 to vector<8x1xi32>
    %20 = arith.cmpi eq, %18, %19 : vector<8x1xi32>
    %21 = arith.extui %20 : vector<8x1xi1> to vector<8x1xi32>
    %22 = arith.sitofp %21 : vector<8x1xi32> to vector<8x1xf32>
    %c0_12 = arith.constant 0 : index
    %c0_13 = arith.constant 0 : index
    %23 = vector.load %arg9[%c0_12, %c0_13] : memref<8x128xf32, #tpu.memory_space<vmem>>, vector<8x128xf32>
    %cst_14 = arith.constant dense<0.000000e+00> : vector<128xf32>
    %24 = vector.multi_reduction <add>, %17, %cst_14 [0] : vector<512x128xf32> to vector<128xf32>
    %25 = vector.shape_cast %24 : vector<128xf32> to vector<1x128xf32>
    %26 = vector.broadcast %22 : vector<8x1xf32> to vector<8x128xf32>
    %27 = vector.broadcast %25 : vector<1x128xf32> to vector<8x128xf32>
    %28 = arith.mulf %26, %27 : vector<8x128xf32>
    %29 = arith.addf %23, %28 : vector<8x128xf32>
    %c0_15 = arith.constant 0 : index
    %c0_16 = arith.constant 0 : index
    %30 = vector.load %arg9[%c0_15, %c0_16] : memref<8x128xf32, #tpu.memory_space<vmem>>, vector<8x128xf32>
    tpu.vector_store %arg9[%c0_15, %c0_16], %29 {strides = array<i32>} : memref<8x128xf32, #tpu.memory_space<vmem>>, vector<8x128xf32>,
    %c1_i32 = arith.constant 1 : i32
    %31 = arith.cmpi eq, %arg0, %c1_i32 : i32
    %c0_i32_17 = arith.constant 0 : i32
    %32 = arith.cmpi eq, %arg1, %c0_i32_17 : i32
    %33 = arith.andi %31, %32 : i1
    %34 = arith.extui %33 : i1 to i32
    %c0_i32_18 = arith.constant 0 : i32
    %35 = arith.cmpi ne, %34, %c0_i32_18 : i32
    scf.if %35 {
      %c0_19 = arith.constant 0 : index
      %c0_20 = arith.constant 0 : index
      %36 = vector.load %arg9[%c0_19, %c0_20] : memref<8x128xf32, #tpu.memory_space<vmem>>, vector<8x128xf32>
      %cst_21 = arith.constant 0.001953125 : f32
      %37 = vector.broadcast %cst_21 : f32 to vector<8x128xf32>
      %38 = arith.mulf %36, %37 : vector<8x128xf32>
      %c0_22 = arith.constant 0 : index
      %c0_23 = arith.constant 0 : index
      %39 = vector.load %arg6[%c0_22, %c0_23] : memref<128x128xf32, #tpu.memory_space<vmem>>, vector<128x128xf32>
      %cst_24 = arith.constant dense<0.000000e+00> : vector<8x128xf32>
      %40 = tpu.matmul %38, %39, %cst_24 {dimension_numbers = #tpu.dot_dimension_numbers<[1], [0], [0], [1], [0, 0, 1, 1], [], []>} : vector<8x128xf32>, vector<128x128xf32>, vector<8x128xf32> -> vector<8x128xf32>
      %c0_25 = arith.constant 0 : index
      %c0_26 = arith.constant 0 : index
      %41 = vector.load %arg7[%c0_25, %c0_26] : memref<1x128xf32, #tpu.memory_space<vmem>>, vector<1x128xf32>
      %42 = vector.broadcast %41 : vector<1x128xf32> to vector<8x128xf32>
      %43 = arith.addf %40, %42 : vector<8x128xf32>
      %c0_27 = arith.constant 0 : index
      %c0_28 = arith.constant 0 : index
      %44 = vector.load %arg8[%c0_27, %c0_28] : memref<8x128xf32, #tpu.memory_space<vmem>>, vector<8x128xf32>
      tpu.vector_store %arg8[%c0_27, %c0_28], %43 {strides = array<i32>} : memref<8x128xf32, #tpu.memory_space<vmem>>, vector<8x128xf32>,
    } else {
    }
    return
  }
  func.func @transform_0(%arg0: i32, %arg1: i32) -> (i32, i32, i32) {
    %c0_i32 = arith.constant 0 : i32
    %c0_i32_0 = arith.constant 0 : i32
    return %arg0, %arg1, %c0_i32 : i32, i32, i32
  }
  func.func @transform_1(%arg0: i32, %arg1: i32) -> (i32, i32) {
    %c0_i32 = arith.constant 0 : i32
    %c0_i32_0 = arith.constant 0 : i32
    %c0_i32_1 = arith.constant 0 : i32
    return %c0_i32, %c0_i32_0 : i32, i32
  }
  func.func @transform_2(%arg0: i32, %arg1: i32) -> (i32, i32) {
    %c0_i32 = arith.constant 0 : i32
    %c0_i32_0 = arith.constant 0 : i32
    %c0_i32_1 = arith.constant 0 : i32
    return %c0_i32, %c0_i32_0 : i32, i32
  }
  func.func @transform_3(%arg0: i32, %arg1: i32) -> (i32, i32, i32) {
    %c0_i32 = arith.constant 0 : i32
    %c0_i32_0 = arith.constant 0 : i32
    return %arg0, %arg1, %c0_i32 : i32, i32, i32
  }
  func.func @transform_4(%arg0: i32, %arg1: i32) -> (i32, i32) {
    %c0_i32 = arith.constant 0 : i32
    %c0_i32_0 = arith.constant 0 : i32
    %c0_i32_1 = arith.constant 0 : i32
    return %c0_i32, %c0_i32_0 : i32, i32
  }
  func.func @transform_5(%arg0: i32, %arg1: i32) -> (i32, i32) {
    %c0_i32 = arith.constant 0 : i32
    %c0_i32_0 = arith.constant 0 : i32
    %c0_i32_1 = arith.constant 0 : i32
    return %c0_i32, %c0_i32_0 : i32, i32
  }
  func.func @transform_6(%arg0: i32, %arg1: i32) -> (i32, i32) {
    %c0_i32 = arith.constant 0 : i32
    %c0_i32_0 = arith.constant 0 : i32
    %c0_i32_1 = arith.constant 0 : i32
    return %c0_i32, %c0_i32_0 : i32, i32
  }
}

</mosaic_0001>

<llo_original>
// kernel: resnet3d_recognizer_forward.3
$region0: #{resnet3d_recognizer_forward.3}
  #allocation0 [shape = 'u32[]', space=smem, size = 0x4, offset = 0x4, fixed_abs, tag = 'smem constant byte address 0x4 - core index']
  #allocation1 [shape = 'u32[72,128]{1,0:T(1,128)}', space=vmem, size = 0x9000, scoped, tag = 'internal scratch']
  %s0 = inlined_call_operand.vmem [shape: bf16[1024,128], index: 0, kind: input, shape index: {}]
  %s1 = inlined_call_operand.vmem [shape: bf16[128,128], index: 1, kind: input, shape index: {}]
  %s2 = inlined_call_operand.vmem [shape: f32[1,128], index: 2, kind: input, shape index: {}]
  %s3 = inlined_call_operand.vmem [shape: bf16[1024,128], index: 3, kind: output, shape index: {}]
  %s4 = sld [smem:[#allocation0]]
  $region45: #{resnet3d_recognizer_forward.3} parent=0
    _
  %s6 = ssub.s32 1, %s4
  %s7 = scalar_select 0, %s6, %s4
  loop: start=0, step=1, limit=4
  $region2: #{resnet3d_recognizer_forward.3} parent=0 // loop_pre_header
    _
  $region3: #{resnet3d_recognizer_forward.3} parent=0 // loop_header
    %s9 = sphi 0, %s13
    %p10 = scmp.ge.s32.totalorder %s9, 4
    %s16 = sphi 0, %s28
    %s17 = sphi 0, %s24
    %s18 = sphi 0, %s16
    %s19 = sphi 0, %s17
    %s20 = sphi 0, %s18
    %s21 = sphi 0, %s19
    %s31 = sphi 0, %s33
    %s34 = sphi 0, %s31
    %s35 = sphi 0, %s34
    %s51 = sphi 0, %s35
    %s57 = sphi 0, %s59
    %s60 = sphi 0, %s57
    %s61 = sphi 0, %s60
    %s77 = sphi 0, %s61
    %s83 = sphi 0, %s85
    %s86 = sphi 0, %s83
    %s87 = sphi 0, %s86
    %s103 = sphi 0, %s87
    %s111 = sphi 0, %s113
    %s114 = sphi 0, %s111
    %s115 = sphi 0, %s114
    %s131 = sphi 0, %s115
  $region4: #{resnet3d_recognizer_forward.3} parent=0 // loop_header_branch
    %12 = sbr.rel (%p10) target = $region8
  $region5: #{resnet3d_recognizer_forward.3} parent=0 // loop_body
    %s14 = ssub.s32 %s9, 1
    %s15 = ssub.s32 %s9, 2
    %s22 = sadd.s32 1, %s17
    %p23 = scmp.ge.s32.totalorder %s22, 1
    %s24 = scalar_select %p23, 0, %s22
    %s25 = sadd.s32 1, %s16
    %s26 = scalar_select %p23, %s25, %s16
    %p27 = scmp.ge.s32.totalorder %s26, 2
    %s28 = scalar_select %p27, 0, %s26
    %s29 = ssub.s32 %s16, %s28
    %p30 = scmp.eq.s32.totalorder %s29, 0
    %s32 = sadd.s32 %s31, 1
    %s33 = scalar_select %p30, %s31, %s32
    %p36 = pneg %p30
    %p37 = scmp.eq.s32.totalorder %s9, 1
    %p38 = por %p36, %p37
    %p39 = scmp.ne.s32.totalorder %s31, %s34
    %p40 = scmp.eq.s32.totalorder %s9, 0
    %p41 = por %p39, %p40
    %p42 = scmp.ne.s32.totalorder %s31, %s34
    %p43 = scmp.eq.s32.totalorder %s14, 1
    %p44 = por %p42, %p43
    %p45 = scmp.ne.s32.totalorder %s34, %s35
    %p46 = scmp.eq.s32.totalorder %s14, 0
    %p47 = por %p45, %p46
    %p48 = scmp.ne.s32.totalorder %s34, %s35
    %p49 = scmp.eq.s32.totalorder %s15, 1
    %p50 = por %p48, %p49
    %p52 = scmp.ne.s32.totalorder %s35, %s51
    %p53 = scmp.eq.s32.totalorder %s15, 0
    %p54 = por %p52, %p53
    %s55 = ssub.s32 %s17, %s24
    %p56 = scmp.eq.s32.totalorder %s55, 0
    %s58 = sadd.s32 %s57, 1
    %s59 = scalar_select %p56, %s57, %s58
    %p62 = pneg %p56
    %p63 = scmp.eq.s32.totalorder %s9, 1
    %p64 = por %p62, %p63
    %p65 = scmp.ne.s32.totalorder %s57, %s60
    %p66 = scmp.eq.s32.totalorder %s9, 0
    %p67 = por %p65, %p66
    %p68 = scmp.ne.s32.totalorder %s57, %s60
    %p69 = scmp.eq.s32.totalorder %s14, 1
    %p70 = por %p68, %p69
    %p71 = scmp.ne.s32.totalorder %s60, %s61
    %p72 = scmp.eq.s32.totalorder %s14, 0
    %p73 = por %p71, %p72
    %p74 = scmp.ne.s32.totalorder %s60, %s61
    %p75 = scmp.eq.s32.totalorder %s15, 1
    %p76 = por %p74, %p75
    %p78 = scmp.ne.s32.totalorder %s61, %s77
    %p79 = scmp.eq.s32.totalorder %s15, 0
    %p80 = por %p78, %p79
    %s81 = ssub.s32 %s17, %s24
    %p82 = scmp.eq.s32.totalorder %s81, 0
    %s84 = sadd.s32 %s83, 1
    %s85 = scalar_select %p82, %s83, %s84
    %p88 = pneg %p82
    %p89 = scmp.eq.s32.totalorder %s9, 1
    %p90 = por %p88, %p89
    %p91 = scmp.ne.s32.totalorder %s83, %s86
    %p92 = scmp.eq.s32.totalorder %s9, 0
    %p93 = por %p91, %p92
    %p94 = scmp.ne.s32.totalorder %s83, %s86
    %p95 = scmp.eq.s32.totalorder %s14, 1
    %p96 = por %p94, %p95
    %p97 = scmp.ne.s32.totalorder %s86, %s87
    %p98 = scmp.eq.s32.totalorder %s14, 0
    %p99 = por %p97, %p98
    %p100 = scmp.ne.s32.totalorder %s86, %s87
    %p101 = scmp.eq.s32.totalorder %s15, 1
    %p102 = por %p100, %p101
    %p104 = scmp.ne.s32.totalorder %s87, %s103
    %p105 = scmp.eq.s32.totalorder %s15, 0
    %p106 = por %p104, %p105
    %s107 = ssub.s32 %s16, %s28
    %s108 = ssub.s32 %s17, %s24
    %s109 = sor.u32 %s107, %s108
    %p110 = scmp.eq.s32.totalorder %s109, 0
    %s112 = sadd.s32 %s111, 1
    %s113 = scalar_select %p110, %s111, %s112
    %p116 = pneg %p110
    %p117 = scmp.eq.s32.totalorder %s9, 1
    %p118 = por %p116, %p117
    %p119 = scmp.ne.s32.totalorder %s111, %s114
    %p120 = scmp.eq.s32.totalorder %s9, 0
    %p121 = por %p119, %p120
    %p122 = scmp.ne.s32.totalorder %s111, %s114
    %p123 = scmp.eq.s32.totalorder %s14, 1
    %p124 = por %p122, %p123
    %p125 = scmp.ne.s32.totalorder %s114, %s115
    %p126 = scmp.eq.s32.totalorder %s14, 0
    %p127 = por %p125, %p126
    %p128 = scmp.ne.s32.totalorder %s114, %s115
    %p129 = scmp.eq.s32.totalorder %s15, 1
    %p130 = por %p128, %p129
    %p132 = scmp.ne.s32.totalorder %s115, %s131
    %p133 = scmp.eq.s32.totalorder %s15, 0
    %p134 = por %p132, %p133
    %p135 = scmp.le.s32.totalorder 1, %s9
    %p136 = scmp.lt.s32.totalorder %s9, 3
    %p137 = pnand %p135, %p136
    %p138 = pneg %p137
    // Predicated region
    $region9: #{resnet3d_recognizer_forward.3} parent=5 // pred_check
      _
    $region10: #{resnet3d_recognizer_forward.3} parent=5 // pred_check_branch
      %140 = sbr.rel (%p137) target = $region12
    $region11: #{resnet3d_recognizer_forward.3} parent=5 // pred_region
      %s141 = ssub.s32 %s9, 1
      // Predicated region
      $region13: #{resnet3d_recognizer_forward.3} parent=11 // pred_check
        %p142 = pneg %p73
      $region14: #{resnet3d_recognizer_forward.3} parent=11 // pred_check_branch
        %144 = sbr.rel (%p142) target = $region16
      $region15: #{resnet3d_recognizer_forward.3} parent=11 // pred_region
        %p145 = scmp.lt.s32.totalorder %s19, 0
        %s146 = scalar_select %p145, %s19, 0
        %s147 = smul.addr %s146, 4
        %s148 = scalar_lea.vmem %s1, %s147
      $region16: #{resnet3d_recognizer_forward.3} parent=11 // pred_fallthru
        _
      // Predicated region
      $region17: #{resnet3d_recognizer_forward.3} parent=11 // pred_check
        %p149 = pneg %p99
      $region18: #{resnet3d_recognizer_forward.3} parent=11 // pred_check_branch
        %151 = sbr.rel (%p149) target = $region20
      $region19: #{resnet3d_recognizer_forward.3} parent=11 // pred_region
        %p152 = scmp.lt.s32.totalorder %s19, 0
        %s153 = scalar_select %p152, %s19, 0
        %s154 = scalar_lea.vmem %s2, %s153
      $region20: #{resnet3d_recognizer_forward.3} parent=11 // pred_fallthru
        _
    $region12: #{resnet3d_recognizer_forward.3} parent=5 // pred_fallthru
      _
    %p155 = scmp.lt.s32.totalorder %s9, 2
    // Predicated region
    $region21: #{resnet3d_recognizer_forward.3} parent=5 // pred_check
      %p156 = pneg %p155
    $region22: #{resnet3d_recognizer_forward.3} parent=5 // pred_check_branch
      %158 = sbr.rel (%p156) target = $region24
    $region23: #{resnet3d_recognizer_forward.3} parent=5 // pred_region
      // Predicated region
      $region25: #{resnet3d_recognizer_forward.3} parent=23 // pred_check
        %p159 = pneg %p41
      $region26: #{resnet3d_recognizer_forward.3} parent=23 // pred_check_branch
        %161 = sbr.rel (%p159) target = $region28
      $region27: #{resnet3d_recognizer_forward.3} parent=23 // pred_region
        %s162 = smul.u32 64, %s16
        %p163 = scmp.lt.s32.totalorder %s162, 127
        %s164 = scalar_select %p163, %s162, 127
        %s165 = smul.addr %s164, 4
        %s166 = scalar_lea.vmem %s0, %s165
        %s167 = smul.u32 64, %s16
      $region28: #{resnet3d_recognizer_forward.3} parent=23 // pred_fallthru
        _
    $region24: #{resnet3d_recognizer_forward.3} parent=5 // pred_fallthru
      _
    %p168 = scmp.le.s32.totalorder 1, %s9
    %p169 = scmp.lt.s32.totalorder %s9, 3
    %p170 = pnand %p168, %p169
    %p171 = pneg %p170
    // Predicated region
    $region29: #{resnet3d_recognizer_forward.3} parent=5 // pred_check
      _
    $region30: #{resnet3d_recognizer_forward.3} parent=5 // pred_check_branch
      %173 = sbr.rel (%p170) target = $region32
    $region31: #{resnet3d_recognizer_forward.3} parent=5 // pred_region
      %s174 = ssub.s32 %s9, 1
      %s175 = smul.u32 64, %s18
      %p176 = scmp.lt.s32.totalorder %s175, 127
      %s177 = scalar_select %p176, %s175, 127
      %s178 = smul.addr %s177, 4
      %s179 = scalar_lea.vmem %s0, %s178
      %p180 = pneg %p47
      %p181 = pneg %p44
      %p182 = scmp.lt.s32.totalorder %s19, 0
      %s183 = scalar_select %p182, %s19, 0
      %s184 = smul.addr %s183, 4
      %s185 = scalar_lea.vmem %s1, %s184
      %p186 = pneg %p73
      %p187 = pneg %p70
      %p188 = scmp.lt.s32.totalorder %s19, 0
      %s189 = scalar_select %p188, %s19, 0
      %s190 = scalar_lea.vmem %s2, %s189
      %p191 = pneg %p99
      %p192 = pneg %p96
      %p193 = pneg %p127
      %p194 = pneg %p124
      %s195 = smul.u32 64, %s18
      %p196 = scmp.lt.s32.totalorder %s195, 127
      %s197 = scalar_select %p196, %s195, 127
      %p198 = scmp.lt.s32.totalorder %s19, 0
      %s199 = scalar_select %p198, %s19, 0
      %s200 = sadd.s32 %s199, %s197
      %s201 = smul.addr %s200, 4
      %s202 = scalar_lea.vmem %s3, %s201
      %s203 = smul.u32 64, %s18
      %p204 = scmp.lt.s32.totalorder %s203, 127
      %s205 = scalar_select %p204, %s203, 127
      %s206 = smul.addr %s205, 4
      %s207 = scalar_lea.vmem %s0, %s206
      %s208 = smul.u32 64, %s18
      %p209 = scmp.lt.s32.totalorder %s19, 0
      %s210 = scalar_select %p209, %s19, 0
      %s211 = smul.addr %s210, 4
      %s212 = scalar_lea.vmem %s1, %s211
      %p213 = scmp.lt.s32.totalorder %s19, 0
      %s214 = scalar_select %p213, %s19, 0
      %s215 = scalar_lea.vmem %s2, %s214
      %s216 = smul.u32 64, %s18
      %p217 = scmp.lt.s32.totalorder %s216, 127
      %s218 = scalar_select %p217, %s216, 127
      %p219 = scmp.lt.s32.totalorder %s19, 0
      %s220 = scalar_select %p219, %s19, 0
      %s221 = sadd.s32 %s220, %s218
      %s222 = smul.addr %s221, 4
      %s223 = scalar_lea.vmem %s3, %s222
      %s224 = smul.u32 64, %s18
      %v225 = vld [vmem:[%s207] sm:$0xf]
      %v226 = vld [vmem:[%s207 + $0x4] sm:$0xf]
      %v227 = vld [vmem:[%s207 + $0x8] sm:$0xf]
      %v228 = vld [vmem:[%s207 + $0xc] sm:$0xf]
      %v229 = vld [vmem:[%s207 + $0x10] sm:$0xf]
      %v230 = vld [vmem:[%s207 + $0x14] sm:$0xf]
      %v231 = vld [vmem:[%s207 + $0x18] sm:$0xf]
      %v232 = vld [vmem:[%s207 + $0x1c] sm:$0xf]
      %v233 = vld [vmem:[%s207 + $0x20] sm:$0xf]
      %v234 = vld [vmem:[%s207 + $0x24] sm:$0xf]
      %v235 = vld [vmem:[%s207 + $0x28] sm:$0xf]
      %v236 = vld [vmem:[%s207 + $0x2c] sm:$0xf]
      %v237 = vld [vmem:[%s207 + $0x30] sm:$0xf]
      %v238 = vld [vmem:[%s207 + $0x34] sm:$0xf]
      %v239 = vld [vmem:[%s207 + $0x38] sm:$0xf]
      %v240 = vld [vmem:[%s207 + $0x3c] sm:$0xf]
      %v241 = vld [vmem:[%s207 + $0x40] sm:$0xf]
      %v242 = vld [vmem:[%s207 + $0x44] sm:$0xf]
      %v243 = vld [vmem:[%s207 + $0x48] sm:$0xf]
      %v244 = vld [vmem:[%s207 + $0x4c] sm:$0xf]
      %v245 = vld [vmem:[%s207 + $0x50] sm:$0xf]
      %v246 = vld [vmem:[%s207 + $0x54] sm:$0xf]
      %v247 = vld [vmem:[%s207 + $0x58] sm:$0xf]
      %v248 = vld [vmem:[%s207 + $0x5c] sm:$0xf]
      %v249 = vld [vmem:[%s207 + $0x60] sm:$0xf]
      %v250 = vld [vmem:[%s207 + $0x64] sm:$0xf]
      %v251 = vld [vmem:[%s207 + $0x68] sm:$0xf]
      %v252 = vld [vmem:[%s207 + $0x6c] sm:$0xf]
      %v253 = vld [vmem:[%s207 + $0x70] sm:$0xf]
      %v254 = vld [vmem:[%s207 + $0x74] sm:$0xf]
      %v255 = vld [vmem:[%s207 + $0x78] sm:$0xf]
      %v256 = vld [vmem:[%s207 + $0x7c] sm:$0xf]
      %v257 = vld [vmem:[%s207 + $0x80] sm:$0xf]
      %v258 = vld [vmem:[%s207 + $0x84] sm:$0xf]
      %v259 = vld [vmem:[%s207 + $0x88] sm:$0xf]
      %v260 = vld [vmem:[%s207 + $0x8c] sm:$0xf]
      %v261 = vld [vmem:[%s207 + $0x90] sm:$0xf]
      %v262 = vld [vmem:[%s207 + $0x94] sm:$0xf]
      %v263 = vld [vmem:[%s207 + $0x98] sm:$0xf]
      %v264 = vld [vmem:[%s207 + $0x9c] sm:$0xf]
      %v265 = vld [vmem:[%s207 + $0xa0] sm:$0xf]
      %v266 = vld [vmem:[%s207 + $0xa4] sm:$0xf]
      %v267 = vld [vmem:[%s207 + $0xa8] sm:$0xf]
      %v268 = vld [vmem:[%s207 + $0xac] sm:$0xf]
      %v269 = vld [vmem:[%s207 + $0xb0] sm:$0xf]
      %v270 = vld [vmem:[%s207 + $0xb4] sm:$0xf]
      %v271 = vld [vmem:[%s207 + $0xb8] sm:$0xf]
      %v272 = vld [vmem:[%s207 + $0xbc] sm:$0xf]
      %v273 = vld [vmem:[%s207 + $0xc0] sm:$0xf]
      %v274 = vld [vmem:[%s207 + $0xc4] sm:$0xf]
      %v275 = vld [vmem:[%s207 + $0xc8] sm:$0xf]
      %v276 = vld [vmem:[%s207 + $0xcc] sm:$0xf]
      %v277 = vld [vmem:[%s207 + $0xd0] sm:$0xf]
      %v278 = vld [vmem:[%s207 + $0xd4] sm:$0xf]
      %v279 = vld [vmem:[%s207 + $0xd8] sm:$0xf]
      %v280 = vld [vmem:[%s207 + $0xdc] sm:$0xf]
      %v281 = vld [vmem:[%s207 + $0xe0] sm:$0xf]
      %v282 = vld [vmem:[%s207 + $0xe4] sm:$0xf]
      %v283 = vld [vmem:[%s207 + $0xe8] sm:$0xf]
      %v284 = vld [vmem:[%s207 + $0xec] sm:$0xf]
      %v285 = vld [vmem:[%s207 + $0xf0] sm:$0xf]
      %v286 = vld [vmem:[%s207 + $0xf4] sm:$0xf]
      %v287 = vld [vmem:[%s207 + $0xf8] sm:$0xf]
      %v288 = vld [vmem:[%s207 + $0xfc] sm:$0xf]
      %v289 = vld [vmem:[%s212] sm:$0xf]
      %v290 = vld [vmem:[%s212 + $0x4] sm:$0xf]
      %v291 = vld [vmem:[%s212 + $0x8] sm:$0xf]
      %v292 = vld [vmem:[%s212 + $0xc] sm:$0xf]
      %v293 = vld [vmem:[%s212 + $0x10] sm:$0xf]
      %v294 = vld [vmem:[%s212 + $0x14] sm:$0xf]
      %v295 = vld [vmem:[%s212 + $0x18] sm:$0xf]
      %v296 = vld [vmem:[%s212 + $0x1c] sm:$0xf]
      %v297 = vld [vmem:[%s212 + $0x20] sm:$0xf]
      %v298 = vld [vmem:[%s212 + $0x24] sm:$0xf]
      %v299 = vld [vmem:[%s212 + $0x28] sm:$0xf]
      %v300 = vld [vmem:[%s212 + $0x2c] sm:$0xf]
      %v301 = vld [vmem:[%s212 + $0x30] sm:$0xf]
      %v302 = vld [vmem:[%s212 + $0x34] sm:$0xf]
      %v303 = vld [vmem:[%s212 + $0x38] sm:$0xf]
      %v304 = vld [vmem:[%s212 + $0x3c] sm:$0xf]
      %v305 = vld [vmem:[%s215] sm:$0x1]
      %v307 = vperm.slane %v305, 0
      %v373 = vunpack.c.l.b16 %v225
      %v374 = vunpack.c.l.b16 %v226
      %v375 = vunpack.c.l.b16 %v227
      %v376 = vunpack.c.l.b16 %v228
      %v377 = vunpack.c.l.b16 %v229
      %v378 = vunpack.c.l.b16 %v230
      %v379 = vunpack.c.l.b16 %v231
      %v380 = vunpack.c.l.b16 %v232
      %v381 = vunpack.c.l.b16 %v233
      %v382 = vunpack.c.l.b16 %v234
      %v383 = vunpack.c.l.b16 %v235
      %v384 = vunpack.c.l.b16 %v236
      %v385 = vunpack.c.l.b16 %v237
      %v386 = vunpack.c.l.b16 %v238
      %v387 = vunpack.c.l.b16 %v239
      %v388 = vunpack.c.l.b16 %v240
      %v389 = vunpack.c.l.b16 %v241
      %v390 = vunpack.c.l.b16 %v242
      %v391 = vunpack.c.l.b16 %v243
      %v392 = vunpack.c.l.b16 %v244
      %v393 = vunpack.c.l.b16 %v245
      %v394 = vunpack.c.l.b16 %v246
      %v395 = vunpack.c.l.b16 %v247
      %v396 = vunpack.c.l.b16 %v248
      %v397 = vunpack.c.l.b16 %v249
      %v398 = vunpack.c.l.b16 %v250
      %v399 = vunpack.c.l.b16 %v251
      %v400 = vunpack.c.l.b16 %v252
      %v401 = vunpack.c.l.b16 %v253
      %v402 = vunpack.c.l.b16 %v254
      %v403 = vunpack.c.l.b16 %v255
      %v404 = vunpack.c.l.b16 %v256
      %v405 = vunpack.c.l.b16 %v257
      %v406 = vunpack.c.l.b16 %v258
      %v407 = vunpack.c.l.b16 %v259
      %v408 = vunpack.c.l.b16 %v260
      %v409 = vunpack.c.l.b16 %v261
      %v410 = vunpack.c.l.b16 %v262
      %v411 = vunpack.c.l.b16 %v263
      %v412 = vunpack.c.l.b16 %v264
      %v413 = vunpack.c.l.b16 %v265
      %v414 = vunpack.c.l.b16 %v266
      %v415 = vunpack.c.l.b16 %v267
      %v416 = vunpack.c.l.b16 %v268
      %v417 = vunpack.c.l.b16 %v269
      %v418 = vunpack.c.l.b16 %v270
      %v419 = vunpack.c.l.b16 %v271
      %v420 = vunpack.c.l.b16 %v272
      %v421 = vunpack.c.l.b16 %v273
      %v422 = vunpack.c.l.b16 %v274
      %v423 = vunpack.c.l.b16 %v275
      %v424 = vunpack.c.l.b16 %v276
      %v425 = vunpack.c.l.b16 %v277
      %v426 = vunpack.c.l.b16 %v278
      %v427 = vunpack.c.l.b16 %v279
      %v428 = vunpack.c.l.b16 %v280
      %v429 = vunpack.c.l.b16 %v281
      %v430 = vunpack.c.l.b16 %v282
      %v431 = vunpack.c.l.b16 %v283
      %v432 = vunpack.c.l.b16 %v284
      %v433 = vunpack.c.l.b16 %v285
      %v434 = vunpack.c.l.b16 %v286
      %v435 = vunpack.c.l.b16 %v287
      %v436 = vunpack.c.l.b16 %v288
      %v437 = vpack.c.b16 %v374, %v373
      %v438 = vpack.c.b16 %v376, %v375
      %v439 = vpack.c.b16 %v378, %v377
      %v440 = vpack.c.b16 %v380, %v379
      %v441 = vpack.c.b16 %v382, %v381
      %v442 = vpack.c.b16 %v384, %v383
      %v443 = vpack.c.b16 %v386, %v385
      %v444 = vpack.c.b16 %v388, %v387
      %v445 = vpack.c.b16 %v390, %v389
      %v446 = vpack.c.b16 %v392, %v391
      %v447 = vpack.c.b16 %v394, %v393
      %v448 = vpack.c.b16 %v396, %v395
      %v449 = vpack.c.b16 %v398, %v397
      %v450 = vpack.c.b16 %v400, %v399
      %v451 = vpack.c.b16 %v402, %v401
      %v452 = vpack.c.b16 %v404, %v403
      %v453 = vpack.c.b16 %v406, %v405
      %v454 = vpack.c.b16 %v408, %v407
      %v455 = vpack.c.b16 %v410, %v409
      %v456 = vpack.c.b16 %v412, %v411
      %v457 = vpack.c.b16 %v414, %v413
      %v458 = vpack.c.b16 %v416, %v415
      %v459 = vpack.c.b16 %v418, %v417
      %v460 = vpack.c.b16 %v420, %v419
      %v461 = vpack.c.b16 %v422, %v421
      %v462 = vpack.c.b16 %v424, %v423
      %v463 = vpack.c.b16 %v426, %v425
      %v464 = vpack.c.b16 %v428, %v427
      %v465 = vpack.c.b16 %v430, %v429
      %v466 = vpack.c.b16 %v432, %v431
      %v467 = vpack.c.b16 %v434, %v433
      %v468 = vpack.c.b16 %v436, %v435
      %v517 = vunpack.c.l.b16 %v289
      %v518 = vunpack.c.l.b16 %v290
      %v519 = vunpack.c.l.b16 %v291
      %v520 = vunpack.c.l.b16 %v292
      %v521 = vunpack.c.l.b16 %v293
      %v522 = vunpack.c.l.b16 %v294
      %v523 = vunpack.c.l.b16 %v295
      %v524 = vunpack.c.l.b16 %v296
      %v525 = vunpack.c.l.b16 %v297
      %v526 = vunpack.c.l.b16 %v298
      %v527 = vunpack.c.l.b16 %v299
      %v528 = vunpack.c.l.b16 %v300
      %v529 = vunpack.c.l.b16 %v301
      %v530 = vunpack.c.l.b16 %v302
      %v531 = vunpack.c.l.b16 %v303
      %v532 = vunpack.c.l.b16 %v304
      %v533 = vpack.c.b16 %v518, %v517
      %v534 = vpack.c.b16 %v520, %v519
      %v535 = vpack.c.b16 %v522, %v521
      %v536 = vpack.c.b16 %v524, %v523
      %v537 = vpack.c.b16 %v526, %v525
      %v538 = vpack.c.b16 %v528, %v527
      %v539 = vpack.c.b16 %v530, %v529
      %v540 = vpack.c.b16 %v532, %v531
      %549 = vmatpush.bf16.msra.mxu0 %v540
      %550 = vmatpush.bf16.msra.mxu0 %v539
      %551 = vmatpush.bf16.msra.mxu0 %v538
      %552 = vmatpush.bf16.msra.mxu0 %v537
      %553 = vmatpush.bf16.msra.mxu0 %v536
      %554 = vmatpush.bf16.msra.mxu0 %v535
      %555 = vmatpush.bf16.msra.mxu0 %v534
      %556 = vmatpush.bf16.msra.mxu0 %v533
      %557 = vmatmul.bf16.gmra.mxu0 %v437
      %v558 = vpop.f32.mrf.mxu0
      %v559 = vadd.f32 %v307, %v558
      %v560 = vpop.f32.mrf.mxu0
      %v561 = vadd.f32 %v307, %v560
      %562 = vmatmul.bf16.gmra.mxu0 %v438
      %v563 = vpop.f32.mrf.mxu0
      %v564 = vadd.f32 %v307, %v563
      %v565 = vpop.f32.mrf.mxu0
      %v566 = vadd.f32 %v307, %v565
      %567 = vmatmul.bf16.gmra.mxu0 %v439
      %v568 = vpop.f32.mrf.mxu0
      %v569 = vadd.f32 %v307, %v568
      %v570 = vpop.f32.mrf.mxu0
      %v571 = vadd.f32 %v307, %v570
      %572 = vmatmul.bf16.gmra.mxu0 %v440
      %v573 = vpop.f32.mrf.mxu0
      %v574 = vadd.f32 %v307, %v573
      %v575 = vpop.f32.mrf.mxu0
      %v576 = vadd.f32 %v307, %v575
      %577 = vmatmul.bf16.gmra.mxu0 %v441
      %v578 = vpop.f32.mrf.mxu0
      %v579 = vadd.f32 %v307, %v578
      %v580 = vpop.f32.mrf.mxu0
      %v581 = vadd.f32 %v307, %v580
      %582 = vmatmul.bf16.gmra.mxu0 %v442
      %v583 = vpop.f32.mrf.mxu0
      %v584 = vadd.f32 %v307, %v583
      %v585 = vpop.f32.mrf.mxu0
      %v586 = vadd.f32 %v307, %v585
      %587 = vmatmul.bf16.gmra.mxu0 %v443
      %v588 = vpop.f32.mrf.mxu0
      %v589 = vadd.f32 %v307, %v588
      %v590 = vpop.f32.mrf.mxu0
      %v591 = vadd.f32 %v307, %v590
      %592 = vmatmul.bf16.gmra.mxu0 %v444
      %v593 = vpop.f32.mrf.mxu0
      %v594 = vadd.f32 %v307, %v593
      %v595 = vpop.f32.mrf.mxu0
      %v596 = vadd.f32 %v307, %v595
      %597 = vmatmul.bf16.gmra.mxu0 %v445
      %v598 = vpop.f32.mrf.mxu0
      %v599 = vadd.f32 %v307, %v598
      %v600 = vpop.f32.mrf.mxu0
      %v601 = vadd.f32 %v307, %v600
      %602 = vmatmul.bf16.gmra.mxu0 %v446
      %v603 = vpop.f32.mrf.mxu0
      %v604 = vadd.f32 %v307, %v603
      %v605 = vpop.f32.mrf.mxu0
      %v606 = vadd.f32 %v307, %v605
      %607 = vmatmul.bf16.gmra.mxu0 %v447
      %v608 = vpop.f32.mrf.mxu0
      %v609 = vadd.f32 %v307, %v608
      %v610 = vpop.f32.mrf.mxu0
      %v611 = vadd.f32 %v307, %v610
      %612 = vmatmul.bf16.gmra.mxu0 %v448
      %v613 = vpop.f32.mrf.mxu0
      %v614 = vadd.f32 %v307, %v613
      %v615 = vpop.f32.mrf.mxu0
      %v616 = vadd.f32 %v307, %v615
      %617 = vmatmul.bf16.gmra.mxu0 %v449
      %v618 = vpop.f32.mrf.mxu0
      %v619 = vadd.f32 %v307, %v618
      %v620 = vpop.f32.mrf.mxu0
      %v621 = vadd.f32 %v307, %v620
      %622 = vmatmul.bf16.gmra.mxu0 %v450
      %v623 = vpop.f32.mrf.mxu0
      %v624 = vadd.f32 %v307, %v623
      %v625 = vpop.f32.mrf.mxu0
      %v626 = vadd.f32 %v307, %v625
      %627 = vmatmul.bf16.gmra.mxu0 %v451
      %v628 = vpop.f32.mrf.mxu0
      %v629 = vadd.f32 %v307, %v628
      %v630 = vpop.f32.mrf.mxu0
      %v631 = vadd.f32 %v307, %v630
      %632 = vmatmul.bf16.gmra.mxu0 %v452
      %v633 = vpop.f32.mrf.mxu0
      %v634 = vadd.f32 %v307, %v633
      %v635 = vpop.f32.mrf.mxu0
      %v636 = vadd.f32 %v307, %v635
      %637 = vmatmul.bf16.gmra.mxu0 %v453
      %v638 = vpop.f32.mrf.mxu0
      %v639 = vadd.f32 %v307, %v638
      %v640 = vpop.f32.mrf.mxu0
      %v641 = vadd.f32 %v307, %v640
      %642 = vmatmul.bf16.gmra.mxu0 %v454
      %v643 = vpop.f32.mrf.mxu0
      %v644 = vadd.f32 %v307, %v643
      %v645 = vpop.f32.mrf.mxu0
      %v646 = vadd.f32 %v307, %v645
      %647 = vmatmul.bf16.gmra.mxu0 %v455
      %v648 = vpop.f32.mrf.mxu0
      %v649 = vadd.f32 %v307, %v648
      %v650 = vpop.f32.mrf.mxu0
      %v651 = vadd.f32 %v307, %v650
      %652 = vmatmul.bf16.gmra.mxu0 %v456
      %v653 = vpop.f32.mrf.mxu0
      %v654 = vadd.f32 %v307, %v653
      %v655 = vpop.f32.mrf.mxu0
      %v656 = vadd.f32 %v307, %v655
      %657 = vmatmul.bf16.gmra.mxu0 %v457
      %v658 = vpop.f32.mrf.mxu0
      %v659 = vadd.f32 %v307, %v658
      %v660 = vpop.f32.mrf.mxu0
      %v661 = vadd.f32 %v307, %v660
      %662 = vmatmul.bf16.gmra.mxu0 %v458
      %v663 = vpop.f32.mrf.mxu0
      %v664 = vadd.f32 %v307, %v663
      %v665 = vpop.f32.mrf.mxu0
      %v666 = vadd.f32 %v307, %v665
      %667 = vmatmul.bf16.gmra.mxu0 %v459
      %v668 = vpop.f32.mrf.mxu0
      %v669 = vadd.f32 %v307, %v668
      %v670 = vpop.f32.mrf.mxu0
      %v671 = vadd.f32 %v307, %v670
      %672 = vmatmul.bf16.gmra.mxu0 %v460
      %v673 = vpop.f32.mrf.mxu0
      %v674 = vadd.f32 %v307, %v673
      %v675 = vpop.f32.mrf.mxu0
      %v676 = vadd.f32 %v307, %v675
      %677 = vmatmul.bf16.gmra.mxu0 %v461
      %v678 = vpop.f32.mrf.mxu0
      %v679 = vadd.f32 %v307, %v678
      %v680 = vpop.f32.mrf.mxu0
      %v681 = vadd.f32 %v307, %v680
      %682 = vmatmul.bf16.gmra.mxu0 %v462
      %v683 = vpop.f32.mrf.mxu0
      %v684 = vadd.f32 %v307, %v683
      %v685 = vpop.f32.mrf.mxu0
      %v686 = vadd.f32 %v307, %v685
      %687 = vmatmul.bf16.gmra.mxu0 %v463
      %v688 = vpop.f32.mrf.mxu0
      %v689 = vadd.f32 %v307, %v688
      %v690 = vpop.f32.mrf.mxu0
      %v691 = vadd.f32 %v307, %v690
      %692 = vmatmul.bf16.gmra.mxu0 %v464
      %v693 = vpop.f32.mrf.mxu0
      %v694 = vadd.f32 %v307, %v693
      %v695 = vpop.f32.mrf.mxu0
      %v696 = vadd.f32 %v307, %v695
      %697 = vmatmul.bf16.gmra.mxu0 %v465
      %v698 = vpop.f32.mrf.mxu0
      %v699 = vadd.f32 %v307, %v698
      %v700 = vpop.f32.mrf.mxu0
      %v701 = vadd.f32 %v307, %v700
      %702 = vmatmul.bf16.gmra.mxu0 %v466
      %v703 = vpop.f32.mrf.mxu0
      %v704 = vadd.f32 %v307, %v703
      %v705 = vpop.f32.mrf.mxu0
      %v706 = vadd.f32 %v307, %v705
      %707 = vmatmul.bf16.gmra.mxu0 %v467
      %v708 = vpop.f32.mrf.mxu0
      %v709 = vadd.f32 %v307, %v708
      %v710 = vpop.f32.mrf.mxu0
      %v711 = vadd.f32 %v307, %v710
      %712 = vmatmul.bf16.gmra.mxu0 %v468
      %v713 = vpop.f32.mrf.mxu0
      %v714 = vadd.f32 %v307, %v713
      %v715 = vpop.f32.mrf.mxu0
      %v716 = vadd.f32 %v307, %v715
      %717 = vdwg.mxu0
      %v718 = vmax.f32 %v559, 0.0
      %v719 = vmax.f32 %v561, 0.0
      %v720 = vmax.f32 %v564, 0.0
      %v721 = vmax.f32 %v566, 0.0
      %v722 = vmax.f32 %v569, 0.0
      %v723 = vmax.f32 %v571, 0.0
      %v724 = vmax.f32 %v574, 0.0
      %v725 = vmax.f32 %v576, 0.0
      %v726 = vmax.f32 %v579, 0.0
      %v727 = vmax.f32 %v581, 0.0
      %v728 = vmax.f32 %v584, 0.0
      %v729 = vmax.f32 %v586, 0.0
      %v730 = vmax.f32 %v589, 0.0
      %v731 = vmax.f32 %v591, 0.0
      %v732 = vmax.f32 %v594, 0.0
      %v733 = vmax.f32 %v596, 0.0
      %v734 = vmax.f32 %v599, 0.0
      %v735 = vmax.f32 %v601, 0.0
      %v736 = vmax.f32 %v604, 0.0
      %v737 = vmax.f32 %v606, 0.0
      %v738 = vmax.f32 %v609, 0.0
      %v739 = vmax.f32 %v611, 0.0
      %v740 = vmax.f32 %v614, 0.0
      %v741 = vmax.f32 %v616, 0.0
      %v742 = vmax.f32 %v619, 0.0
      %v743 = vmax.f32 %v621, 0.0
      %v744 = vmax.f32 %v624, 0.0
      %v745 = vmax.f32 %v626, 0.0
      %v746 = vmax.f32 %v629, 0.0
      %v747 = vmax.f32 %v631, 0.0
      %v748 = vmax.f32 %v634, 0.0
      %v749 = vmax.f32 %v636, 0.0
      %v750 = vmax.f32 %v639, 0.0
      %v751 = vmax.f32 %v641, 0.0
      %v752 = vmax.f32 %v644, 0.0
      %v753 = vmax.f32 %v646, 0.0
      %v754 = vmax.f32 %v649, 0.0
      %v755 = vmax.f32 %v651, 0.0
      %v756 = vmax.f32 %v654, 0.0
      %v757 = vmax.f32 %v656, 0.0
      %v758 = vmax.f32 %v659, 0.0
      %v759 = vmax.f32 %v661, 0.0
      %v760 = vmax.f32 %v664, 0.0
      %v761 = vmax.f32 %v666, 0.0
      %v762 = vmax.f32 %v669, 0.0
      %v763 = vmax.f32 %v671, 0.0
      %v764 = vmax.f32 %v674, 0.0
      %v765 = vmax.f32 %v676, 0.0
      %v766 = vmax.f32 %v679, 0.0
      %v767 = vmax.f32 %v681, 0.0
      %v768 = vmax.f32 %v684, 0.0
      %v769 = vmax.f32 %v686, 0.0
      %v770 = vmax.f32 %v689, 0.0
      %v771 = vmax.f32 %v691, 0.0
      %v772 = vmax.f32 %v694, 0.0
      %v773 = vmax.f32 %v696, 0.0
      %v774 = vmax.f32 %v699, 0.0
      %v775 = vmax.f32 %v701, 0.0
      %v776 = vmax.f32 %v704, 0.0
      %v777 = vmax.f32 %v706, 0.0
      %v778 = vmax.f32 %v709, 0.0
      %v779 = vmax.f32 %v711, 0.0
      %v780 = vmax.f32 %v714, 0.0
      %v781 = vmax.f32 %v716, 0.0
      %v782 = vpack.c.bf16 %v718, %v718
      %v783 = vpack.c.bf16 %v719, %v719
      %v784 = vpack.c.bf16 %v720, %v720
      %v785 = vpack.c.bf16 %v721, %v721
      %v786 = vpack.c.bf16 %v722, %v722
      %v787 = vpack.c.bf16 %v723, %v723
      %v788 = vpack.c.bf16 %v724, %v724
      %v789 = vpack.c.bf16 %v725, %v725
      %v790 = vpack.c.bf16 %v726, %v726
      %v791 = vpack.c.bf16 %v727, %v727
      %v792 = vpack.c.bf16 %v728, %v728
      %v793 = vpack.c.bf16 %v729, %v729
      %v794 = vpack.c.bf16 %v730, %v730
      %v795 = vpack.c.bf16 %v731, %v731
      %v796 = vpack.c.bf16 %v732, %v732
      %v797 = vpack.c.bf16 %v733, %v733
      %v798 = vpack.c.bf16 %v734, %v734
      %v799 = vpack.c.bf16 %v735, %v735
      %v800 = vpack.c.bf16 %v736, %v736
      %v801 = vpack.c.bf16 %v737, %v737
      %v802 = vpack.c.bf16 %v738, %v738
      %v803 = vpack.c.bf16 %v739, %v739
      %v804 = vpack.c.bf16 %v740, %v740
      %v805 = vpack.c.bf16 %v741, %v741
      %v806 = vpack.c.bf16 %v742, %v742
      %v807 = vpack.c.bf16 %v743, %v743
      %v808 = vpack.c.bf16 %v744, %v744
      %v809 = vpack.c.bf16 %v745, %v745
      %v810 = vpack.c.bf16 %v746, %v746
      %v811 = vpack.c.bf16 %v747, %v747
      %v812 = vpack.c.bf16 %v748, %v748
      %v813 = vpack.c.bf16 %v749, %v749
      %v814 = vpack.c.bf16 %v750, %v750
      %v815 = vpack.c.bf16 %v751, %v751
      %v816 = vpack.c.bf16 %v752, %v752
      %v817 = vpack.c.bf16 %v753, %v753
      %v818 = vpack.c.bf16 %v754, %v754
      %v819 = vpack.c.bf16 %v755, %v755
      %v820 = vpack.c.bf16 %v756, %v756
      %v821 = vpack.c.bf16 %v757, %v757
      %v822 = vpack.c.bf16 %v758, %v758
      %v823 = vpack.c.bf16 %v759, %v759
      %v824 = vpack.c.bf16 %v760, %v760
      %v825 = vpack.c.bf16 %v761, %v761
      %v826 = vpack.c.bf16 %v762, %v762
      %v827 = vpack.c.bf16 %v763, %v763
      %v828 = vpack.c.bf16 %v764, %v764
      %v829 = vpack.c.bf16 %v765, %v765
      %v830 = vpack.c.bf16 %v766, %v766
      %v831 = vpack.c.bf16 %v767, %v767
      %v832 = vpack.c.bf16 %v768, %v768
      %v833 = vpack.c.bf16 %v769, %v769
      %v834 = vpack.c.bf16 %v770, %v770
      %v835 = vpack.c.bf16 %v771, %v771
      %v836 = vpack.c.bf16 %v772, %v772
      %v837 = vpack.c.bf16 %v773, %v773
      %v838 = vpack.c.bf16 %v774, %v774
      %v839 = vpack.c.bf16 %v775, %v775
      %v840 = vpack.c.bf16 %v776, %v776
      %v841 = vpack.c.bf16 %v777, %v777
      %v842 = vpack.c.bf16 %v778, %v778
      %v843 = vpack.c.bf16 %v779, %v779
      %v844 = vpack.c.bf16 %v780, %v780
      %v845 = vpack.c.bf16 %v781, %v781
      %846 = vst [vmem:[%s223] sm:$0xf] %v782
      %847 = vst [vmem:[%s223 + $0x4] sm:$0xf] %v783
      %848 = vst [vmem:[%s223 + $0x8] sm:$0xf] %v784
      %849 = vst [vmem:[%s223 + $0xc] sm:$0xf] %v785
      %850 = vst [vmem:[%s223 + $0x10] sm:$0xf] %v786
      %851 = vst [vmem:[%s223 + $0x14] sm:$0xf] %v787
      %852 = vst [vmem:[%s223 + $0x18] sm:$0xf] %v788
      %853 = vst [vmem:[%s223 + $0x1c] sm:$0xf] %v789
      %854 = vst [vmem:[%s223 + $0x20] sm:$0xf] %v790
      %855 = vst [vmem:[%s223 + $0x24] sm:$0xf] %v791
      %856 = vst [vmem:[%s223 + $0x28] sm:$0xf] %v792
      %857 = vst [vmem:[%s223 + $0x2c] sm:$0xf] %v793
      %858 = vst [vmem:[%s223 + $0x30] sm:$0xf] %v794
      %859 = vst [vmem:[%s223 + $0x34] sm:$0xf] %v795
      %860 = vst [vmem:[%s223 + $0x38] sm:$0xf] %v796
      %861 = vst [vmem:[%s223 + $0x3c] sm:$0xf] %v797
      %862 = vst [vmem:[%s223 + $0x40] sm:$0xf] %v798
      %863 = vst [vmem:[%s223 + $0x44] sm:$0xf] %v799
      %864 = vst [vmem:[%s223 + $0x48] sm:$0xf] %v800
      %865 = vst [vmem:[%s223 + $0x4c] sm:$0xf] %v801
      %866 = vst [vmem:[%s223 + $0x50] sm:$0xf] %v802
      %867 = vst [vmem:[%s223 + $0x54] sm:$0xf] %v803
      %868 = vst [vmem:[%s223 + $0x58] sm:$0xf] %v804
      %869 = vst [vmem:[%s223 + $0x5c] sm:$0xf] %v805
      %870 = vst [vmem:[%s223 + $0x60] sm:$0xf] %v806
      %871 = vst [vmem:[%s223 + $0x64] sm:$0xf] %v807
      %872 = vst [vmem:[%s223 + $0x68] sm:$0xf] %v808
      %873 = vst [vmem:[%s223 + $0x6c] sm:$0xf] %v809
      %874 = vst [vmem:[%s223 + $0x70] sm:$0xf] %v810
      %875 = vst [vmem:[%s223 + $0x74] sm:$0xf] %v811
      %876 = vst [vmem:[%s223 + $0x78] sm:$0xf] %v812
      %877 = vst [vmem:[%s223 + $0x7c] sm:$0xf] %v813
      %878 = vst [vmem:[%s223 + $0x80] sm:$0xf] %v814
      %879 = vst [vmem:[%s223 + $0x84] sm:$0xf] %v815
      %880 = vst [vmem:[%s223 + $0x88] sm:$0xf] %v816
      %881 = vst [vmem:[%s223 + $0x8c] sm:$0xf] %v817
      %882 = vst [vmem:[%s223 + $0x90] sm:$0xf] %v818
      %883 = vst [vmem:[%s223 + $0x94] sm:$0xf] %v819
      %884 = vst [vmem:[%s223 + $0x98] sm:$0xf] %v820
      %885 = vst [vmem:[%s223 + $0x9c] sm:$0xf] %v821
      %886 = vst [vmem:[%s223 + $0xa0] sm:$0xf] %v822
      %887 = vst [vmem:[%s223 + $0xa4] sm:$0xf] %v823
      %888 = vst [vmem:[%s223 + $0xa8] sm:$0xf] %v824
      %889 = vst [vmem:[%s223 + $0xac] sm:$0xf] %v825
      %890 = vst [vmem:[%s223 + $0xb0] sm:$0xf] %v826
      %891 = vst [vmem:[%s223 + $0xb4] sm:$0xf] %v827
      %892 = vst [vmem:[%s223 + $0xb8] sm:$0xf] %v828
      %893 = vst [vmem:[%s223 + $0xbc] sm:$0xf] %v829
      %894 = vst [vmem:[%s223 + $0xc0] sm:$0xf] %v830
      %895 = vst [vmem:[%s223 + $0xc4] sm:$0xf] %v831
      %896 = vst [vmem:[%s223 + $0xc8] sm:$0xf] %v832
      %897 = vst [vmem:[%s223 + $0xcc] sm:$0xf] %v833
      %898 = vst [vmem:[%s223 + $0xd0] sm:$0xf] %v834
      %899 = vst [vmem:[%s223 + $0xd4] sm:$0xf] %v835
      %900 = vst [vmem:[%s223 + $0xd8] sm:$0xf] %v836
      %901 = vst [vmem:[%s223 + $0xdc] sm:$0xf] %v837
      %902 = vst [vmem:[%s223 + $0xe0] sm:$0xf] %v838
      %903 = vst [vmem:[%s223 + $0xe4] sm:$0xf] %v839
      %904 = vst [vmem:[%s223 + $0xe8] sm:$0xf] %v840
      %905 = vst [vmem:[%s223 + $0xec] sm:$0xf] %v841
      %906 = vst [vmem:[%s223 + $0xf0] sm:$0xf] %v842
      %907 = vst [vmem:[%s223 + $0xf4] sm:$0xf] %v843
      %908 = vst [vmem:[%s223 + $0xf8] sm:$0xf] %v844
      %909 = vst [vmem:[%s223 + $0xfc] sm:$0xf] %v845
      %s910 = smul.u32 64, %s18
      %p911 = scmp.lt.s32.totalorder %s910, 127
      %s912 = scalar_select %p911, %s910, 127
      %p913 = scmp.lt.s32.totalorder %s19, 0
      %s914 = scalar_select %p913, %s19, 0
      %s915 = sadd.s32 %s914, %s912
      %s916 = smul.addr %s915, 4
      %s917 = scalar_lea.vmem %s3, %s916
      // Predicated region
      $region33: #{resnet3d_recognizer_forward.3} parent=31 // pred_check
        %p918 = pneg %p124
      $region34: #{resnet3d_recognizer_forward.3} parent=31 // pred_check_branch
        %920 = sbr.rel (%p918) target = $region36
      $region35: #{resnet3d_recognizer_forward.3} parent=31 // pred_region
        %s921 = smul.u32 64, %s18
      $region36: #{resnet3d_recognizer_forward.3} parent=31 // pred_fallthru
        _
    $region32: #{resnet3d_recognizer_forward.3} parent=5 // pred_fallthru
      _
    %p922 = scmp.le.s32.totalorder 2, %s9
    // Predicated region
    $region37: #{resnet3d_recognizer_forward.3} parent=5 // pred_check
      %p923 = pneg %p922
    $region38: #{resnet3d_recognizer_forward.3} parent=5 // pred_check_branch
      %925 = sbr.rel (%p923) target = $region40
    $region39: #{resnet3d_recognizer_forward.3} parent=5 // pred_region
      %s926 = ssub.s32 %s9, 2
      // Predicated region
      $region41: #{resnet3d_recognizer_forward.3} parent=39 // pred_check
        %p927 = pneg %p130
      $region42: #{resnet3d_recognizer_forward.3} parent=39 // pred_check_branch
        %929 = sbr.rel (%p927) target = $region44
      $region43: #{resnet3d_recognizer_forward.3} parent=39 // pred_region
        %s930 = smul.u32 64, %s20
        %p931 = scmp.lt.s32.totalorder %s930, 127
        %s932 = scalar_select %p931, %s930, 127
        %p933 = scmp.lt.s32.totalorder %s21, 0
        %s934 = scalar_select %p933, %s21, 0
        %s935 = sadd.s32 %s934, %s932
        %s936 = smul.addr %s935, 4
        %s937 = scalar_lea.vmem %s3, %s936
      $region44: #{resnet3d_recognizer_forward.3} parent=39 // pred_fallthru
        _
    $region40: #{resnet3d_recognizer_forward.3} parent=5 // pred_fallthru
      _
  $region6: #{resnet3d_recognizer_forward.3} parent=0 // loop_footer
    %s13 = sadd.s32 1, %s9
  $region7: #{resnet3d_recognizer_forward.3} parent=0 // loop_footer_branch
    %8 = sbr.rel target = $region3
  $region8: #{resnet3d_recognizer_forward.3} parent=0 // loop_exit
    _

// kernel: resnet3d_recognizer_forward.4
$region0: #{resnet3d_recognizer_forward.4}
  #allocation0 [shape = 'u32[]', space=smem, size = 0x4, offset = 0x4, fixed_abs, tag = 'smem constant byte address 0x4 - core index']
  #allocation1 [shape = 'u32[72,128]{1,0:T(1,128)}', space=vmem, size = 0x9000, scoped, tag = 'internal scratch']
  %s0 = inlined_call_operand.vmem [shape: bf16[1024,512], index: 0, kind: input, shape index: {}]
  %s1 = inlined_call_operand.vmem [shape: bf16[512,128], index: 1, kind: input, shape index: {}]
  %s2 = inlined_call_operand.vmem [shape: f32[1,128], index: 2, kind: input, shape index: {}]
  %s3 = inlined_call_operand.vmem [shape: bf16[1024,128], index: 3, kind: output, shape index: {}]
  %s4 = sld [smem:[#allocation0]]
  $region45: #{resnet3d_recognizer_forward.4} parent=0
    _
  %s6 = ssub.s32 1, %s4
  %s7 = scalar_select 0, %s6, %s4
  loop: start=0, step=1, limit=4
  $region2: #{resnet3d_recognizer_forward.4} parent=0 // loop_pre_header
    _
  $region3: #{resnet3d_recognizer_forward.4} parent=0 // loop_header
    %s9 = sphi 0, %s13
    %p10 = scmp.ge.s32.totalorder %s9, 4
    %s16 = sphi 0, %s28
    %s17 = sphi 0, %s24
    %s18 = sphi 0, %s16
    %s19 = sphi 0, %s17
    %s20 = sphi 0, %s18
    %s21 = sphi 0, %s19
    %s31 = sphi 0, %s33
    %s34 = sphi 0, %s31
    %s35 = sphi 0, %s34
    %s51 = sphi 0, %s35
    %s57 = sphi 0, %s59
    %s60 = sphi 0, %s57
    %s61 = sphi 0, %s60
    %s77 = sphi 0, %s61
    %s83 = sphi 0, %s85
    %s86 = sphi 0, %s83
    %s87 = sphi 0, %s86
    %s103 = sphi 0, %s87
    %s111 = sphi 0, %s113
    %s114 = sphi 0, %s111
    %s115 = sphi 0, %s114
    %s131 = sphi 0, %s115
  $region4: #{resnet3d_recognizer_forward.4} parent=0 // loop_header_branch
    %12 = sbr.rel (%p10) target = $region8
  $region5: #{resnet3d_recognizer_forward.4} parent=0 // loop_body
    %s14 = ssub.s32 %s9, 1
    %s15 = ssub.s32 %s9, 2
    %s22 = sadd.s32 1, %s17
    %p23 = scmp.ge.s32.totalorder %s22, 1
    %s24 = scalar_select %p23, 0, %s22
    %s25 = sadd.s32 1, %s16
    %s26 = scalar_select %p23, %s25, %s16
    %p27 = scmp.ge.s32.totalorder %s26, 2
    %s28 = scalar_select %p27, 0, %s26
    %s29 = ssub.s32 %s16, %s28
    %p30 = scmp.eq.s32.totalorder %s29, 0
    %s32 = sadd.s32 %s31, 1
    %s33 = scalar_select %p30, %s31, %s32
    %p36 = pneg %p30
    %p37 = scmp.eq.s32.totalorder %s9, 1
    %p38 = por %p36, %p37
    %p39 = scmp.ne.s32.totalorder %s31, %s34
    %p40 = scmp.eq.s32.totalorder %s9, 0
    %p41 = por %p39, %p40
    %p42 = scmp.ne.s32.totalorder %s31, %s34
    %p43 = scmp.eq.s32.totalorder %s14, 1
    %p44 = por %p42, %p43
    %p45 = scmp.ne.s32.totalorder %s34, %s35
    %p46 = scmp.eq.s32.totalorder %s14, 0
    %p47 = por %p45, %p46
    %p48 = scmp.ne.s32.totalorder %s34, %s35
    %p49 = scmp.eq.s32.totalorder %s15, 1
    %p50 = por %p48, %p49
    %p52 = scmp.ne.s32.totalorder %s35, %s51
    %p53 = scmp.eq.s32.totalorder %s15, 0
    %p54 = por %p52, %p53
    %s55 = ssub.s32 %s17, %s24
    %p56 = scmp.eq.s32.totalorder %s55, 0
    %s58 = sadd.s32 %s57, 1
    %s59 = scalar_select %p56, %s57, %s58
    %p62 = pneg %p56
    %p63 = scmp.eq.s32.totalorder %s9, 1
    %p64 = por %p62, %p63
    %p65 = scmp.ne.s32.totalorder %s57, %s60
    %p66 = scmp.eq.s32.totalorder %s9, 0
    %p67 = por %p65, %p66
    %p68 = scmp.ne.s32.totalorder %s57, %s60
    %p69 = scmp.eq.s32.totalorder %s14, 1
    %p70 = por %p68, %p69
    %p71 = scmp.ne.s32.totalorder %s60, %s61
    %p72 = scmp.eq.s32.totalorder %s14, 0
    %p73 = por %p71, %p72
    %p74 = scmp.ne.s32.totalorder %s60, %s61
    %p75 = scmp.eq.s32.totalorder %s15, 1
    %p76 = por %p74, %p75
    %p78 = scmp.ne.s32.totalorder %s61, %s77
    %p79 = scmp.eq.s32.totalorder %s15, 0
    %p80 = por %p78, %p79
    %s81 = ssub.s32 %s17, %s24
    %p82 = scmp.eq.s32.totalorder %s81, 0
    %s84 = sadd.s32 %s83, 1
    %s85 = scalar_select %p82, %s83, %s84
    %p88 = pneg %p82
    %p89 = scmp.eq.s32.totalorder %s9, 1
    %p90 = por %p88, %p89
    %p91 = scmp.ne.s32.totalorder %s83, %s86
    %p92 = scmp.eq.s32.totalorder %s9, 0
    %p93 = por %p91, %p92
    %p94 = scmp.ne.s32.totalorder %s83, %s86
    %p95 = scmp.eq.s32.totalorder %s14, 1
    %p96 = por %p94, %p95
    %p97 = scmp.ne.s32.totalorder %s86, %s87
    %p98 = scmp.eq.s32.totalorder %s14, 0
    %p99 = por %p97, %p98
    %p100 = scmp.ne.s32.totalorder %s86, %s87
    %p101 = scmp.eq.s32.totalorder %s15, 1
    %p102 = por %p100, %p101
    %p104 = scmp.ne.s32.totalorder %s87, %s103
    %p105 = scmp.eq.s32.totalorder %s15, 0
    %p106 = por %p104, %p105
    %s107 = ssub.s32 %s16, %s28
    %s108 = ssub.s32 %s17, %s24
    %s109 = sor.u32 %s107, %s108
    %p110 = scmp.eq.s32.totalorder %s109, 0
    %s112 = sadd.s32 %s111, 1
    %s113 = scalar_select %p110, %s111, %s112
    %p116 = pneg %p110
    %p117 = scmp.eq.s32.totalorder %s9, 1
    %p118 = por %p116, %p117
    %p119 = scmp.ne.s32.totalorder %s111, %s114
    %p120 = scmp.eq.s32.totalorder %s9, 0
    %p121 = por %p119, %p120
    %p122 = scmp.ne.s32.totalorder %s111, %s114
    %p123 = scmp.eq.s32.totalorder %s14, 1
    %p124 = por %p122, %p123
    %p125 = scmp.ne.s32.totalorder %s114, %s115
    %p126 = scmp.eq.s32.totalorder %s14, 0
    %p127 = por %p125, %p126
    %p128 = scmp.ne.s32.totalorder %s114, %s115
    %p129 = scmp.eq.s32.totalorder %s15, 1
    %p130 = por %p128, %p129
    %p132 = scmp.ne.s32.totalorder %s115, %s131
    %p133 = scmp.eq.s32.totalorder %s15, 0
    %p134 = por %p132, %p133
    %p135 = scmp.le.s32.totalorder 1, %s9
    %p136 = scmp.lt.s32.totalorder %s9, 3
    %p137 = pnand %p135, %p136
    %p138 = pneg %p137
    // Predicated region
    $region9: #{resnet3d_recognizer_forward.4} parent=5 // pred_check
      _
    $region10: #{resnet3d_recognizer_forward.4} parent=5 // pred_check_branch
      %140 = sbr.rel (%p137) target = $region12
    $region11: #{resnet3d_recognizer_forward.4} parent=5 // pred_region
      %s141 = ssub.s32 %s9, 1
      // Predicated region
      $region13: #{resnet3d_recognizer_forward.4} parent=11 // pred_check
        %p142 = pneg %p73
      $region14: #{resnet3d_recognizer_forward.4} parent=11 // pred_check_branch
        %144 = sbr.rel (%p142) target = $region16
      $region15: #{resnet3d_recognizer_forward.4} parent=11 // pred_region
        %p145 = scmp.lt.s32.totalorder %s19, 0
        %s146 = scalar_select %p145, %s19, 0
        %s147 = smul.addr %s146, 4
        %s148 = scalar_lea.vmem %s1, %s147
      $region16: #{resnet3d_recognizer_forward.4} parent=11 // pred_fallthru
        _
      // Predicated region
      $region17: #{resnet3d_recognizer_forward.4} parent=11 // pred_check
        %p149 = pneg %p99
      $region18: #{resnet3d_recognizer_forward.4} parent=11 // pred_check_branch
        %151 = sbr.rel (%p149) target = $region20
      $region19: #{resnet3d_recognizer_forward.4} parent=11 // pred_region
        %p152 = scmp.lt.s32.totalorder %s19, 0
        %s153 = scalar_select %p152, %s19, 0
        %s154 = scalar_lea.vmem %s2, %s153
      $region20: #{resnet3d_recognizer_forward.4} parent=11 // pred_fallthru
        _
    $region12: #{resnet3d_recognizer_forward.4} parent=5 // pred_fallthru
      _
    %p155 = scmp.lt.s32.totalorder %s9, 2
    // Predicated region
    $region21: #{resnet3d_recognizer_forward.4} parent=5 // pred_check
      %p156 = pneg %p155
    $region22: #{resnet3d_recognizer_forward.4} parent=5 // pred_check_branch
      %158 = sbr.rel (%p156) target = $region24
    $region23: #{resnet3d_recognizer_forward.4} parent=5 // pred_region
      // Predicated region
      $region25: #{resnet3d_recognizer_forward.4} parent=23 // pred_check
        %p159 = pneg %p41
      $region26: #{resnet3d_recognizer_forward.4} parent=23 // pred_check_branch
        %161 = sbr.rel (%p159) target = $region28
      $region27: #{resnet3d_recognizer_forward.4} parent=23 // pred_region
        %s162 = smul.u32 64, %s16
        %p163 = scmp.lt.s32.totalorder %s162, 127
        %s164 = scalar_select %p163, %s162, 127
        %s165 = smul.addr %s164, 4
        %s166 = smul.addr %s165, 4
        %s167 = scalar_lea.vmem %s0, %s166
        %s168 = smul.u32 64, %s16
      $region28: #{resnet3d_recognizer_forward.4} parent=23 // pred_fallthru
        _
    $region24: #{resnet3d_recognizer_forward.4} parent=5 // pred_fallthru
      _
    %p169 = scmp.le.s32.totalorder 1, %s9
    %p170 = scmp.lt.s32.totalorder %s9, 3
    %p171 = pnand %p169, %p170
    %p172 = pneg %p171
    // Predicated region
    $region29: #{resnet3d_recognizer_forward.4} parent=5 // pred_check
      _
    $region30: #{resnet3d_recognizer_forward.4} parent=5 // pred_check_branch
      %174 = sbr.rel (%p171) target = $region32
    $region31: #{resnet3d_recognizer_forward.4} parent=5 // pred_region
      %s175 = ssub.s32 %s9, 1
      %s176 = smul.u32 64, %s18
      %p177 = scmp.lt.s32.totalorder %s176, 127
      %s178 = scalar_select %p177, %s176, 127
      %s179 = smul.addr %s178, 4
      %s180 = smul.addr %s179, 4
      %s181 = scalar_lea.vmem %s0, %s180
      %p182 = pneg %p47
      %p183 = pneg %p44
      %p184 = scmp.lt.s32.totalorder %s19, 0
      %s185 = scalar_select %p184, %s19, 0
      %s186 = smul.addr %s185, 4
      %s187 = scalar_lea.vmem %s1, %s186
      %p188 = pneg %p73
      %p189 = pneg %p70
      %p190 = scmp.lt.s32.totalorder %s19, 0
      %s191 = scalar_select %p190, %s19, 0
      %s192 = scalar_lea.vmem %s2, %s191
      %p193 = pneg %p99
      %p194 = pneg %p96
      %p195 = pneg %p127
      %p196 = pneg %p124
      %s197 = smul.u32 64, %s18
      %p198 = scmp.lt.s32.totalorder %s197, 127
      %s199 = scalar_select %p198, %s197, 127
      %p200 = scmp.lt.s32.totalorder %s19, 0
      %s201 = scalar_select %p200, %s19, 0
      %s202 = sadd.s32 %s201, %s199
      %s203 = smul.addr %s202, 4
      %s204 = scalar_lea.vmem %s3, %s203
      %s205 = smul.u32 64, %s18
      %p206 = scmp.lt.s32.totalorder %s205, 127
      %s207 = scalar_select %p206, %s205, 127
      %s208 = smul.addr %s207, 4
      %s209 = smul.addr %s208, 4
      %s210 = scalar_lea.vmem %s0, %s209
      %s211 = smul.u32 64, %s18
      %p212 = scmp.lt.s32.totalorder %s19, 0
      %s213 = scalar_select %p212, %s19, 0
      %s214 = smul.addr %s213, 4
      %s215 = scalar_lea.vmem %s1, %s214
      %p216 = scmp.lt.s32.totalorder %s19, 0
      %s217 = scalar_select %p216, %s19, 0
      %s218 = scalar_lea.vmem %s2, %s217
      %s219 = smul.u32 64, %s18
      %p220 = scmp.lt.s32.totalorder %s219, 127
      %s221 = scalar_select %p220, %s219, 127
      %p222 = scmp.lt.s32.totalorder %s19, 0
      %s223 = scalar_select %p222, %s19, 0
      %s224 = sadd.s32 %s223, %s221
      %s225 = smul.addr %s224, 4
      %s226 = scalar_lea.vmem %s3, %s225
      %s227 = smul.u32 64, %s18
      %v228 = vld [vmem:[%s210] sm:$0xff]
      %v229 = vld [vmem:[%s210 + $0x8] sm:$0xff]
      %v230 = vld [vmem:[%s210 + $0x10] sm:$0xff]
      %v231 = vld [vmem:[%s210 + $0x18] sm:$0xff]
      %v232 = vld [vmem:[%s210 + $0x20] sm:$0xff]
      %v233 = vld [vmem:[%s210 + $0x28] sm:$0xff]
      %v234 = vld [vmem:[%s210 + $0x30] sm:$0xff]
      %v235 = vld [vmem:[%s210 + $0x38] sm:$0xff]
      %v236 = vld [vmem:[%s210 + $0x40] sm:$0xff]
      %v237 = vld [vmem:[%s210 + $0x48] sm:$0xff]
      %v238 = vld [vmem:[%s210 + $0x50] sm:$0xff]
      %v239 = vld [vmem:[%s210 + $0x58] sm:$0xff]
      %v240 = vld [vmem:[%s210 + $0x60] sm:$0xff]
      %v241 = vld [vmem:[%s210 + $0x68] sm:$0xff]
      %v242 = vld [vmem:[%s210 + $0x70] sm:$0xff]
      %v243 = vld [vmem:[%s210 + $0x78] sm:$0xff]
      %v244 = vld [vmem:[%s210 + $0x80] sm:$0xff]
      %v245 = vld [vmem:[%s210 + $0x88] sm:$0xff]
      %v246 = vld [vmem:[%s210 + $0x90] sm:$0xff]
      %v247 = vld [vmem:[%s210 + $0x98] sm:$0xff]
      %v248 = vld [vmem:[%s210 + $0xa0] sm:$0xff]
      %v249 = vld [vmem:[%s210 + $0xa8] sm:$0xff]
      %v250 = vld [vmem:[%s210 + $0xb0] sm:$0xff]
      %v251 = vld [vmem:[%s210 + $0xb8] sm:$0xff]
      %v252 = vld [vmem:[%s210 + $0xc0] sm:$0xff]
      %v253 = vld [vmem:[%s210 + $0xc8] sm:$0xff]
      %v254 = vld [vmem:[%s210 + $0xd0] sm:$0xff]
      %v255 = vld [vmem:[%s210 + $0xd8] sm:$0xff]
      %v256 = vld [vmem:[%s210 + $0xe0] sm:$0xff]
      %v257 = vld [vmem:[%s210 + $0xe8] sm:$0xff]
      %v258 = vld [vmem:[%s210 + $0xf0] sm:$0xff]
      %v259 = vld [vmem:[%s210 + $0xf8] sm:$0xff]
      %v260 = vld [vmem:[%s210 + $0x100] sm:$0xff]
      %v261 = vld [vmem:[%s210 + $0x108] sm:$0xff]
      %v262 = vld [vmem:[%s210 + $0x110] sm:$0xff]
      %v263 = vld [vmem:[%s210 + $0x118] sm:$0xff]
      %v264 = vld [vmem:[%s210 + $0x120] sm:$0xff]
      %v265 = vld [vmem:[%s210 + $0x128] sm:$0xff]
      %v266 = vld [vmem:[%s210 + $0x130] sm:$0xff]
      %v267 = vld [vmem:[%s210 + $0x138] sm:$0xff]
      %v268 = vld [vmem:[%s210 + $0x140] sm:$0xff]
      %v269 = vld [vmem:[%s210 + $0x148] sm:$0xff]
      %v270 = vld [vmem:[%s210 + $0x150] sm:$0xff]
      %v271 = vld [vmem:[%s210 + $0x158] sm:$0xff]
      %v272 = vld [vmem:[%s210 + $0x160] sm:$0xff]
      %v273 = vld [vmem:[%s210 + $0x168] sm:$0xff]
      %v274 = vld [vmem:[%s210 + $0x170] sm:$0xff]
      %v275 = vld [vmem:[%s210 + $0x178] sm:$0xff]
      %v276 = vld [vmem:[%s210 + $0x180] sm:$0xff]
      %v277 = vld [vmem:[%s210 + $0x188] sm:$0xff]
      %v278 = vld [vmem:[%s210 + $0x190] sm:$0xff]
      %v279 = vld [vmem:[%s210 + $0x198] sm:$0xff]
      %v280 = vld [vmem:[%s210 + $0x1a0] sm:$0xff]
      %v281 = vld [vmem:[%s210 + $0x1a8] sm:$0xff]
      %v282 = vld [vmem:[%s210 + $0x1b0] sm:$0xff]
      %v283 = vld [vmem:[%s210 + $0x1b8] sm:$0xff]
      %v284 = vld [vmem:[%s210 + $0x1c0] sm:$0xff]
      %v285 = vld [vmem:[%s210 + $0x1c8] sm:$0xff]
      %v286 = vld [vmem:[%s210 + $0x1d0] sm:$0xff]
      %v287 = vld [vmem:[%s210 + $0x1d8] sm:$0xff]
      %v288 = vld [vmem:[%s210 + $0x1e0] sm:$0xff]
      %v289 = vld [vmem:[%s210 + $0x1e8] sm:$0xff]
      %v290 = vld [vmem:[%s210 + $0x1f0] sm:$0xff]
      %v291 = vld [vmem:[%s210 + $0x1f8] sm:$0xff]
      %v292 = vld [vmem:[%s210 + $0x200] sm:$0xff]
      %v293 = vld [vmem:[%s210 + $0x208] sm:$0xff]
      %v294 = vld [vmem:[%s210 + $0x210] sm:$0xff]
      %v295 = vld [vmem:[%s210 + $0x218] sm:$0xff]
      %v296 = vld [vmem:[%s210 + $0x220] sm:$0xff]
      %v297 = vld [vmem:[%s210 + $0x228] sm:$0xff]
      %v298 = vld [vmem:[%s210 + $0x230] sm:$0xff]
      %v299 = vld [vmem:[%s210 + $0x238] sm:$0xff]
      %v300 = vld [vmem:[%s210 + $0x240] sm:$0xff]
      %v301 = vld [vmem:[%s210 + $0x248] sm:$0xff]
      %v302 = vld [vmem:[%s210 + $0x250] sm:$0xff]
      %v303 = vld [vmem:[%s210 + $0x258] sm:$0xff]
      %v304 = vld [vmem:[%s210 + $0x260] sm:$0xff]
      %v305 = vld [vmem:[%s210 + $0x268] sm:$0xff]
      %v306 = vld [vmem:[%s210 + $0x270] sm:$0xff]
      %v307 = vld [vmem:[%s210 + $0x278] sm:$0xff]
      %v308 = vld [vmem:[%s210 + $0x280] sm:$0xff]
      %v309 = vld [vmem:[%s210 + $0x288] sm:$0xff]
      %v310 = vld [vmem:[%s210 + $0x290] sm:$0xff]
      %v311 = vld [vmem:[%s210 + $0x298] sm:$0xff]
      %v312 = vld [vmem:[%s210 + $0x2a0] sm:$0xff]
      %v313 = vld [vmem:[%s210 + $0x2a8] sm:$0xff]
      %v314 = vld [vmem:[%s210 + $0x2b0] sm:$0xff]
      %v315 = vld [vmem:[%s210 + $0x2b8] sm:$0xff]
      %v316 = vld [vmem:[%s210 + $0x2c0] sm:$0xff]
      %v317 = vld [vmem:[%s210 + $0x2c8] sm:$0xff]
      %v318 = vld [vmem:[%s210 + $0x2d0] sm:$0xff]
      %v319 = vld [vmem:[%s210 + $0x2d8] sm:$0xff]
      %v320 = vld [vmem:[%s210 + $0x2e0] sm:$0xff]
      %v321 = vld [vmem:[%s210 + $0x2e8] sm:$0xff]
      %v322 = vld [vmem:[%s210 + $0x2f0] sm:$0xff]
      %v323 = vld [vmem:[%s210 + $0x2f8] sm:$0xff]
      %v324 = vld [vmem:[%s210 + $0x300] sm:$0xff]
      %v325 = vld [vmem:[%s210 + $0x308] sm:$0xff]
      %v326 = vld [vmem:[%s210 + $0x310] sm:$0xff]
      %v327 = vld [vmem:[%s210 + $0x318] sm:$0xff]
      %v328 = vld [vmem:[%s210 + $0x320] sm:$0xff]
      %v329 = vld [vmem:[%s210 + $0x328] sm:$0xff]
      %v330 = vld [vmem:[%s210 + $0x330] sm:$0xff]
      %v331 = vld [vmem:[%s210 + $0x338] sm:$0xff]
      %v332 = vld [vmem:[%s210 + $0x340] sm:$0xff]
      %v333 = vld [vmem:[%s210 + $0x348] sm:$0xff]
      %v334 = vld [vmem:[%s210 + $0x350] sm:$0xff]
      %v335 = vld [vmem:[%s210 + $0x358] sm:$0xff]
      %v336 = vld [vmem:[%s210 + $0x360] sm:$0xff]
      %v337 = vld [vmem:[%s210 + $0x368] sm:$0xff]
      %v338 = vld [vmem:[%s210 + $0x370] sm:$0xff]
      %v339 = vld [vmem:[%s210 + $0x378] sm:$0xff]
      %v340 = vld [vmem:[%s210 + $0x380] sm:$0xff]
      %v341 = vld [vmem:[%s210 + $0x388] sm:$0xff]
      %v342 = vld [vmem:[%s210 + $0x390] sm:$0xff]
      %v343 = vld [vmem:[%s210 + $0x398] sm:$0xff]
      %v344 = vld [vmem:[%s210 + $0x3a0] sm:$0xff]
      %v345 = vld [vmem:[%s210 + $0x3a8] sm:$0xff]
      %v346 = vld [vmem:[%s210 + $0x3b0] sm:$0xff]
      %v347 = vld [vmem:[%s210 + $0x3b8] sm:$0xff]
      %v348 = vld [vmem:[%s210 + $0x3c0] sm:$0xff]
      %v349 = vld [vmem:[%s210 + $0x3c8] sm:$0xff]
      %v350 = vld [vmem:[%s210 + $0x3d0] sm:$0xff]
      %v351 = vld [vmem:[%s210 + $0x3d8] sm:$0xff]
      %v352 = vld [vmem:[%s210 + $0x3e0] sm:$0xff]
      %v353 = vld [vmem:[%s210 + $0x3e8] sm:$0xff]
      %v354 = vld [vmem:[%s210 + $0x3f0] sm:$0xff]
      %v355 = vld [vmem:[%s210 + $0x3f8] sm:$0xff]
      %v356 = vld [vmem:[%s215] sm:$0xf]
      %v357 = vld [vmem:[%s215 + $0x4] sm:$0xf]
      %v358 = vld [vmem:[%s215 + $0x8] sm:$0xf]
      %v359 = vld [vmem:[%s215 + $0xc] sm:$0xf]
      %v360 = vld [vmem:[%s215 + $0x10] sm:$0xf]
      %v361 = vld [vmem:[%s215 + $0x14] sm:$0xf]
      %v362 = vld [vmem:[%s215 + $0x18] sm:$0xf]
      %v363 = vld [vmem:[%s215 + $0x1c] sm:$0xf]
      %v364 = vld [vmem:[%s215 + $0x20] sm:$0xf]
      %v365 = vld [vmem:[%s215 + $0x24] sm:$0xf]
      %v366 = vld [vmem:[%s215 + $0x28] sm:$0xf]
      %v367 = vld [vmem:[%s215 + $0x2c] sm:$0xf]
      %v368 = vld [vmem:[%s215 + $0x30] sm:$0xf]
      %v369 = vld [vmem:[%s215 + $0x34] sm:$0xf]
      %v370 = vld [vmem:[%s215 + $0x38] sm:$0xf]
      %v371 = vld [vmem:[%s215 + $0x3c] sm:$0xf]
      %v372 = vld [vmem:[%s215 + $0x40] sm:$0xf]
      %v373 = vld [vmem:[%s215 + $0x44] sm:$0xf]
      %v374 = vld [vmem:[%s215 + $0x48] sm:$0xf]
      %v375 = vld [vmem:[%s215 + $0x4c] sm:$0xf]
      %v376 = vld [vmem:[%s215 + $0x50] sm:$0xf]
      %v377 = vld [vmem:[%s215 + $0x54] sm:$0xf]
      %v378 = vld [vmem:[%s215 + $0x58] sm:$0xf]
      %v379 = vld [vmem:[%s215 + $0x5c] sm:$0xf]
      %v380 = vld [vmem:[%s215 + $0x60] sm:$0xf]
      %v381 = vld [vmem:[%s215 + $0x64] sm:$0xf]
      %v382 = vld [vmem:[%s215 + $0x68] sm:$0xf]
      %v383 = vld [vmem:[%s215 + $0x6c] sm:$0xf]
      %v384 = vld [vmem:[%s215 + $0x70] sm:$0xf]
      %v385 = vld [vmem:[%s215 + $0x74] sm:$0xf]
      %v386 = vld [vmem:[%s215 + $0x78] sm:$0xf]
      %v387 = vld [vmem:[%s215 + $0x7c] sm:$0xf]
      %v388 = vld [vmem:[%s215 + $0x80] sm:$0xf]
      %v389 = vld [vmem:[%s215 + $0x84] sm:$0xf]
      %v390 = vld [vmem:[%s215 + $0x88] sm:$0xf]
      %v391 = vld [vmem:[%s215 + $0x8c] sm:$0xf]
      %v392 = vld [vmem:[%s215 + $0x90] sm:$0xf]
      %v393 = vld [vmem:[%s215 + $0x94] sm:$0xf]
      %v394 = vld [vmem:[%s215 + $0x98] sm:$0xf]
      %v395 = vld [vmem:[%s215 + $0x9c] sm:$0xf]
      %v396 = vld [vmem:[%s215 + $0xa0] sm:$0xf]
      %v397 = vld [vmem:[%s215 + $0xa4] sm:$0xf]
      %v398 = vld [vmem:[%s215 + $0xa8] sm:$0xf]
      %v399 = vld [vmem:[%s215 + $0xac] sm:$0xf]
      %v400 = vld [vmem:[%s215 + $0xb0] sm:$0xf]
      %v401 = vld [vmem:[%s215 + $0xb4] sm:$0xf]
      %v402 = vld [vmem:[%s215 + $0xb8] sm:$0xf]
      %v403 = vld [vmem:[%s215 + $0xbc] sm:$0xf]
      %v404 = vld [vmem:[%s215 + $0xc0] sm:$0xf]
      %v405 = vld [vmem:[%s215 + $0xc4] sm:$0xf]
      %v406 = vld [vmem:[%s215 + $0xc8] sm:$0xf]
      %v407 = vld [vmem:[%s215 + $0xcc] sm:$0xf]
      %v408 = vld [vmem:[%s215 + $0xd0] sm:$0xf]
      %v409 = vld [vmem:[%s215 + $0xd4] sm:$0xf]
      %v410 = vld [vmem:[%s215 + $0xd8] sm:$0xf]
      %v411 = vld [vmem:[%s215 + $0xdc] sm:$0xf]
      %v412 = vld [vmem:[%s215 + $0xe0] sm:$0xf]
      %v413 = vld [vmem:[%s215 + $0xe4] sm:$0xf]
      %v414 = vld [vmem:[%s215 + $0xe8] sm:$0xf]
      %v415 = vld [vmem:[%s215 + $0xec] sm:$0xf]
      %v416 = vld [vmem:[%s215 + $0xf0] sm:$0xf]
      %v417 = vld [vmem:[%s215 + $0xf4] sm:$0xf]
      %v418 = vld [vmem:[%s215 + $0xf8] sm:$0xf]
      %v419 = vld [vmem:[%s215 + $0xfc] sm:$0xf]
      %v420 = vld [vmem:[%s218] sm:$0x1]
      %v422 = vperm.slane %v420, 0
      %v552 = vunpack.c.l.b16 %v228
      %v553 = vunpack.c.h.b16 %v228
      %v554 = vunpack.c.l.b16 %v229
      %v555 = vunpack.c.h.b16 %v229
      %v556 = vunpack.c.l.b16 %v230
      %v557 = vunpack.c.h.b16 %v230
      %v558 = vunpack.c.l.b16 %v231
      %v559 = vunpack.c.h.b16 %v231
      %v560 = vunpack.c.l.b16 %v232
      %v561 = vunpack.c.h.b16 %v232
      %v562 = vunpack.c.l.b16 %v233
      %v563 = vunpack.c.h.b16 %v233
      %v564 = vunpack.c.l.b16 %v234
      %v565 = vunpack.c.h.b16 %v234
      %v566 = vunpack.c.l.b16 %v235
      %v567 = vunpack.c.h.b16 %v235
      %v568 = vunpack.c.l.b16 %v236
      %v569 = vunpack.c.h.b16 %v236
      %v570 = vunpack.c.l.b16 %v237
      %v571 = vunpack.c.h.b16 %v237
      %v572 = vunpack.c.l.b16 %v238
      %v573 = vunpack.c.h.b16 %v238
      %v574 = vunpack.c.l.b16 %v239
      %v575 = vunpack.c.h.b16 %v239
      %v576 = vunpack.c.l.b16 %v240
      %v577 = vunpack.c.h.b16 %v240
      %v578 = vunpack.c.l.b16 %v241
      %v579 = vunpack.c.h.b16 %v241
      %v580 = vunpack.c.l.b16 %v242
      %v581 = vunpack.c.h.b16 %v242
      %v582 = vunpack.c.l.b16 %v243
      %v583 = vunpack.c.h.b16 %v243
      %v584 = vunpack.c.l.b16 %v244
      %v585 = vunpack.c.h.b16 %v244
      %v586 = vunpack.c.l.b16 %v245
      %v587 = vunpack.c.h.b16 %v245
      %v588 = vunpack.c.l.b16 %v246
      %v589 = vunpack.c.h.b16 %v246
      %v590 = vunpack.c.l.b16 %v247
      %v591 = vunpack.c.h.b16 %v247
      %v592 = vunpack.c.l.b16 %v248
      %v593 = vunpack.c.h.b16 %v248
      %v594 = vunpack.c.l.b16 %v249
      %v595 = vunpack.c.h.b16 %v249
      %v596 = vunpack.c.l.b16 %v250
      %v597 = vunpack.c.h.b16 %v250
      %v598 = vunpack.c.l.b16 %v251
      %v599 = vunpack.c.h.b16 %v251
      %v600 = vunpack.c.l.b16 %v252
      %v601 = vunpack.c.h.b16 %v252
      %v602 = vunpack.c.l.b16 %v253
      %v603 = vunpack.c.h.b16 %v253
      %v604 = vunpack.c.l.b16 %v254
      %v605 = vunpack.c.h.b16 %v254
      %v606 = vunpack.c.l.b16 %v255
      %v607 = vunpack.c.h.b16 %v255
      %v608 = vunpack.c.l.b16 %v256
      %v609 = vunpack.c.h.b16 %v256
      %v610 = vunpack.c.l.b16 %v257
      %v611 = vunpack.c.h.b16 %v257
      %v612 = vunpack.c.l.b16 %v258
      %v613 = vunpack.c.h.b16 %v258
      %v614 = vunpack.c.l.b16 %v259
      %v615 = vunpack.c.h.b16 %v259
      %v616 = vunpack.c.l.b16 %v260
      %v617 = vunpack.c.h.b16 %v260
      %v618 = vunpack.c.l.b16 %v261
      %v619 = vunpack.c.h.b16 %v261
      %v620 = vunpack.c.l.b16 %v262
      %v621 = vunpack.c.h.b16 %v262
      %v622 = vunpack.c.l.b16 %v263
      %v623 = vunpack.c.h.b16 %v263
      %v624 = vunpack.c.l.b16 %v264
      %v625 = vunpack.c.h.b16 %v264
      %v626 = vunpack.c.l.b16 %v265
      %v627 = vunpack.c.h.b16 %v265
      %v628 = vunpack.c.l.b16 %v266
      %v629 = vunpack.c.h.b16 %v266
      %v630 = vunpack.c.l.b16 %v267
      %v631 = vunpack.c.h.b16 %v267
      %v632 = vunpack.c.l.b16 %v268
      %v633 = vunpack.c.h.b16 %v268
      %v634 = vunpack.c.l.b16 %v269
      %v635 = vunpack.c.h.b16 %v269
      %v636 = vunpack.c.l.b16 %v270
      %v637 = vunpack.c.h.b16 %v270
      %v638 = vunpack.c.l.b16 %v271
      %v639 = vunpack.c.h.b16 %v271
      %v640 = vunpack.c.l.b16 %v272
      %v641 = vunpack.c.h.b16 %v272
      %v642 = vunpack.c.l.b16 %v273
      %v643 = vunpack.c.h.b16 %v273
      %v644 = vunpack.c.l.b16 %v274
      %v645 = vunpack.c.h.b16 %v274
      %v646 = vunpack.c.l.b16 %v275
      %v647 = vunpack.c.h.b16 %v275
      %v648 = vunpack.c.l.b16 %v276
      %v649 = vunpack.c.h.b16 %v276
      %v650 = vunpack.c.l.b16 %v277
      %v651 = vunpack.c.h.b16 %v277
      %v652 = vunpack.c.l.b16 %v278
      %v653 = vunpack.c.h.b16 %v278
      %v654 = vunpack.c.l.b16 %v279
      %v655 = vunpack.c.h.b16 %v279
      %v656 = vunpack.c.l.b16 %v280
      %v657 = vunpack.c.h.b16 %v280
      %v658 = vunpack.c.l.b16 %v281
      %v659 = vunpack.c.h.b16 %v281
      %v660 = vunpack.c.l.b16 %v282
      %v661 = vunpack.c.h.b16 %v282
      %v662 = vunpack.c.l.b16 %v283
      %v663 = vunpack.c.h.b16 %v283
      %v664 = vunpack.c.l.b16 %v284
      %v665 = vunpack.c.h.b16 %v284
      %v666 = vunpack.c.l.b16 %v285
      %v667 = vunpack.c.h.b16 %v285
      %v668 = vunpack.c.l.b16 %v286
      %v669 = vunpack.c.h.b16 %v286
      %v670 = vunpack.c.l.b16 %v287
      %v671 = vunpack.c.h.b16 %v287
      %v672 = vunpack.c.l.b16 %v288
      %v673 = vunpack.c.h.b16 %v288
      %v674 = vunpack.c.l.b16 %v289
      %v675 = vunpack.c.h.b16 %v289
      %v676 = vunpack.c.l.b16 %v290
      %v677 = vunpack.c.h.b16 %v290
      %v678 = vunpack.c.l.b16 %v291
      %v679 = vunpack.c.h.b16 %v291
      %v680 = vunpack.c.l.b16 %v292
      %v681 = vunpack.c.h.b16 %v292
      %v682 = vunpack.c.l.b16 %v293
      %v683 = vunpack.c.h.b16 %v293
      %v684 = vunpack.c.l.b16 %v294
      %v685 = vunpack.c.h.b16 %v294
      %v686 = vunpack.c.l.b16 %v295
      %v687 = vunpack.c.h.b16 %v295
      %v688 = vunpack.c.l.b16 %v296
      %v689 = vunpack.c.h.b16 %v296
      %v690 = vunpack.c.l.b16 %v297
      %v691 = vunpack.c.h.b16 %v297
      %v692 = vunpack.c.l.b16 %v298
      %v693 = vunpack.c.h.b16 %v298
      %v694 = vunpack.c.l.b16 %v299
      %v695 = vunpack.c.h.b16 %v299
      %v696 = vunpack.c.l.b16 %v300
      %v697 = vunpack.c.h.b16 %v300
      %v698 = vunpack.c.l.b16 %v301
      %v699 = vunpack.c.h.b16 %v301
      %v700 = vunpack.c.l.b16 %v302
      %v701 = vunpack.c.h.b16 %v302
      %v702 = vunpack.c.l.b16 %v303
      %v703 = vunpack.c.h.b16 %v303
      %v704 = vunpack.c.l.b16 %v304
      %v705 = vunpack.c.h.b16 %v304
      %v706 = vunpack.c.l.b16 %v305
      %v707 = vunpack.c.h.b16 %v305
      %v708 = vunpack.c.l.b16 %v306
      %v709 = vunpack.c.h.b16 %v306
      %v710 = vunpack.c.l.b16 %v307
      %v711 = vunpack.c.h.b16 %v307
      %v712 = vunpack.c.l.b16 %v308
      %v713 = vunpack.c.h.b16 %v308
      %v714 = vunpack.c.l.b16 %v309
      %v715 = vunpack.c.h.b16 %v309
      %v716 = vunpack.c.l.b16 %v310
      %v717 = vunpack.c.h.b16 %v310
      %v718 = vunpack.c.l.b16 %v311
      %v719 = vunpack.c.h.b16 %v311
      %v720 = vunpack.c.l.b16 %v312
      %v721 = vunpack.c.h.b16 %v312
      %v722 = vunpack.c.l.b16 %v313
      %v723 = vunpack.c.h.b16 %v313
      %v724 = vunpack.c.l.b16 %v314
      %v725 = vunpack.c.h.b16 %v314
      %v726 = vunpack.c.l.b16 %v315
      %v727 = vunpack.c.h.b16 %v315
      %v728 = vunpack.c.l.b16 %v316
      %v729 = vunpack.c.h.b16 %v316
      %v730 = vunpack.c.l.b16 %v317
      %v731 = vunpack.c.h.b16 %v317
      %v732 = vunpack.c.l.b16 %v318
      %v733 = vunpack.c.h.b16 %v318
      %v734 = vunpack.c.l.b16 %v319
      %v735 = vunpack.c.h.b16 %v319
      %v736 = vunpack.c.l.b16 %v320
      %v737 = vunpack.c.h.b16 %v320
      %v738 = vunpack.c.l.b16 %v321
      %v739 = vunpack.c.h.b16 %v321
      %v740 = vunpack.c.l.b16 %v322
      %v741 = vunpack.c.h.b16 %v322
      %v742 = vunpack.c.l.b16 %v323
      %v743 = vunpack.c.h.b16 %v323
      %v744 = vunpack.c.l.b16 %v324
      %v745 = vunpack.c.h.b16 %v324
      %v746 = vunpack.c.l.b16 %v325
      %v747 = vunpack.c.h.b16 %v325
      %v748 = vunpack.c.l.b16 %v326
      %v749 = vunpack.c.h.b16 %v326
      %v750 = vunpack.c.l.b16 %v327
      %v751 = vunpack.c.h.b16 %v327
      %v752 = vunpack.c.l.b16 %v328
      %v753 = vunpack.c.h.b16 %v328
      %v754 = vunpack.c.l.b16 %v329
      %v755 = vunpack.c.h.b16 %v329
      %v756 = vunpack.c.l.b16 %v330
      %v757 = vunpack.c.h.b16 %v330
      %v758 = vunpack.c.l.b16 %v331
      %v759 = vunpack.c.h.b16 %v331
      %v760 = vunpack.c.l.b16 %v332
      %v761 = vunpack.c.h.b16 %v332
      %v762 = vunpack.c.l.b16 %v333
      %v763 = vunpack.c.h.b16 %v333
      %v764 = vunpack.c.l.b16 %v334
      %v765 = vunpack.c.h.b16 %v334
      %v766 = vunpack.c.l.b16 %v335
      %v767 = vunpack.c.h.b16 %v335
      %v768 = vunpack.c.l.b16 %v336
      %v769 = vunpack.c.h.b16 %v336
      %v770 = vunpack.c.l.b16 %v337
      %v771 = vunpack.c.h.b16 %v337
      %v772 = vunpack.c.l.b16 %v338
      %v773 = vunpack.c.h.b16 %v338
      %v774 = vunpack.c.l.b16 %v339
      %v775 = vunpack.c.h.b16 %v339
      %v776 = vunpack.c.l.b16 %v340
      %v777 = vunpack.c.h.b16 %v340
      %v778 = vunpack.c.l.b16 %v341
      %v779 = vunpack.c.h.b16 %v341
      %v780 = vunpack.c.l.b16 %v342
      %v781 = vunpack.c.h.b16 %v342
      %v782 = vunpack.c.l.b16 %v343
      %v783 = vunpack.c.h.b16 %v343
      %v784 = vunpack.c.l.b16 %v344
      %v785 = vunpack.c.h.b16 %v344
      %v786 = vunpack.c.l.b16 %v345
      %v787 = vunpack.c.h.b16 %v345
      %v788 = vunpack.c.l.b16 %v346
      %v789 = vunpack.c.h.b16 %v346
      %v790 = vunpack.c.l.b16 %v347
      %v791 = vunpack.c.h.b16 %v347
      %v792 = vunpack.c.l.b16 %v348
      %v793 = vunpack.c.h.b16 %v348
      %v794 = vunpack.c.l.b16 %v349
      %v795 = vunpack.c.h.b16 %v349
      %v796 = vunpack.c.l.b16 %v350
      %v797 = vunpack.c.h.b16 %v350
      %v798 = vunpack.c.l.b16 %v351
      %v799 = vunpack.c.h.b16 %v351
      %v800 = vunpack.c.l.b16 %v352
      %v801 = vunpack.c.h.b16 %v352
      %v802 = vunpack.c.l.b16 %v353
      %v803 = vunpack.c.h.b16 %v353
      %v804 = vunpack.c.l.b16 %v354
      %v805 = vunpack.c.h.b16 %v354
      %v806 = vunpack.c.l.b16 %v355
      %v807 = vunpack.c.h.b16 %v355
      %v808 = vpack.c.b16 %v556, %v552
      %v809 = vpack.c.b16 %v557, %v553
      %v810 = vpack.c.b16 %v558, %v554
      %v811 = vpack.c.b16 %v559, %v555
      %v812 = vpack.c.b16 %v564, %v560
      %v813 = vpack.c.b16 %v565, %v561
      %v814 = vpack.c.b16 %v566, %v562
      %v815 = vpack.c.b16 %v567, %v563
      %v816 = vpack.c.b16 %v572, %v568
      %v817 = vpack.c.b16 %v573, %v569
      %v818 = vpack.c.b16 %v574, %v570
      %v819 = vpack.c.b16 %v575, %v571
      %v820 = vpack.c.b16 %v580, %v576
      %v821 = vpack.c.b16 %v581, %v577
      %v822 = vpack.c.b16 %v582, %v578
      %v823 = vpack.c.b16 %v583, %v579
      %v824 = vpack.c.b16 %v588, %v584
      %v825 = vpack.c.b16 %v589, %v585
      %v826 = vpack.c.b16 %v590, %v586
      %v827 = vpack.c.b16 %v591, %v587
      %v828 = vpack.c.b16 %v596, %v592
      %v829 = vpack.c.b16 %v597, %v593
      %v830 = vpack.c.b16 %v598, %v594
      %v831 = vpack.c.b16 %v599, %v595
      %v832 = vpack.c.b16 %v604, %v600
      %v833 = vpack.c.b16 %v605, %v601
      %v834 = vpack.c.b16 %v606, %v602
      %v835 = vpack.c.b16 %v607, %v603
      %v836 = vpack.c.b16 %v612, %v608
      %v837 = vpack.c.b16 %v613, %v609
      %v838 = vpack.c.b16 %v614, %v610
      %v839 = vpack.c.b16 %v615, %v611
      %v840 = vpack.c.b16 %v620, %v616
      %v841 = vpack.c.b16 %v621, %v617
      %v842 = vpack.c.b16 %v622, %v618
      %v843 = vpack.c.b16 %v623, %v619
      %v844 = vpack.c.b16 %v628, %v624
      %v845 = vpack.c.b16 %v629, %v625
      %v846 = vpack.c.b16 %v630, %v626
      %v847 = vpack.c.b16 %v631, %v627
      %v848 = vpack.c.b16 %v636, %v632
      %v849 = vpack.c.b16 %v637, %v633
      %v850 = vpack.c.b16 %v638, %v634
      %v851 = vpack.c.b16 %v639, %v635
      %v852 = vpack.c.b16 %v644, %v640
      %v853 = vpack.c.b16 %v645, %v641
      %v854 = vpack.c.b16 %v646, %v642
      %v855 = vpack.c.b16 %v647, %v643
      %v856 = vpack.c.b16 %v652, %v648
      %v857 = vpack.c.b16 %v653, %v649
      %v858 = vpack.c.b16 %v654, %v650
      %v859 = vpack.c.b16 %v655, %v651
      %v860 = vpack.c.b16 %v660, %v656
      %v861 = vpack.c.b16 %v661, %v657
      %v862 = vpack.c.b16 %v662, %v658
      %v863 = vpack.c.b16 %v663, %v659
      %v864 = vpack.c.b16 %v668, %v664
      %v865 = vpack.c.b16 %v669, %v665
      %v866 = vpack.c.b16 %v670, %v666
      %v867 = vpack.c.b16 %v671, %v667
      %v868 = vpack.c.b16 %v676, %v672
      %v869 = vpack.c.b16 %v677, %v673
      %v870 = vpack.c.b16 %v678, %v674
      %v871 = vpack.c.b16 %v679, %v675
      %v872 = vpack.c.b16 %v684, %v680
      %v873 = vpack.c.b16 %v685, %v681
      %v874 = vpack.c.b16 %v686, %v682
      %v875 = vpack.c.b16 %v687, %v683
      %v876 = vpack.c.b16 %v692, %v688
      %v877 = vpack.c.b16 %v693, %v689
      %v878 = vpack.c.b16 %v694, %v690
      %v879 = vpack.c.b16 %v695, %v691
      %v880 = vpack.c.b16 %v700, %v696
      %v881 = vpack.c.b16 %v701, %v697
      %v882 = vpack.c.b16 %v702, %v698
      %v883 = vpack.c.b16 %v703, %v699
      %v884 = vpack.c.b16 %v708, %v704
      %v885 = vpack.c.b16 %v709, %v705
      %v886 = vpack.c.b16 %v710, %v706
      %v887 = vpack.c.b16 %v711, %v707
      %v888 = vpack.c.b16 %v716, %v712
      %v889 = vpack.c.b16 %v717, %v713
      %v890 = vpack.c.b16 %v718, %v714
      %v891 = vpack.c.b16 %v719, %v715
      %v892 = vpack.c.b16 %v724, %v720
      %v893 = vpack.c.b16 %v725, %v721
      %v894 = vpack.c.b16 %v726, %v722
      %v895 = vpack.c.b16 %v727, %v723
      %v896 = vpack.c.b16 %v732, %v728
      %v897 = vpack.c.b16 %v733, %v729
      %v898 = vpack.c.b16 %v734, %v730
      %v899 = vpack.c.b16 %v735, %v731
      %v900 = vpack.c.b16 %v740, %v736
      %v901 = vpack.c.b16 %v741, %v737
      %v902 = vpack.c.b16 %v742, %v738
      %v903 = vpack.c.b16 %v743, %v739
      %v904 = vpack.c.b16 %v748, %v744
      %v905 = vpack.c.b16 %v749, %v745
      %v906 = vpack.c.b16 %v750, %v746
      %v907 = vpack.c.b16 %v751, %v747
      %v908 = vpack.c.b16 %v756, %v752
      %v909 = vpack.c.b16 %v757, %v753
      %v910 = vpack.c.b16 %v758, %v754
      %v911 = vpack.c.b16 %v759, %v755
      %v912 = vpack.c.b16 %v764, %v760
      %v913 = vpack.c.b16 %v765, %v761
      %v914 = vpack.c.b16 %v766, %v762
      %v915 = vpack.c.b16 %v767, %v763
      %v916 = vpack.c.b16 %v772, %v768
      %v917 = vpack.c.b16 %v773, %v769
      %v918 = vpack.c.b16 %v774, %v770
      %v919 = vpack.c.b16 %v775, %v771
      %v920 = vpack.c.b16 %v780, %v776
      %v921 = vpack.c.b16 %v781, %v777
      %v922 = vpack.c.b16 %v782, %v778
      %v923 = vpack.c.b16 %v783, %v779
      %v924 = vpack.c.b16 %v788, %v784
      %v925 = vpack.c.b16 %v789, %v785
      %v926 = vpack.c.b16 %v790, %v786
      %v927 = vpack.c.b16 %v791, %v787
      %v928 = vpack.c.b16 %v796, %v792
      %v929 = vpack.c.b16 %v797, %v793
      %v930 = vpack.c.b16 %v798, %v794
      %v931 = vpack.c.b16 %v799, %v795
      %v932 = vpack.c.b16 %v804, %v800
      %v933 = vpack.c.b16 %v805, %v801
      %v934 = vpack.c.b16 %v806, %v802
      %v935 = vpack.c.b16 %v807, %v803
      %v1128 = vunpack.c.l.b16 %v356
      %v1129 = vunpack.c.l.b16 %v357
      %v1130 = vunpack.c.l.b16 %v358
      %v1131 = vunpack.c.l.b16 %v359
      %v1132 = vunpack.c.l.b16 %v360
      %v1133 = vunpack.c.l.b16 %v361
      %v1134 = vunpack.c.l.b16 %v362
      %v1135 = vunpack.c.l.b16 %v363
      %v1136 = vunpack.c.l.b16 %v364
      %v1137 = vunpack.c.l.b16 %v365
      %v1138 = vunpack.c.l.b16 %v366
      %v1139 = vunpack.c.l.b16 %v367
      %v1140 = vunpack.c.l.b16 %v368
      %v1141 = vunpack.c.l.b16 %v369
      %v1142 = vunpack.c.l.b16 %v370
      %v1143 = vunpack.c.l.b16 %v371
      %v1144 = vunpack.c.l.b16 %v372
      %v1145 = vunpack.c.l.b16 %v373
      %v1146 = vunpack.c.l.b16 %v374
      %v1147 = vunpack.c.l.b16 %v375
      %v1148 = vunpack.c.l.b16 %v376
      %v1149 = vunpack.c.l.b16 %v377
      %v1150 = vunpack.c.l.b16 %v378
      %v1151 = vunpack.c.l.b16 %v379
      %v1152 = vunpack.c.l.b16 %v380
      %v1153 = vunpack.c.l.b16 %v381
      %v1154 = vunpack.c.l.b16 %v382
      %v1155 = vunpack.c.l.b16 %v383
      %v1156 = vunpack.c.l.b16 %v384
      %v1157 = vunpack.c.l.b16 %v385
      %v1158 = vunpack.c.l.b16 %v386
      %v1159 = vunpack.c.l.b16 %v387
      %v1160 = vunpack.c.l.b16 %v388
      %v1161 = vunpack.c.l.b16 %v389
      %v1162 = vunpack.c.l.b16 %v390
      %v1163 = vunpack.c.l.b16 %v391
      %v1164 = vunpack.c.l.b16 %v392
      %v1165 = vunpack.c.l.b16 %v393
      %v1166 = vunpack.c.l.b16 %v394
      %v1167 = vunpack.c.l.b16 %v395
      %v1168 = vunpack.c.l.b16 %v396
      %v1169 = vunpack.c.l.b16 %v397
      %v1170 = vunpack.c.l.b16 %v398
      %v1171 = vunpack.c.l.b16 %v399
      %v1172 = vunpack.c.l.b16 %v400
      %v1173 = vunpack.c.l.b16 %v401
      %v1174 = vunpack.c.l.b16 %v402
      %v1175 = vunpack.c.l.b16 %v403
      %v1176 = vunpack.c.l.b16 %v404
      %v1177 = vunpack.c.l.b16 %v405
      %v1178 = vunpack.c.l.b16 %v406
      %v1179 = vunpack.c.l.b16 %v407
      %v1180 = vunpack.c.l.b16 %v408
      %v1181 = vunpack.c.l.b16 %v409
      %v1182 = vunpack.c.l.b16 %v410
      %v1183 = vunpack.c.l.b16 %v411
      %v1184 = vunpack.c.l.b16 %v412
      %v1185 = vunpack.c.l.b16 %v413
      %v1186 = vunpack.c.l.b16 %v414
      %v1187 = vunpack.c.l.b16 %v415
      %v1188 = vunpack.c.l.b16 %v416
      %v1189 = vunpack.c.l.b16 %v417
      %v1190 = vunpack.c.l.b16 %v418
      %v1191 = vunpack.c.l.b16 %v419
      %v1192 = vpack.c.b16 %v1129, %v1128
      %v1193 = vpack.c.b16 %v1131, %v1130
      %v1194 = vpack.c.b16 %v1133, %v1132
      %v1195 = vpack.c.b16 %v1135, %v1134
      %v1196 = vpack.c.b16 %v1137, %v1136
      %v1197 = vpack.c.b16 %v1139, %v1138
      %v1198 = vpack.c.b16 %v1141, %v1140
      %v1199 = vpack.c.b16 %v1143, %v1142
      %v1200 = vpack.c.b16 %v1145, %v1144
      %v1201 = vpack.c.b16 %v1147, %v1146
      %v1202 = vpack.c.b16 %v1149, %v1148
      %v1203 = vpack.c.b16 %v1151, %v1150
      %v1204 = vpack.c.b16 %v1153, %v1152
      %v1205 = vpack.c.b16 %v1155, %v1154
      %v1206 = vpack.c.b16 %v1157, %v1156
      %v1207 = vpack.c.b16 %v1159, %v1158
      %v1208 = vpack.c.b16 %v1161, %v1160
      %v1209 = vpack.c.b16 %v1163, %v1162
      %v1210 = vpack.c.b16 %v1165, %v1164
      %v1211 = vpack.c.b16 %v1167, %v1166
      %v1212 = vpack.c.b16 %v1169, %v1168
      %v1213 = vpack.c.b16 %v1171, %v1170
      %v1214 = vpack.c.b16 %v1173, %v1172
      %v1215 = vpack.c.b16 %v1175, %v1174
      %v1216 = vpack.c.b16 %v1177, %v1176
      %v1217 = vpack.c.b16 %v1179, %v1178
      %v1218 = vpack.c.b16 %v1181, %v1180
      %v1219 = vpack.c.b16 %v1183, %v1182
      %v1220 = vpack.c.b16 %v1185, %v1184
      %v1221 = vpack.c.b16 %v1187, %v1186
      %v1222 = vpack.c.b16 %v1189, %v1188
      %v1223 = vpack.c.b16 %v1191, %v1190
      %1256 = vmatpush.bf16.msra.mxu0 %v1199
      %1257 = vmatpush.bf16.msra.mxu0 %v1198
      %1258 = vmatpush.bf16.msra.mxu0 %v1197
      %1259 = vmatpush.bf16.msra.mxu0 %v1196
      %1260 = vmatpush.bf16.msra.mxu0 %v1195
      %1261 = vmatpush.bf16.msra.mxu0 %v1194
      %1262 = vmatpush.bf16.msra.mxu0 %v1193
      %1263 = vmatpush.bf16.msra.mxu0 %v1192
      %1264 = vmatmul.bf16.gmra.mxu0 %v808
      %v1265 = vpop.f32.mrf.mxu0
      %v1266 = vadd.f32 %v422, %v1265
      %v1267 = vpop.f32.mrf.mxu0
      %v1268 = vadd.f32 %v422, %v1267
      %1269 = vmatmul.bf16.gmra.mxu0 %v812
      %v1270 = vpop.f32.mrf.mxu0
      %v1271 = vadd.f32 %v422, %v1270
      %v1272 = vpop.f32.mrf.mxu0
      %v1273 = vadd.f32 %v422, %v1272
      %1274 = vmatmul.bf16.gmra.mxu0 %v816
      %v1275 = vpop.f32.mrf.mxu0
      %v1276 = vadd.f32 %v422, %v1275
      %v1277 = vpop.f32.mrf.mxu0
      %v1278 = vadd.f32 %v422, %v1277
      %1279 = vmatmul.bf16.gmra.mxu0 %v820
      %v1280 = vpop.f32.mrf.mxu0
      %v1281 = vadd.f32 %v422, %v1280
      %v1282 = vpop.f32.mrf.mxu0
      %v1283 = vadd.f32 %v422, %v1282
      %1284 = vmatmul.bf16.gmra.mxu0 %v824
      %v1285 = vpop.f32.mrf.mxu0
      %v1286 = vadd.f32 %v422, %v1285
      %v1287 = vpop.f32.mrf.mxu0
      %v1288 = vadd.f32 %v422, %v1287
      %1289 = vmatmul.bf16.gmra.mxu0 %v828
      %v1290 = vpop.f32.mrf.mxu0
      %v1291 = vadd.f32 %v422, %v1290
      %v1292 = vpop.f32.mrf.mxu0
      %v1293 = vadd.f32 %v422, %v1292
      %1294 = vmatmul.bf16.gmra.mxu0 %v832
      %v1295 = vpop.f32.mrf.mxu0
      %v1296 = vadd.f32 %v422, %v1295
      %v1297 = vpop.f32.mrf.mxu0
      %v1298 = vadd.f32 %v422, %v1297
      %1299 = vmatmul.bf16.gmra.mxu0 %v836
      %v1300 = vpop.f32.mrf.mxu0
      %v1301 = vadd.f32 %v422, %v1300
      %v1302 = vpop.f32.mrf.mxu0
      %v1303 = vadd.f32 %v422, %v1302
      %1304 = vmatmul.bf16.gmra.mxu0 %v840
      %v1305 = vpop.f32.mrf.mxu0
      %v1306 = vadd.f32 %v422, %v1305
      %v1307 = vpop.f32.mrf.mxu0
      %v1308 = vadd.f32 %v422, %v1307
      %1309 = vmatmul.bf16.gmra.mxu0 %v844
      %v1310 = vpop.f32.mrf.mxu0
      %v1311 = vadd.f32 %v422, %v1310
      %v1312 = vpop.f32.mrf.mxu0
      %v1313 = vadd.f32 %v422, %v1312
      %1314 = vmatmul.bf16.gmra.mxu0 %v848
      %v1315 = vpop.f32.mrf.mxu0
      %v1316 = vadd.f32 %v422, %v1315
      %v1317 = vpop.f32.mrf.mxu0
      %v1318 = vadd.f32 %v422, %v1317
      %1319 = vmatmul.bf16.gmra.mxu0 %v852
      %v1320 = vpop.f32.mrf.mxu0
      %v1321 = vadd.f32 %v422, %v1320
      %v1322 = vpop.f32.mrf.mxu0
      %v1323 = vadd.f32 %v422, %v1322
      %1324 = vmatmul.bf16.gmra.mxu0 %v856
      %v1325 = vpop.f32.mrf.mxu0
      %v1326 = vadd.f32 %v422, %v1325
      %v1327 = vpop.f32.mrf.mxu0
      %v1328 = vadd.f32 %v422, %v1327
      %1329 = vmatmul.bf16.gmra.mxu0 %v860
      %v1330 = vpop.f32.mrf.mxu0
      %v1331 = vadd.f32 %v422, %v1330
      %v1332 = vpop.f32.mrf.mxu0
      %v1333 = vadd.f32 %v422, %v1332
      %1334 = vmatmul.bf16.gmra.mxu0 %v864
      %v1335 = vpop.f32.mrf.mxu0
      %v1336 = vadd.f32 %v422, %v1335
      %v1337 = vpop.f32.mrf.mxu0
      %v1338 = vadd.f32 %v422, %v1337
      %1339 = vmatmul.bf16.gmra.mxu0 %v868
      %v1340 = vpop.f32.mrf.mxu0
      %v1341 = vadd.f32 %v422, %v1340
      %v1342 = vpop.f32.mrf.mxu0
      %v1343 = vadd.f32 %v422, %v1342
      %1344 = vmatmul.bf16.gmra.mxu0 %v872
      %v1345 = vpop.f32.mrf.mxu0
      %v1346 = vadd.f32 %v422, %v1345
      %v1347 = vpop.f32.mrf.mxu0
      %v1348 = vadd.f32 %v422, %v1347
      %1349 = vmatmul.bf16.gmra.mxu0 %v876
      %v1350 = vpop.f32.mrf.mxu0
      %v1351 = vadd.f32 %v422, %v1350
      %v1352 = vpop.f32.mrf.mxu0
      %v1353 = vadd.f32 %v422, %v1352
      %1354 = vmatmul.bf16.gmra.mxu0 %v880
      %v1355 = vpop.f32.mrf.mxu0
      %v1356 = vadd.f32 %v422, %v1355
      %v1357 = vpop.f32.mrf.mxu0
      %v1358 = vadd.f32 %v422, %v1357
      %1359 = vmatmul.bf16.gmra.mxu0 %v884
      %v1360 = vpop.f32.mrf.mxu0
      %v1361 = vadd.f32 %v422, %v1360
      %v1362 = vpop.f32.mrf.mxu0
      %v1363 = vadd.f32 %v422, %v1362
      %1364 = vmatmul.bf16.gmra.mxu0 %v888
      %v1365 = vpop.f32.mrf.mxu0
      %v1366 = vadd.f32 %v422, %v1365
      %v1367 = vpop.f32.mrf.mxu0
      %v1368 = vadd.f32 %v422, %v1367
      %1369 = vmatmul.bf16.gmra.mxu0 %v892
      %v1370 = vpop.f32.mrf.mxu0
      %v1371 = vadd.f32 %v422, %v1370
      %v1372 = vpop.f32.mrf.mxu0
      %v1373 = vadd.f32 %v422, %v1372
      %1374 = vmatmul.bf16.gmra.mxu0 %v896
      %v1375 = vpop.f32.mrf.mxu0
      %v1376 = vadd.f32 %v422, %v1375
      %v1377 = vpop.f32.mrf.mxu0
      %v1378 = vadd.f32 %v422, %v1377
      %1379 = vmatmul.bf16.gmra.mxu0 %v900
      %v1380 = vpop.f32.mrf.mxu0
      %v1381 = vadd.f32 %v422, %v1380
      %v1382 = vpop.f32.mrf.mxu0
      %v1383 = vadd.f32 %v422, %v1382
      %1384 = vmatmul.bf16.gmra.mxu0 %v904
      %v1385 = vpop.f32.mrf.mxu0
      %v1386 = vadd.f32 %v422, %v1385
      %v1387 = vpop.f32.mrf.mxu0
      %v1388 = vadd.f32 %v422, %v1387
      %1389 = vmatmul.bf16.gmra.mxu0 %v908
      %v1390 = vpop.f32.mrf.mxu0
      %v1391 = vadd.f32 %v422, %v1390
      %v1392 = vpop.f32.mrf.mxu0
      %v1393 = vadd.f32 %v422, %v1392
      %1394 = vmatmul.bf16.gmra.mxu0 %v912
      %v1395 = vpop.f32.mrf.mxu0
      %v1396 = vadd.f32 %v422, %v1395
      %v1397 = vpop.f32.mrf.mxu0
      %v1398 = vadd.f32 %v422, %v1397
      %1399 = vmatmul.bf16.gmra.mxu0 %v916
      %v1400 = vpop.f32.mrf.mxu0
      %v1401 = vadd.f32 %v422, %v1400
      %v1402 = vpop.f32.mrf.mxu0
      %v1403 = vadd.f32 %v422, %v1402
      %1404 = vmatmul.bf16.gmra.mxu0 %v920
      %v1405 = vpop.f32.mrf.mxu0
      %v1406 = vadd.f32 %v422, %v1405
      %v1407 = vpop.f32.mrf.mxu0
      %v1408 = vadd.f32 %v422, %v1407
      %1409 = vmatmul.bf16.gmra.mxu0 %v924
      %v1410 = vpop.f32.mrf.mxu0
      %v1411 = vadd.f32 %v422, %v1410
      %v1412 = vpop.f32.mrf.mxu0
      %v1413 = vadd.f32 %v422, %v1412
      %1414 = vmatmul.bf16.gmra.mxu0 %v928
      %v1415 = vpop.f32.mrf.mxu0
      %v1416 = vadd.f32 %v422, %v1415
      %v1417 = vpop.f32.mrf.mxu0
      %v1418 = vadd.f32 %v422, %v1417
      %1419 = vmatmul.bf16.gmra.mxu0 %v932
      %v1420 = vpop.f32.mrf.mxu0
      %v1421 = vadd.f32 %v422, %v1420
      %v1422 = vpop.f32.mrf.mxu0
      %v1423 = vadd.f32 %v422, %v1422
      %1424 = vdwg.mxu0
      %1425 = vmatpush.bf16.msra.mxu0 %v1207
      %1426 = vmatpush.bf16.msra.mxu0 %v1206
      %1427 = vmatpush.bf16.msra.mxu0 %v1205
      %1428 = vmatpush.bf16.msra.mxu0 %v1204
      %1429 = vmatpush.bf16.msra.mxu0 %v1203
      %1430 = vmatpush.bf16.msra.mxu0 %v1202
      %1431 = vmatpush.bf16.msra.mxu0 %v1201
      %1432 = vmatpush.bf16.msra.mxu0 %v1200
      %1433 = vmatmul.bf16.gmra.mxu0 %v809
      %v1434 = vpop.f32.mrf.mxu0
      %v1435 = vadd.f32 %v1266, %v1434
      %v1436 = vpop.f32.mrf.mxu0
      %v1437 = vadd.f32 %v1268, %v1436
      %1438 = vmatmul.bf16.gmra.mxu0 %v813
      %v1439 = vpop.f32.mrf.mxu0
      %v1440 = vadd.f32 %v1271, %v1439
      %v1441 = vpop.f32.mrf.mxu0
      %v1442 = vadd.f32 %v1273, %v1441
      %1443 = vmatmul.bf16.gmra.mxu0 %v817
      %v1444 = vpop.f32.mrf.mxu0
      %v1445 = vadd.f32 %v1276, %v1444
      %v1446 = vpop.f32.mrf.mxu0
      %v1447 = vadd.f32 %v1278, %v1446
      %1448 = vmatmul.bf16.gmra.mxu0 %v821
      %v1449 = vpop.f32.mrf.mxu0
      %v1450 = vadd.f32 %v1281, %v1449
      %v1451 = vpop.f32.mrf.mxu0
      %v1452 = vadd.f32 %v1283, %v1451
      %1453 = vmatmul.bf16.gmra.mxu0 %v825
      %v1454 = vpop.f32.mrf.mxu0
      %v1455 = vadd.f32 %v1286, %v1454
      %v1456 = vpop.f32.mrf.mxu0
      %v1457 = vadd.f32 %v1288, %v1456
      %1458 = vmatmul.bf16.gmra.mxu0 %v829
      %v1459 = vpop.f32.mrf.mxu0
      %v1460 = vadd.f32 %v1291, %v1459
      %v1461 = vpop.f32.mrf.mxu0
      %v1462 = vadd.f32 %v1293, %v1461
      %1463 = vmatmul.bf16.gmra.mxu0 %v833
      %v1464 = vpop.f32.mrf.mxu0
      %v1465 = vadd.f32 %v1296, %v1464
      %v1466 = vpop.f32.mrf.mxu0
      %v1467 = vadd.f32 %v1298, %v1466
      %1468 = vmatmul.bf16.gmra.mxu0 %v837
      %v1469 = vpop.f32.mrf.mxu0
      %v1470 = vadd.f32 %v1301, %v1469
      %v1471 = vpop.f32.mrf.mxu0
      %v1472 = vadd.f32 %v1303, %v1471
      %1473 = vmatmul.bf16.gmra.mxu0 %v841
      %v1474 = vpop.f32.mrf.mxu0
      %v1475 = vadd.f32 %v1306, %v1474
      %v1476 = vpop.f32.mrf.mxu0
      %v1477 = vadd.f32 %v1308, %v1476
      %1478 = vmatmul.bf16.gmra.mxu0 %v845
      %v1479 = vpop.f32.mrf.mxu0
      %v1480 = vadd.f32 %v1311, %v1479
      %v1481 = vpop.f32.mrf.mxu0
      %v1482 = vadd.f32 %v1313, %v1481
      %1483 = vmatmul.bf16.gmra.mxu0 %v849
      %v1484 = vpop.f32.mrf.mxu0
      %v1485 = vadd.f32 %v1316, %v1484
      %v1486 = vpop.f32.mrf.mxu0
      %v1487 = vadd.f32 %v1318, %v1486
      %1488 = vmatmul.bf16.gmra.mxu0 %v853
      %v1489 = vpop.f32.mrf.mxu0
      %v1490 = vadd.f32 %v1321, %v1489
      %v1491 = vpop.f32.mrf.mxu0
      %v1492 = vadd.f32 %v1323, %v1491
      %1493 = vmatmul.bf16.gmra.mxu0 %v857
      %v1494 = vpop.f32.mrf.mxu0
      %v1495 = vadd.f32 %v1326, %v1494
      %v1496 = vpop.f32.mrf.mxu0
      %v1497 = vadd.f32 %v1328, %v1496
      %1498 = vmatmul.bf16.gmra.mxu0 %v861
      %v1499 = vpop.f32.mrf.mxu0
      %v1500 = vadd.f32 %v1331, %v1499
      %v1501 = vpop.f32.mrf.mxu0
      %v1502 = vadd.f32 %v1333, %v1501
      %1503 = vmatmul.bf16.gmra.mxu0 %v865
      %v1504 = vpop.f32.mrf.mxu0
      %v1505 = vadd.f32 %v1336, %v1504
      %v1506 = vpop.f32.mrf.mxu0
      %v1507 = vadd.f32 %v1338, %v1506
      %1508 = vmatmul.bf16.gmra.mxu0 %v869
      %v1509 = vpop.f32.mrf.mxu0
      %v1510 = vadd.f32 %v1341, %v1509
      %v1511 = vpop.f32.mrf.mxu0
      %v1512 = vadd.f32 %v1343, %v1511
      %1513 = vmatmul.bf16.gmra.mxu0 %v873
      %v1514 = vpop.f32.mrf.mxu0
      %v1515 = vadd.f32 %v1346, %v1514
      %v1516 = vpop.f32.mrf.mxu0
      %v1517 = vadd.f32 %v1348, %v1516
      %1518 = vmatmul.bf16.gmra.mxu0 %v877
      %v1519 = vpop.f32.mrf.mxu0
      %v1520 = vadd.f32 %v1351, %v1519
      %v1521 = vpop.f32.mrf.mxu0
      %v1522 = vadd.f32 %v1353, %v1521
      %1523 = vmatmul.bf16.gmra.mxu0 %v881
      %v1524 = vpop.f32.mrf.mxu0
      %v1525 = vadd.f32 %v1356, %v1524
      %v1526 = vpop.f32.mrf.mxu0
      %v1527 = vadd.f32 %v1358, %v1526
      %1528 = vmatmul.bf16.gmra.mxu0 %v885
      %v1529 = vpop.f32.mrf.mxu0
      %v1530 = vadd.f32 %v1361, %v1529
      %v1531 = vpop.f32.mrf.mxu0
      %v1532 = vadd.f32 %v1363, %v1531
      %1533 = vmatmul.bf16.gmra.mxu0 %v889
      %v1534 = vpop.f32.mrf.mxu0
      %v1535 = vadd.f32 %v1366, %v1534
      %v1536 = vpop.f32.mrf.mxu0
      %v1537 = vadd.f32 %v1368, %v1536
      %1538 = vmatmul.bf16.gmra.mxu0 %v893
      %v1539 = vpop.f32.mrf.mxu0
      %v1540 = vadd.f32 %v1371, %v1539
      %v1541 = vpop.f32.mrf.mxu0
      %v1542 = vadd.f32 %v1373, %v1541
      %1543 = vmatmul.bf16.gmra.mxu0 %v897
      %v1544 = vpop.f32.mrf.mxu0
      %v1545 = vadd.f32 %v1376, %v1544
      %v1546 = vpop.f32.mrf.mxu0
      %v1547 = vadd.f32 %v1378, %v1546
      %1548 = vmatmul.bf16.gmra.mxu0 %v901
      %v1549 = vpop.f32.mrf.mxu0
      %v1550 = vadd.f32 %v1381, %v1549
      %v1551 = vpop.f32.mrf.mxu0
      %v1552 = vadd.f32 %v1383, %v1551
      %1553 = vmatmul.bf16.gmra.mxu0 %v905
      %v1554 = vpop.f32.mrf.mxu0
      %v1555 = vadd.f32 %v1386, %v1554
      %v1556 = vpop.f32.mrf.mxu0
      %v1557 = vadd.f32 %v1388, %v1556
      %1558 = vmatmul.bf16.gmra.mxu0 %v909
      %v1559 = vpop.f32.mrf.mxu0
      %v1560 = vadd.f32 %v1391, %v1559
      %v1561 = vpop.f32.mrf.mxu0
      %v1562 = vadd.f32 %v1393, %v1561
      %1563 = vmatmul.bf16.gmra.mxu0 %v913
      %v1564 = vpop.f32.mrf.mxu0
      %v1565 = vadd.f32 %v1396, %v1564
      %v1566 = vpop.f32.mrf.mxu0
      %v1567 = vadd.f32 %v1398, %v1566
      %1568 = vmatmul.bf16.gmra.mxu0 %v917
      %v1569 = vpop.f32.mrf.mxu0
      %v1570 = vadd.f32 %v1401, %v1569
      %v1571 = vpop.f32.mrf.mxu0
      %v1572 = vadd.f32 %v1403, %v1571
      %1573 = vmatmul.bf16.gmra.mxu0 %v921
      %v1574 = vpop.f32.mrf.mxu0
      %v1575 = vadd.f32 %v1406, %v1574
      %v1576 = vpop.f32.mrf.mxu0
      %v1577 = vadd.f32 %v1408, %v1576
      %1578 = vmatmul.bf16.gmra.mxu0 %v925
      %v1579 = vpop.f32.mrf.mxu0
      %v1580 = vadd.f32 %v1411, %v1579
      %v1581 = vpop.f32.mrf.mxu0
      %v1582 = vadd.f32 %v1413, %v1581
      %1583 = vmatmul.bf16.gmra.mxu0 %v929
      %v1584 = vpop.f32.mrf.mxu0
      %v1585 = vadd.f32 %v1416, %v1584
      %v1586 = vpop.f32.mrf.mxu0
      %v1587 = vadd.f32 %v1418, %v1586
      %1588 = vmatmul.bf16.gmra.mxu0 %v933
      %v1589 = vpop.f32.mrf.mxu0
      %v1590 = vadd.f32 %v1421, %v1589
      %v1591 = vpop.f32.mrf.mxu0
      %v1592 = vadd.f32 %v1423, %v1591
      %1593 = vdwg.mxu0
      %1594 = vmatpush.bf16.msra.mxu0 %v1215
      %1595 = vmatpush.bf16.msra.mxu0 %v1214
      %1596 = vmatpush.bf16.msra.mxu0 %v1213
      %1597 = vmatpush.bf16.msra.mxu0 %v1212
      %1598 = vmatpush.bf16.msra.mxu0 %v1211
      %1599 = vmatpush.bf16.msra.mxu0 %v1210
      %1600 = vmatpush.bf16.msra.mxu0 %v1209
      %1601 = vmatpush.bf16.msra.mxu0 %v1208
      %1602 = vmatmul.bf16.gmra.mxu0 %v810
      %v1603 = vpop.f32.mrf.mxu0
      %v1604 = vadd.f32 %v1435, %v1603
      %v1605 = vpop.f32.mrf.mxu0
      %v1606 = vadd.f32 %v1437, %v1605
      %1607 = vmatmul.bf16.gmra.mxu0 %v814
      %v1608 = vpop.f32.mrf.mxu0
      %v1609 = vadd.f32 %v1440, %v1608
      %v1610 = vpop.f32.mrf.mxu0
      %v1611 = vadd.f32 %v1442, %v1610
      %1612 = vmatmul.bf16.gmra.mxu0 %v818
      %v1613 = vpop.f32.mrf.mxu0
      %v1614 = vadd.f32 %v1445, %v1613
      %v1615 = vpop.f32.mrf.mxu0
      %v1616 = vadd.f32 %v1447, %v1615
      %1617 = vmatmul.bf16.gmra.mxu0 %v822
      %v1618 = vpop.f32.mrf.mxu0
      %v1619 = vadd.f32 %v1450, %v1618
      %v1620 = vpop.f32.mrf.mxu0
      %v1621 = vadd.f32 %v1452, %v1620
      %1622 = vmatmul.bf16.gmra.mxu0 %v826
      %v1623 = vpop.f32.mrf.mxu0
      %v1624 = vadd.f32 %v1455, %v1623
      %v1625 = vpop.f32.mrf.mxu0
      %v1626 = vadd.f32 %v1457, %v1625
      %1627 = vmatmul.bf16.gmra.mxu0 %v830
      %v1628 = vpop.f32.mrf.mxu0
      %v1629 = vadd.f32 %v1460, %v1628
      %v1630 = vpop.f32.mrf.mxu0
      %v1631 = vadd.f32 %v1462, %v1630
      %1632 = vmatmul.bf16.gmra.mxu0 %v834
      %v1633 = vpop.f32.mrf.mxu0
      %v1634 = vadd.f32 %v1465, %v1633
      %v1635 = vpop.f32.mrf.mxu0
      %v1636 = vadd.f32 %v1467, %v1635
      %1637 = vmatmul.bf16.gmra.mxu0 %v838
      %v1638 = vpop.f32.mrf.mxu0
      %v1639 = vadd.f32 %v1470, %v1638
      %v1640 = vpop.f32.mrf.mxu0
      %v1641 = vadd.f32 %v1472, %v1640
      %1642 = vmatmul.bf16.gmra.mxu0 %v842
      %v1643 = vpop.f32.mrf.mxu0
      %v1644 = vadd.f32 %v1475, %v1643
      %v1645 = vpop.f32.mrf.mxu0
      %v1646 = vadd.f32 %v1477, %v1645
      %1647 = vmatmul.bf16.gmra.mxu0 %v846
      %v1648 = vpop.f32.mrf.mxu0
      %v1649 = vadd.f32 %v1480, %v1648
      %v1650 = vpop.f32.mrf.mxu0
      %v1651 = vadd.f32 %v1482, %v1650
      %1652 = vmatmul.bf16.gmra.mxu0 %v850
      %v1653 = vpop.f32.mrf.mxu0
      %v1654 = vadd.f32 %v1485, %v1653
      %v1655 = vpop.f32.mrf.mxu0
      %v1656 = vadd.f32 %v1487, %v1655
      %1657 = vmatmul.bf16.gmra.mxu0 %v854
      %v1658 = vpop.f32.mrf.mxu0
      %v1659 = vadd.f32 %v1490, %v1658
      %v1660 = vpop.f32.mrf.mxu0
      %v1661 = vadd.f32 %v1492, %v1660
      %1662 = vmatmul.bf16.gmra.mxu0 %v858
      %v1663 = vpop.f32.mrf.mxu0
      %v1664 = vadd.f32 %v1495, %v1663
      %v1665 = vpop.f32.mrf.mxu0
      %v1666 = vadd.f32 %v1497, %v1665
      %1667 = vmatmul.bf16.gmra.mxu0 %v862
      %v1668 = vpop.f32.mrf.mxu0
      %v1669 = vadd.f32 %v1500, %v1668
      %v1670 = vpop.f32.mrf.mxu0
      %v1671 = vadd.f32 %v1502, %v1670
      %1672 = vmatmul.bf16.gmra.mxu0 %v866
      %v1673 = vpop.f32.mrf.mxu0
      %v1674 = vadd.f32 %v1505, %v1673
      %v1675 = vpop.f32.mrf.mxu0
      %v1676 = vadd.f32 %v1507, %v1675
      %1677 = vmatmul.bf16.gmra.mxu0 %v870
      %v1678 = vpop.f32.mrf.mxu0
      %v1679 = vadd.f32 %v1510, %v1678
      %v1680 = vpop.f32.mrf.mxu0
      %v1681 = vadd.f32 %v1512, %v1680
      %1682 = vmatmul.bf16.gmra.mxu0 %v874
      %v1683 = vpop.f32.mrf.mxu0
      %v1684 = vadd.f32 %v1515, %v1683
      %v1685 = vpop.f32.mrf.mxu0
      %v1686 = vadd.f32 %v1517, %v1685
      %1687 = vmatmul.bf16.gmra.mxu0 %v878
      %v1688 = vpop.f32.mrf.mxu0
      %v1689 = vadd.f32 %v1520, %v1688
      %v1690 = vpop.f32.mrf.mxu0
      %v1691 = vadd.f32 %v1522, %v1690
      %1692 = vmatmul.bf16.gmra.mxu0 %v882
      %v1693 = vpop.f32.mrf.mxu0
      %v1694 = vadd.f32 %v1525, %v1693
      %v1695 = vpop.f32.mrf.mxu0
      %v1696 = vadd.f32 %v1527, %v1695
      %1697 = vmatmul.bf16.gmra.mxu0 %v886
      %v1698 = vpop.f32.mrf.mxu0
      %v1699 = vadd.f32 %v1530, %v1698
      %v1700 = vpop.f32.mrf.mxu0
      %v1701 = vadd.f32 %v1532, %v1700
      %1702 = vmatmul.bf16.gmra.mxu0 %v890
      %v1703 = vpop.f32.mrf.mxu0
      %v1704 = vadd.f32 %v1535, %v1703
      %v1705 = vpop.f32.mrf.mxu0
      %v1706 = vadd.f32 %v1537, %v1705
      %1707 = vmatmul.bf16.gmra.mxu0 %v894
      %v1708 = vpop.f32.mrf.mxu0
      %v1709 = vadd.f32 %v1540, %v1708
      %v1710 = vpop.f32.mrf.mxu0
      %v1711 = vadd.f32 %v1542, %v1710
      %1712 = vmatmul.bf16.gmra.mxu0 %v898
      %v1713 = vpop.f32.mrf.mxu0
      %v1714 = vadd.f32 %v1545, %v1713
      %v1715 = vpop.f32.mrf.mxu0
      %v1716 = vadd.f32 %v1547, %v1715
      %1717 = vmatmul.bf16.gmra.mxu0 %v902
      %v1718 = vpop.f32.mrf.mxu0
      %v1719 = vadd.f32 %v1550, %v1718
      %v1720 = vpop.f32.mrf.mxu0
      %v1721 = vadd.f32 %v1552, %v1720
      %1722 = vmatmul.bf16.gmra.mxu0 %v906
      %v1723 = vpop.f32.mrf.mxu0
      %v1724 = vadd.f32 %v1555, %v1723
      %v1725 = vpop.f32.mrf.mxu0
      %v1726 = vadd.f32 %v1557, %v1725
      %1727 = vmatmul.bf16.gmra.mxu0 %v910
      %v1728 = vpop.f32.mrf.mxu0
      %v1729 = vadd.f32 %v1560, %v1728
      %v1730 = vpop.f32.mrf.mxu0
      %v1731 = vadd.f32 %v1562, %v1730
      %1732 = vmatmul.bf16.gmra.mxu0 %v914
      %v1733 = vpop.f32.mrf.mxu0
      %v1734 = vadd.f32 %v1565, %v1733
      %v1735 = vpop.f32.mrf.mxu0
      %v1736 = vadd.f32 %v1567, %v1735
      %1737 = vmatmul.bf16.gmra.mxu0 %v918
      %v1738 = vpop.f32.mrf.mxu0
      %v1739 = vadd.f32 %v1570, %v1738
      %v1740 = vpop.f32.mrf.mxu0
      %v1741 = vadd.f32 %v1572, %v1740
      %1742 = vmatmul.bf16.gmra.mxu0 %v922
      %v1743 = vpop.f32.mrf.mxu0
      %v1744 = vadd.f32 %v1575, %v1743
      %v1745 = vpop.f32.mrf.mxu0
      %v1746 = vadd.f32 %v1577, %v1745
      %1747 = vmatmul.bf16.gmra.mxu0 %v926
      %v1748 = vpop.f32.mrf.mxu0
      %v1749 = vadd.f32 %v1580, %v1748
      %v1750 = vpop.f32.mrf.mxu0
      %v1751 = vadd.f32 %v1582, %v1750
      %1752 = vmatmul.bf16.gmra.mxu0 %v930
      %v1753 = vpop.f32.mrf.mxu0
      %v1754 = vadd.f32 %v1585, %v1753
      %v1755 = vpop.f32.mrf.mxu0
      %v1756 = vadd.f32 %v1587, %v1755
      %1757 = vmatmul.bf16.gmra.mxu0 %v934
      %v1758 = vpop.f32.mrf.mxu0
      %v1759 = vadd.f32 %v1590, %v1758
      %v1760 = vpop.f32.mrf.mxu0
      %v1761 = vadd.f32 %v1592, %v1760
      %1762 = vdwg.mxu0
      %1763 = vmatpush.bf16.msra.mxu0 %v1223
      %1764 = vmatpush.bf16.msra.mxu0 %v1222
      %1765 = vmatpush.bf16.msra.mxu0 %v1221
      %1766 = vmatpush.bf16.msra.mxu0 %v1220
      %1767 = vmatpush.bf16.msra.mxu0 %v1219
      %1768 = vmatpush.bf16.msra.mxu0 %v1218
      %1769 = vmatpush.bf16.msra.mxu0 %v1217
      %1770 = vmatpush.bf16.msra.mxu0 %v1216
      %1771 = vmatmul.bf16.gmra.mxu0 %v811
      %v1772 = vpop.f32.mrf.mxu0
      %v1773 = vadd.f32 %v1604, %v1772
      %v1774 = vpop.f32.mrf.mxu0
      %v1775 = vadd.f32 %v1606, %v1774
      %1776 = vmatmul.bf16.gmra.mxu0 %v815
      %v1777 = vpop.f32.mrf.mxu0
      %v1778 = vadd.f32 %v1609, %v1777
      %v1779 = vpop.f32.mrf.mxu0
      %v1780 = vadd.f32 %v1611, %v1779
      %1781 = vmatmul.bf16.gmra.mxu0 %v819
      %v1782 = vpop.f32.mrf.mxu0
      %v1783 = vadd.f32 %v1614, %v1782
      %v1784 = vpop.f32.mrf.mxu0
      %v1785 = vadd.f32 %v1616, %v1784
      %1786 = vmatmul.bf16.gmra.mxu0 %v823
      %v1787 = vpop.f32.mrf.mxu0
      %v1788 = vadd.f32 %v1619, %v1787
      %v1789 = vpop.f32.mrf.mxu0
      %v1790 = vadd.f32 %v1621, %v1789
      %1791 = vmatmul.bf16.gmra.mxu0 %v827
      %v1792 = vpop.f32.mrf.mxu0
      %v1793 = vadd.f32 %v1624, %v1792
      %v1794 = vpop.f32.mrf.mxu0
      %v1795 = vadd.f32 %v1626, %v1794
      %1796 = vmatmul.bf16.gmra.mxu0 %v831
      %v1797 = vpop.f32.mrf.mxu0
      %v1798 = vadd.f32 %v1629, %v1797
      %v1799 = vpop.f32.mrf.mxu0
      %v1800 = vadd.f32 %v1631, %v1799
      %1801 = vmatmul.bf16.gmra.mxu0 %v835
      %v1802 = vpop.f32.mrf.mxu0
      %v1803 = vadd.f32 %v1634, %v1802
      %v1804 = vpop.f32.mrf.mxu0
      %v1805 = vadd.f32 %v1636, %v1804
      %1806 = vmatmul.bf16.gmra.mxu0 %v839
      %v1807 = vpop.f32.mrf.mxu0
      %v1808 = vadd.f32 %v1639, %v1807
      %v1809 = vpop.f32.mrf.mxu0
      %v1810 = vadd.f32 %v1641, %v1809
      %1811 = vmatmul.bf16.gmra.mxu0 %v843
      %v1812 = vpop.f32.mrf.mxu0
      %v1813 = vadd.f32 %v1644, %v1812
      %v1814 = vpop.f32.mrf.mxu0
      %v1815 = vadd.f32 %v1646, %v1814
      %1816 = vmatmul.bf16.gmra.mxu0 %v847
      %v1817 = vpop.f32.mrf.mxu0
      %v1818 = vadd.f32 %v1649, %v1817
      %v1819 = vpop.f32.mrf.mxu0
      %v1820 = vadd.f32 %v1651, %v1819
      %1821 = vmatmul.bf16.gmra.mxu0 %v851
      %v1822 = vpop.f32.mrf.mxu0
      %v1823 = vadd.f32 %v1654, %v1822
      %v1824 = vpop.f32.mrf.mxu0
      %v1825 = vadd.f32 %v1656, %v1824
      %1826 = vmatmul.bf16.gmra.mxu0 %v855
      %v1827 = vpop.f32.mrf.mxu0
      %v1828 = vadd.f32 %v1659, %v1827
      %v1829 = vpop.f32.mrf.mxu0
      %v1830 = vadd.f32 %v1661, %v1829
      %1831 = vmatmul.bf16.gmra.mxu0 %v859
      %v1832 = vpop.f32.mrf.mxu0
      %v1833 = vadd.f32 %v1664, %v1832
      %v1834 = vpop.f32.mrf.mxu0
      %v1835 = vadd.f32 %v1666, %v1834
      %1836 = vmatmul.bf16.gmra.mxu0 %v863
      %v1837 = vpop.f32.mrf.mxu0
      %v1838 = vadd.f32 %v1669, %v1837
      %v1839 = vpop.f32.mrf.mxu0
      %v1840 = vadd.f32 %v1671, %v1839
      %1841 = vmatmul.bf16.gmra.mxu0 %v867
      %v1842 = vpop.f32.mrf.mxu0
      %v1843 = vadd.f32 %v1674, %v1842
      %v1844 = vpop.f32.mrf.mxu0
      %v1845 = vadd.f32 %v1676, %v1844
      %1846 = vmatmul.bf16.gmra.mxu0 %v871
      %v1847 = vpop.f32.mrf.mxu0
      %v1848 = vadd.f32 %v1679, %v1847
      %v1849 = vpop.f32.mrf.mxu0
      %v1850 = vadd.f32 %v1681, %v1849
      %1851 = vmatmul.bf16.gmra.mxu0 %v875
      %v1852 = vpop.f32.mrf.mxu0
      %v1853 = vadd.f32 %v1684, %v1852
      %v1854 = vpop.f32.mrf.mxu0
      %v1855 = vadd.f32 %v1686, %v1854
      %1856 = vmatmul.bf16.gmra.mxu0 %v879
      %v1857 = vpop.f32.mrf.mxu0
      %v1858 = vadd.f32 %v1689, %v1857
      %v1859 = vpop.f32.mrf.mxu0
      %v1860 = vadd.f32 %v1691, %v1859
      %1861 = vmatmul.bf16.gmra.mxu0 %v883
      %v1862 = vpop.f32.mrf.mxu0
      %v1863 = vadd.f32 %v1694, %v1862
      %v1864 = vpop.f32.mrf.mxu0
      %v1865 = vadd.f32 %v1696, %v1864
      %1866 = vmatmul.bf16.gmra.mxu0 %v887
      %v1867 = vpop.f32.mrf.mxu0
      %v1868 = vadd.f32 %v1699, %v1867
      %v1869 = vpop.f32.mrf.mxu0
      %v1870 = vadd.f32 %v1701, %v1869
      %1871 = vmatmul.bf16.gmra.mxu0 %v891
      %v1872 = vpop.f32.mrf.mxu0
      %v1873 = vadd.f32 %v1704, %v1872
      %v1874 = vpop.f32.mrf.mxu0
      %v1875 = vadd.f32 %v1706, %v1874
      %1876 = vmatmul.bf16.gmra.mxu0 %v895
      %v1877 = vpop.f32.mrf.mxu0
      %v1878 = vadd.f32 %v1709, %v1877
      %v1879 = vpop.f32.mrf.mxu0
      %v1880 = vadd.f32 %v1711, %v1879
      %1881 = vmatmul.bf16.gmra.mxu0 %v899
      %v1882 = vpop.f32.mrf.mxu0
      %v1883 = vadd.f32 %v1714, %v1882
      %v1884 = vpop.f32.mrf.mxu0
      %v1885 = vadd.f32 %v1716, %v1884
      %1886 = vmatmul.bf16.gmra.mxu0 %v903
      %v1887 = vpop.f32.mrf.mxu0
      %v1888 = vadd.f32 %v1719, %v1887
      %v1889 = vpop.f32.mrf.mxu0
      %v1890 = vadd.f32 %v1721, %v1889
      %1891 = vmatmul.bf16.gmra.mxu0 %v907
      %v1892 = vpop.f32.mrf.mxu0
      %v1893 = vadd.f32 %v1724, %v1892
      %v1894 = vpop.f32.mrf.mxu0
      %v1895 = vadd.f32 %v1726, %v1894
      %1896 = vmatmul.bf16.gmra.mxu0 %v911
      %v1897 = vpop.f32.mrf.mxu0
      %v1898 = vadd.f32 %v1729, %v1897
      %v1899 = vpop.f32.mrf.mxu0
      %v1900 = vadd.f32 %v1731, %v1899
      %1901 = vmatmul.bf16.gmra.mxu0 %v915
      %v1902 = vpop.f32.mrf.mxu0
      %v1903 = vadd.f32 %v1734, %v1902
      %v1904 = vpop.f32.mrf.mxu0
      %v1905 = vadd.f32 %v1736, %v1904
      %1906 = vmatmul.bf16.gmra.mxu0 %v919
      %v1907 = vpop.f32.mrf.mxu0
      %v1908 = vadd.f32 %v1739, %v1907
      %v1909 = vpop.f32.mrf.mxu0
      %v1910 = vadd.f32 %v1741, %v1909
      %1911 = vmatmul.bf16.gmra.mxu0 %v923
      %v1912 = vpop.f32.mrf.mxu0
      %v1913 = vadd.f32 %v1744, %v1912
      %v1914 = vpop.f32.mrf.mxu0
      %v1915 = vadd.f32 %v1746, %v1914
      %1916 = vmatmul.bf16.gmra.mxu0 %v927
      %v1917 = vpop.f32.mrf.mxu0
      %v1918 = vadd.f32 %v1749, %v1917
      %v1919 = vpop.f32.mrf.mxu0
      %v1920 = vadd.f32 %v1751, %v1919
      %1921 = vmatmul.bf16.gmra.mxu0 %v931
      %v1922 = vpop.f32.mrf.mxu0
      %v1923 = vadd.f32 %v1754, %v1922
      %v1924 = vpop.f32.mrf.mxu0
      %v1925 = vadd.f32 %v1756, %v1924
      %1926 = vmatmul.bf16.gmra.mxu0 %v935
      %v1927 = vpop.f32.mrf.mxu0
      %v1928 = vadd.f32 %v1759, %v1927
      %v1929 = vpop.f32.mrf.mxu0
      %v1930 = vadd.f32 %v1761, %v1929
      %1931 = vdwg.mxu0
      %v1932 = vmax.f32 %v1773, 0.0
      %v1933 = vmax.f32 %v1775, 0.0
      %v1934 = vmax.f32 %v1778, 0.0
      %v1935 = vmax.f32 %v1780, 0.0
      %v1936 = vmax.f32 %v1783, 0.0
      %v1937 = vmax.f32 %v1785, 0.0
      %v1938 = vmax.f32 %v1788, 0.0
      %v1939 = vmax.f32 %v1790, 0.0
      %v1940 = vmax.f32 %v1793, 0.0
      %v1941 = vmax.f32 %v1795, 0.0
      %v1942 = vmax.f32 %v1798, 0.0
      %v1943 = vmax.f32 %v1800, 0.0
      %v1944 = vmax.f32 %v1803, 0.0
      %v1945 = vmax.f32 %v1805, 0.0
      %v1946 = vmax.f32 %v1808, 0.0
      %v1947 = vmax.f32 %v1810, 0.0
      %v1948 = vmax.f32 %v1813, 0.0
      %v1949 = vmax.f32 %v1815, 0.0
      %v1950 = vmax.f32 %v1818, 0.0
      %v1951 = vmax.f32 %v1820, 0.0
      %v1952 = vmax.f32 %v1823, 0.0
      %v1953 = vmax.f32 %v1825, 0.0
      %v1954 = vmax.f32 %v1828, 0.0
      %v1955 = vmax.f32 %v1830, 0.0
      %v1956 = vmax.f32 %v1833, 0.0
      %v1957 = vmax.f32 %v1835, 0.0
      %v1958 = vmax.f32 %v1838, 0.0
      %v1959 = vmax.f32 %v1840, 0.0
      %v1960 = vmax.f32 %v1843, 0.0
      %v1961 = vmax.f32 %v1845, 0.0
      %v1962 = vmax.f32 %v1848, 0.0
      %v1963 = vmax.f32 %v1850, 0.0
      %v1964 = vmax.f32 %v1853, 0.0
      %v1965 = vmax.f32 %v1855, 0.0
      %v1966 = vmax.f32 %v1858, 0.0
      %v1967 = vmax.f32 %v1860, 0.0
      %v1968 = vmax.f32 %v1863, 0.0
      %v1969 = vmax.f32 %v1865, 0.0
      %v1970 = vmax.f32 %v1868, 0.0
      %v1971 = vmax.f32 %v1870, 0.0
      %v1972 = vmax.f32 %v1873, 0.0
      %v1973 = vmax.f32 %v1875, 0.0
      %v1974 = vmax.f32 %v1878, 0.0
      %v1975 = vmax.f32 %v1880, 0.0
      %v1976 = vmax.f32 %v1883, 0.0
      %v1977 = vmax.f32 %v1885, 0.0
      %v1978 = vmax.f32 %v1888, 0.0
      %v1979 = vmax.f32 %v1890, 0.0
      %v1980 = vmax.f32 %v1893, 0.0
      %v1981 = vmax.f32 %v1895, 0.0
      %v1982 = vmax.f32 %v1898, 0.0
      %v1983 = vmax.f32 %v1900, 0.0
      %v1984 = vmax.f32 %v1903, 0.0
      %v1985 = vmax.f32 %v1905, 0.0
      %v1986 = vmax.f32 %v1908, 0.0
      %v1987 = vmax.f32 %v1910, 0.0
      %v1988 = vmax.f32 %v1913, 0.0
      %v1989 = vmax.f32 %v1915, 0.0
      %v1990 = vmax.f32 %v1918, 0.0
      %v1991 = vmax.f32 %v1920, 0.0
      %v1992 = vmax.f32 %v1923, 0.0
      %v1993 = vmax.f32 %v1925, 0.0
      %v1994 = vmax.f32 %v1928, 0.0
      %v1995 = vmax.f32 %v1930, 0.0
      %v1996 = vpack.c.bf16 %v1932, %v1932
      %v1997 = vpack.c.bf16 %v1933, %v1933
      %v1998 = vpack.c.bf16 %v1934, %v1934
      %v1999 = vpack.c.bf16 %v1935, %v1935
      %v2000 = vpack.c.bf16 %v1936, %v1936
      %v2001 = vpack.c.bf16 %v1937, %v1937
      %v2002 = vpack.c.bf16 %v1938, %v1938
      %v2003 = vpack.c.bf16 %v1939, %v1939
      %v2004 = vpack.c.bf16 %v1940, %v1940
      %v2005 = vpack.c.bf16 %v1941, %v1941
      %v2006 = vpack.c.bf16 %v1942, %v1942
      %v2007 = vpack.c.bf16 %v1943, %v1943
      %v2008 = vpack.c.bf16 %v1944, %v1944
      %v2009 = vpack.c.bf16 %v1945, %v1945
      %v2010 = vpack.c.bf16 %v1946, %v1946
      %v2011 = vpack.c.bf16 %v1947, %v1947
      %v2012 = vpack.c.bf16 %v1948, %v1948
      %v2013 = vpack.c.bf16 %v1949, %v1949
      %v2014 = vpack.c.bf16 %v1950, %v1950
      %v2015 = vpack.c.bf16 %v1951, %v1951
      %v2016 = vpack.c.bf16 %v1952, %v1952
      %v2017 = vpack.c.bf16 %v1953, %v1953
      %v2018 = vpack.c.bf16 %v1954, %v1954
      %v2019 = vpack.c.bf16 %v1955, %v1955
      %v2020 = vpack.c.bf16 %v1956, %v1956
      %v2021 = vpack.c.bf16 %v1957, %v1957
      %v2022 = vpack.c.bf16 %v1958, %v1958
      %v2023 = vpack.c.bf16 %v1959, %v1959
      %v2024 = vpack.c.bf16 %v1960, %v1960
      %v2025 = vpack.c.bf16 %v1961, %v1961
      %v2026 = vpack.c.bf16 %v1962, %v1962
      %v2027 = vpack.c.bf16 %v1963, %v1963
      %v2028 = vpack.c.bf16 %v1964, %v1964
      %v2029 = vpack.c.bf16 %v1965, %v1965
      %v2030 = vpack.c.bf16 %v1966, %v1966
      %v2031 = vpack.c.bf16 %v1967, %v1967
      %v2032 = vpack.c.bf16 %v1968, %v1968
      %v2033 = vpack.c.bf16 %v1969, %v1969
      %v2034 = vpack.c.bf16 %v1970, %v1970
      %v2035 = vpack.c.bf16 %v1971, %v1971
      %v2036 = vpack.c.bf16 %v1972, %v1972
      %v2037 = vpack.c.bf16 %v1973, %v1973
      %v2038 = vpack.c.bf16 %v1974, %v1974
      %v2039 = vpack.c.bf16 %v1975, %v1975
      %v2040 = vpack.c.bf16 %v1976, %v1976
      %v2041 = vpack.c.bf16 %v1977, %v1977
      %v2042 = vpack.c.bf16 %v1978, %v1978
      %v2043 = vpack.c.bf16 %v1979, %v1979
      %v2044 = vpack.c.bf16 %v1980, %v1980
      %v2045 = vpack.c.bf16 %v1981, %v1981
      %v2046 = vpack.c.bf16 %v1982, %v1982
      %v2047 = vpack.c.bf16 %v1983, %v1983
      %v2048 = vpack.c.bf16 %v1984, %v1984
      %v2049 = vpack.c.bf16 %v1985, %v1985
      %v2050 = vpack.c.bf16 %v1986, %v1986
      %v2051 = vpack.c.bf16 %v1987, %v1987
      %v2052 = vpack.c.bf16 %v1988, %v1988
      %v2053 = vpack.c.bf16 %v1989, %v1989
      %v2054 = vpack.c.bf16 %v1990, %v1990
      %v2055 = vpack.c.bf16 %v1991, %v1991
      %v2056 = vpack.c.bf16 %v1992, %v1992
      %v2057 = vpack.c.bf16 %v1993, %v1993
      %v2058 = vpack.c.bf16 %v1994, %v1994
      %v2059 = vpack.c.bf16 %v1995, %v1995
      %2060 = vst [vmem:[%s226] sm:$0xf] %v1996
      %2061 = vst [vmem:[%s226 + $0x4] sm:$0xf] %v1997
      %2062 = vst [vmem:[%s226 + $0x8] sm:$0xf] %v1998
      %2063 = vst [vmem:[%s226 + $0xc] sm:$0xf] %v1999
      %2064 = vst [vmem:[%s226 + $0x10] sm:$0xf] %v2000
      %2065 = vst [vmem:[%s226 + $0x14] sm:$0xf] %v2001
      %2066 = vst [vmem:[%s226 + $0x18] sm:$0xf] %v2002
      %2067 = vst [vmem:[%s226 + $0x1c] sm:$0xf] %v2003
      %2068 = vst [vmem:[%s226 + $0x20] sm:$0xf] %v2004
      %2069 = vst [vmem:[%s226 + $0x24] sm:$0xf] %v2005
      %2070 = vst [vmem:[%s226 + $0x28] sm:$0xf] %v2006
      %2071 = vst [vmem:[%s226 + $0x2c] sm:$0xf] %v2007
      %2072 = vst [vmem:[%s226 + $0x30] sm:$0xf] %v2008
      %2073 = vst [vmem:[%s226 + $0x34] sm:$0xf] %v2009
      %2074 = vst [vmem:[%s226 + $0x38] sm:$0xf] %v2010
      %2075 = vst [vmem:[%s226 + $0x3c] sm:$0xf] %v2011
      %2076 = vst [vmem:[%s226 + $0x40] sm:$0xf] %v2012
      %2077 = vst [vmem:[%s226 + $0x44] sm:$0xf] %v2013
      %2078 = vst [vmem:[%s226 + $0x48] sm:$0xf] %v2014
      %2079 = vst [vmem:[%s226 + $0x4c] sm:$0xf] %v2015
      %2080 = vst [vmem:[%s226 + $0x50] sm:$0xf] %v2016
      %2081 = vst [vmem:[%s226 + $0x54] sm:$0xf] %v2017
      %2082 = vst [vmem:[%s226 + $0x58] sm:$0xf] %v2018
      %2083 = vst [vmem:[%s226 + $0x5c] sm:$0xf] %v2019
      %2084 = vst [vmem:[%s226 + $0x60] sm:$0xf] %v2020
      %2085 = vst [vmem:[%s226 + $0x64] sm:$0xf] %v2021
      %2086 = vst [vmem:[%s226 + $0x68] sm:$0xf] %v2022
      %2087 = vst [vmem:[%s226 + $0x6c] sm:$0xf] %v2023
      %2088 = vst [vmem:[%s226 + $0x70] sm:$0xf] %v2024
      %2089 = vst [vmem:[%s226 + $0x74] sm:$0xf] %v2025
      %2090 = vst [vmem:[%s226 + $0x78] sm:$0xf] %v2026
      %2091 = vst [vmem:[%s226 + $0x7c] sm:$0xf] %v2027
      %2092 = vst [vmem:[%s226 + $0x80] sm:$0xf] %v2028
      %2093 = vst [vmem:[%s226 + $0x84] sm:$0xf] %v2029
      %2094 = vst [vmem:[%s226 + $0x88] sm:$0xf] %v2030
      %2095 = vst [vmem:[%s226 + $0x8c] sm:$0xf] %v2031
      %2096 = vst [vmem:[%s226 + $0x90] sm:$0xf] %v2032
      %2097 = vst [vmem:[%s226 + $0x94] sm:$0xf] %v2033
      %2098 = vst [vmem:[%s226 + $0x98] sm:$0xf] %v2034
      %2099 = vst [vmem:[%s226 + $0x9c] sm:$0xf] %v2035
      %2100 = vst [vmem:[%s226 + $0xa0] sm:$0xf] %v2036
      %2101 = vst [vmem:[%s226 + $0xa4] sm:$0xf] %v2037
      %2102 = vst [vmem:[%s226 + $0xa8] sm:$0xf] %v2038
      %2103 = vst [vmem:[%s226 + $0xac] sm:$0xf] %v2039
      %2104 = vst [vmem:[%s226 + $0xb0] sm:$0xf] %v2040
      %2105 = vst [vmem:[%s226 + $0xb4] sm:$0xf] %v2041
      %2106 = vst [vmem:[%s226 + $0xb8] sm:$0xf] %v2042
      %2107 = vst [vmem:[%s226 + $0xbc] sm:$0xf] %v2043
      %2108 = vst [vmem:[%s226 + $0xc0] sm:$0xf] %v2044
      %2109 = vst [vmem:[%s226 + $0xc4] sm:$0xf] %v2045
      %2110 = vst [vmem:[%s226 + $0xc8] sm:$0xf] %v2046
      %2111 = vst [vmem:[%s226 + $0xcc] sm:$0xf] %v2047
      %2112 = vst [vmem:[%s226 + $0xd0] sm:$0xf] %v2048
      %2113 = vst [vmem:[%s226 + $0xd4] sm:$0xf] %v2049
      %2114 = vst [vmem:[%s226 + $0xd8] sm:$0xf] %v2050
      %2115 = vst [vmem:[%s226 + $0xdc] sm:$0xf] %v2051
      %2116 = vst [vmem:[%s226 + $0xe0] sm:$0xf] %v2052
      %2117 = vst [vmem:[%s226 + $0xe4] sm:$0xf] %v2053
      %2118 = vst [vmem:[%s226 + $0xe8] sm:$0xf] %v2054
      %2119 = vst [vmem:[%s226 + $0xec] sm:$0xf] %v2055
      %2120 = vst [vmem:[%s226 + $0xf0] sm:$0xf] %v2056
      %2121 = vst [vmem:[%s226 + $0xf4] sm:$0xf] %v2057
      %2122 = vst [vmem:[%s226 + $0xf8] sm:$0xf] %v2058
      %2123 = vst [vmem:[%s226 + $0xfc] sm:$0xf] %v2059
      %s2124 = smul.u32 64, %s18
      %p2125 = scmp.lt.s32.totalorder %s2124, 127
      %s2126 = scalar_select %p2125, %s2124, 127
      %p2127 = scmp.lt.s32.totalorder %s19, 0
      %s2128 = scalar_select %p2127, %s19, 0
      %s2129 = sadd.s32 %s2128, %s2126
      %s2130 = smul.addr %s2129, 4
      %s2131 = scalar_lea.vmem %s3, %s2130
      // Predicated region
      $region33: #{resnet3d_recognizer_forward.4} parent=31 // pred_check
        %p2132 = pneg %p124
      $region34: #{resnet3d_recognizer_forward.4} parent=31 // pred_check_branch
        %2134 = sbr.rel (%p2132) target = $region36
      $region35: #{resnet3d_recognizer_forward.4} parent=31 // pred_region
        %s2135 = smul.u32 64, %s18
      $region36: #{resnet3d_recognizer_forward.4} parent=31 // pred_fallthru
        _
    $region32: #{resnet3d_recognizer_forward.4} parent=5 // pred_fallthru
      _
    %p2136 = scmp.le.s32.totalorder 2, %s9
    // Predicated region
    $region37: #{resnet3d_recognizer_forward.4} parent=5 // pred_check
      %p2137 = pneg %p2136
    $region38: #{resnet3d_recognizer_forward.4} parent=5 // pred_check_branch
      %2139 = sbr.rel (%p2137) target = $region40
    $region39: #{resnet3d_recognizer_forward.4} parent=5 // pred_region
      %s2140 = ssub.s32 %s9, 2
      // Predicated region
      $region41: #{resnet3d_recognizer_forward.4} parent=39 // pred_check
        %p2141 = pneg %p130
      $region42: #{resnet3d_recognizer_forward.4} parent=39 // pred_check_branch
        %2143 = sbr.rel (%p2141) target = $region44
      $region43: #{resnet3d_recognizer_forward.4} parent=39 // pred_region
        %s2144 = smul.u32 64, %s20
        %p2145 = scmp.lt.s32.totalorder %s2144, 127
        %s2146 = scalar_select %p2145, %s2144, 127
        %p2147 = scmp.lt.s32.totalorder %s21, 0
        %s2148 = scalar_select %p2147, %s21, 0
        %s2149 = sadd.s32 %s2148, %s2146
        %s2150 = smul.addr %s2149, 4
        %s2151 = scalar_lea.vmem %s3, %s2150
      $region44: #{resnet3d_recognizer_forward.4} parent=39 // pred_fallthru
        _
    $region40: #{resnet3d_recognizer_forward.4} parent=5 // pred_fallthru
      _
  $region6: #{resnet3d_recognizer_forward.4} parent=0 // loop_footer
    %s13 = sadd.s32 1, %s9
  $region7: #{resnet3d_recognizer_forward.4} parent=0 // loop_footer_branch
    %8 = sbr.rel target = $region3
  $region8: #{resnet3d_recognizer_forward.4} parent=0 // loop_exit
    _

// kernel: resnet3d_recognizer_forward.5
$region0: #{resnet3d_recognizer_forward.5}
  #allocation0 [shape = 'u32[]', space=smem, size = 0x4, offset = 0x4, fixed_abs, tag = 'smem constant byte address 0x4 - core index']
  #allocation1 [shape = 'u32[72,128]{1,0:T(1,128)}', space=vmem, size = 0x9000, scoped, tag = 'internal scratch']
  #allocation2 [shape = 'f32[8,128]{1,0:T(8,128)}', space=vmem, size = 0x1000, scoped, tag = 'scratch operand']
  %s0 = inlined_call_operand.vmem [shape: bf16[2,512,512], index: 0, kind: input, shape index: {}]
  %s1 = inlined_call_operand.vmem [shape: bf16[512,128], index: 1, kind: input, shape index: {}]
  %s2 = inlined_call_operand.vmem [shape: f32[1,128], index: 2, kind: input, shape index: {}]
  %s3 = inlined_call_operand.vmem [shape: bf16[2,512,128], index: 3, kind: input, shape index: {}]
  %s4 = inlined_call_operand.vmem [shape: f32[128,128], index: 4, kind: input, shape index: {}]
  %s5 = inlined_call_operand.vmem [shape: f32[1,128], index: 5, kind: input, shape index: {}]
  %s6 = inlined_call_operand.vmem [shape: f32[8,128], index: 6, kind: output, shape index: {}]
  %s7 = sld [smem:[#allocation0]]
  $region65: #{resnet3d_recognizer_forward.5} parent=0
    _
  %s9 = ssub.s32 1, %s7
  %s10 = scalar_select 0, %s9, %s7
  loop: start=0, step=1, limit=4
  $region2: #{resnet3d_recognizer_forward.5} parent=0 // loop_pre_header
    _
  $region3: #{resnet3d_recognizer_forward.5} parent=0 // loop_header
    %s12 = sphi 0, %s16
    %p13 = scmp.ge.s32.totalorder %s12, 4
    %s19 = sphi 0, %s31
    %s20 = sphi 0, %s27
    %s21 = sphi 0, %s19
    %s22 = sphi 0, %s20
    %s23 = sphi 0, %s21
    %s24 = sphi 0, %s22
    %s36 = sphi 0, %s38
    %s39 = sphi 0, %s36
    %s40 = sphi 0, %s39
    %s56 = sphi 0, %s40
    %s60 = sphi 0, %s60
    %s62 = sphi 0, %s60
    %s63 = sphi 0, %s62
    %s77 = sphi 0, %s63
    %s81 = sphi 0, %s81
    %s83 = sphi 0, %s81
    %s84 = sphi 0, %s83
    %s98 = sphi 0, %s84
    %s106 = sphi 0, %s108
    %s109 = sphi 0, %s106
    %s110 = sphi 0, %s109
    %s126 = sphi 0, %s110
    %s130 = sphi 0, %s130
    %s132 = sphi 0, %s130
    %s133 = sphi 0, %s132
    %s147 = sphi 0, %s133
    %s151 = sphi 0, %s151
    %s153 = sphi 0, %s151
    %s154 = sphi 0, %s153
    %s168 = sphi 0, %s154
    %s172 = sphi 0, %s172
    %s174 = sphi 0, %s172
    %s175 = sphi 0, %s174
    %s189 = sphi 0, %s175
  $region4: #{resnet3d_recognizer_forward.5} parent=0 // loop_header_branch
    %15 = sbr.rel (%p13) target = $region8
  $region5: #{resnet3d_recognizer_forward.5} parent=0 // loop_body
    %s17 = ssub.s32 %s12, 1
    %s18 = ssub.s32 %s12, 2
    %s25 = sadd.s32 1, %s20
    %p26 = scmp.ge.s32.totalorder %s25, 1
    %s27 = scalar_select %p26, 0, %s25
    %s28 = sadd.s32 1, %s19
    %s29 = scalar_select %p26, %s28, %s19
    %p30 = scmp.ge.s32.totalorder %s29, 2
    %s31 = scalar_select %p30, 0, %s29
    %s32 = ssub.s32 %s19, %s31
    %s33 = ssub.s32 %s20, %s27
    %s34 = sor.u32 %s32, %s33
    %p35 = scmp.eq.s32.totalorder %s34, 0
    %s37 = sadd.s32 %s36, 1
    %s38 = scalar_select %p35, %s36, %s37
    %p41 = pneg %p35
    %p42 = scmp.eq.s32.totalorder %s12, 1
    %p43 = por %p41, %p42
    %p44 = scmp.ne.s32.totalorder %s36, %s39
    %p45 = scmp.eq.s32.totalorder %s12, 0
    %p46 = por %p44, %p45
    %p47 = scmp.ne.s32.totalorder %s36, %s39
    %p48 = scmp.eq.s32.totalorder %s17, 1
    %p49 = por %p47, %p48
    %p50 = scmp.ne.s32.totalorder %s39, %s40
    %p51 = scmp.eq.s32.totalorder %s17, 0
    %p52 = por %p50, %p51
    %p53 = scmp.ne.s32.totalorder %s39, %s40
    %p54 = scmp.eq.s32.totalorder %s18, 1
    %p55 = por %p53, %p54
    %p57 = scmp.ne.s32.totalorder %s40, %s56
    %p58 = scmp.eq.s32.totalorder %s18, 0
    %p59 = por %p57, %p58
    %s61 = sadd.s32 %s60, 1
    %p64 = scmp.eq.s32.totalorder %s12, 1
    %p65 = scmp.ne.s32.totalorder %s60, %s62
    %p66 = scmp.eq.s32.totalorder %s12, 0
    %p67 = por %p65, %p66
    %p68 = scmp.ne.s32.totalorder %s60, %s62
    %p69 = scmp.eq.s32.totalorder %s17, 1
    %p70 = por %p68, %p69
    %p71 = scmp.ne.s32.totalorder %s62, %s63
    %p72 = scmp.eq.s32.totalorder %s17, 0
    %p73 = por %p71, %p72
    %p74 = scmp.ne.s32.totalorder %s62, %s63
    %p75 = scmp.eq.s32.totalorder %s18, 1
    %p76 = por %p74, %p75
    %p78 = scmp.ne.s32.totalorder %s63, %s77
    %p79 = scmp.eq.s32.totalorder %s18, 0
    %p80 = por %p78, %p79
    %s82 = sadd.s32 %s81, 1
    %p85 = scmp.eq.s32.totalorder %s12, 1
    %p86 = scmp.ne.s32.totalorder %s81, %s83
    %p87 = scmp.eq.s32.totalorder %s12, 0
    %p88 = por %p86, %p87
    %p89 = scmp.ne.s32.totalorder %s81, %s83
    %p90 = scmp.eq.s32.totalorder %s17, 1
    %p91 = por %p89, %p90
    %p92 = scmp.ne.s32.totalorder %s83, %s84
    %p93 = scmp.eq.s32.totalorder %s17, 0
    %p94 = por %p92, %p93
    %p95 = scmp.ne.s32.totalorder %s83, %s84
    %p96 = scmp.eq.s32.totalorder %s18, 1
    %p97 = por %p95, %p96
    %p99 = scmp.ne.s32.totalorder %s84, %s98
    %p100 = scmp.eq.s32.totalorder %s18, 0
    %p101 = por %p99, %p100
    %s102 = ssub.s32 %s19, %s31
    %s103 = ssub.s32 %s20, %s27
    %s104 = sor.u32 %s102, %s103
    %p105 = scmp.eq.s32.totalorder %s104, 0
    %s107 = sadd.s32 %s106, 1
    %s108 = scalar_select %p105, %s106, %s107
    %p111 = pneg %p105
    %p112 = scmp.eq.s32.totalorder %s12, 1
    %p113 = por %p111, %p112
    %p114 = scmp.ne.s32.totalorder %s106, %s109
    %p115 = scmp.eq.s32.totalorder %s12, 0
    %p116 = por %p114, %p115
    %p117 = scmp.ne.s32.totalorder %s106, %s109
    %p118 = scmp.eq.s32.totalorder %s17, 1
    %p119 = por %p117, %p118
    %p120 = scmp.ne.s32.totalorder %s109, %s110
    %p121 = scmp.eq.s32.totalorder %s17, 0
    %p122 = por %p120, %p121
    %p123 = scmp.ne.s32.totalorder %s109, %s110
    %p124 = scmp.eq.s32.totalorder %s18, 1
    %p125 = por %p123, %p124
    %p127 = scmp.ne.s32.totalorder %s110, %s126
    %p128 = scmp.eq.s32.totalorder %s18, 0
    %p129 = por %p127, %p128
    %s131 = sadd.s32 %s130, 1
    %p134 = scmp.eq.s32.totalorder %s12, 1
    %p135 = scmp.ne.s32.totalorder %s130, %s132
    %p136 = scmp.eq.s32.totalorder %s12, 0
    %p137 = por %p135, %p136
    %p138 = scmp.ne.s32.totalorder %s130, %s132
    %p139 = scmp.eq.s32.totalorder %s17, 1
    %p140 = por %p138, %p139
    %p141 = scmp.ne.s32.totalorder %s132, %s133
    %p142 = scmp.eq.s32.totalorder %s17, 0
    %p143 = por %p141, %p142
    %p144 = scmp.ne.s32.totalorder %s132, %s133
    %p145 = scmp.eq.s32.totalorder %s18, 1
    %p146 = por %p144, %p145
    %p148 = scmp.ne.s32.totalorder %s133, %s147
    %p149 = scmp.eq.s32.totalorder %s18, 0
    %p150 = por %p148, %p149
    %s152 = sadd.s32 %s151, 1
    %p155 = scmp.eq.s32.totalorder %s12, 1
    %p156 = scmp.ne.s32.totalorder %s151, %s153
    %p157 = scmp.eq.s32.totalorder %s12, 0
    %p158 = por %p156, %p157
    %p159 = scmp.ne.s32.totalorder %s151, %s153
    %p160 = scmp.eq.s32.totalorder %s17, 1
    %p161 = por %p159, %p160
    %p162 = scmp.ne.s32.totalorder %s153, %s154
    %p163 = scmp.eq.s32.totalorder %s17, 0
    %p164 = por %p162, %p163
    %p165 = scmp.ne.s32.totalorder %s153, %s154
    %p166 = scmp.eq.s32.totalorder %s18, 1
    %p167 = por %p165, %p166
    %p169 = scmp.ne.s32.totalorder %s154, %s168
    %p170 = scmp.eq.s32.totalorder %s18, 0
    %p171 = por %p169, %p170
    %s173 = sadd.s32 %s172, 1
    %p176 = scmp.eq.s32.totalorder %s12, 1
    %p177 = scmp.ne.s32.totalorder %s172, %s174
    %p178 = scmp.eq.s32.totalorder %s12, 0
    %p179 = por %p177, %p178
    %p180 = scmp.ne.s32.totalorder %s172, %s174
    %p181 = scmp.eq.s32.totalorder %s17, 1
    %p182 = por %p180, %p181
    %p183 = scmp.ne.s32.totalorder %s174, %s175
    %p184 = scmp.eq.s32.totalorder %s17, 0
    %p185 = por %p183, %p184
    %p186 = scmp.ne.s32.totalorder %s174, %s175
    %p187 = scmp.eq.s32.totalorder %s18, 1
    %p188 = por %p186, %p187
    %p190 = scmp.ne.s32.totalorder %s175, %s189
    %p191 = scmp.eq.s32.totalorder %s18, 0
    %p192 = por %p190, %p191
    %p193 = scmp.le.s32.totalorder 1, %s12
    %p194 = scmp.lt.s32.totalorder %s12, 3
    %p195 = pnand %p193, %p194
    %p196 = pneg %p195
    // Predicated region
    $region9: #{resnet3d_recognizer_forward.5} parent=5 // pred_check
      _
    $region10: #{resnet3d_recognizer_forward.5} parent=5 // pred_check_branch
      %198 = sbr.rel (%p195) target = $region12
    $region11: #{resnet3d_recognizer_forward.5} parent=5 // pred_region
      %s199 = ssub.s32 %s12, 1
      // Predicated region
      $region13: #{resnet3d_recognizer_forward.5} parent=11 // pred_check
        %p200 = pneg %p73
      $region14: #{resnet3d_recognizer_forward.5} parent=11 // pred_check_branch
        %202 = sbr.rel (%p200) target = $region16
      $region15: #{resnet3d_recognizer_forward.5} parent=11 // pred_region
        _
      $region16: #{resnet3d_recognizer_forward.5} parent=11 // pred_fallthru
        _
      // Predicated region
      $region17: #{resnet3d_recognizer_forward.5} parent=11 // pred_check
        %p203 = pneg %p94
      $region18: #{resnet3d_recognizer_forward.5} parent=11 // pred_check_branch
        %205 = sbr.rel (%p203) target = $region20
      $region19: #{resnet3d_recognizer_forward.5} parent=11 // pred_region
        _
      $region20: #{resnet3d_recognizer_forward.5} parent=11 // pred_fallthru
        _
      // Predicated region
      $region21: #{resnet3d_recognizer_forward.5} parent=11 // pred_check
        %p206 = pneg %p143
      $region22: #{resnet3d_recognizer_forward.5} parent=11 // pred_check_branch
        %208 = sbr.rel (%p206) target = $region24
      $region23: #{resnet3d_recognizer_forward.5} parent=11 // pred_region
        _
      $region24: #{resnet3d_recognizer_forward.5} parent=11 // pred_fallthru
        _
      // Predicated region
      $region25: #{resnet3d_recognizer_forward.5} parent=11 // pred_check
        %p209 = pneg %p164
      $region26: #{resnet3d_recognizer_forward.5} parent=11 // pred_check_branch
        %211 = sbr.rel (%p209) target = $region28
      $region27: #{resnet3d_recognizer_forward.5} parent=11 // pred_region
        _
      $region28: #{resnet3d_recognizer_forward.5} parent=11 // pred_fallthru
        _
    $region12: #{resnet3d_recognizer_forward.5} parent=5 // pred_fallthru
      _
    %p212 = scmp.lt.s32.totalorder %s12, 2
    // Predicated region
    $region29: #{resnet3d_recognizer_forward.5} parent=5 // pred_check
      %p213 = pneg %p212
    $region30: #{resnet3d_recognizer_forward.5} parent=5 // pred_check_branch
      %215 = sbr.rel (%p213) target = $region32
    $region31: #{resnet3d_recognizer_forward.5} parent=5 // pred_region
      // Predicated region
      $region33: #{resnet3d_recognizer_forward.5} parent=31 // pred_check
        %p216 = pneg %p46
      $region34: #{resnet3d_recognizer_forward.5} parent=31 // pred_check_branch
        %218 = sbr.rel (%p216) target = $region36
      $region35: #{resnet3d_recognizer_forward.5} parent=31 // pred_region
        %s219 = smul.u32 64, %s20
        %p220 = scmp.lt.s32.totalorder %s19, 1
        %s221 = scalar_select %p220, %s19, 1
        %p222 = scmp.lt.s32.totalorder %s219, 63
        %s223 = scalar_select %p222, %s219, 63
        %s224 = smul.addr %s223, 4
        %s225 = smul.addr %s221, 256
        %s226 = sadd.s32 %s224, %s225
        %s227 = smul.addr %s226, 4
        %s228 = scalar_lea.vmem %s0, %s227
        %s229 = smul.u32 64, %s20
      $region36: #{resnet3d_recognizer_forward.5} parent=31 // pred_fallthru
        _
      // Predicated region
      $region37: #{resnet3d_recognizer_forward.5} parent=31 // pred_check
        %p230 = pneg %p116
      $region38: #{resnet3d_recognizer_forward.5} parent=31 // pred_check_branch
        %232 = sbr.rel (%p230) target = $region40
      $region39: #{resnet3d_recognizer_forward.5} parent=31 // pred_region
        %s233 = smul.u32 64, %s20
        %p234 = scmp.lt.s32.totalorder %s19, 1
        %s235 = scalar_select %p234, %s19, 1
        %p236 = scmp.lt.s32.totalorder %s233, 63
        %s237 = scalar_select %p236, %s233, 63
        %s238 = smul.addr %s235, 64
        %s239 = sadd.s32 %s237, %s238
        %s240 = smul.addr %s239, 4
        %s241 = scalar_lea.vmem %s3, %s240
        %s242 = smul.u32 64, %s20
      $region40: #{resnet3d_recognizer_forward.5} parent=31 // pred_fallthru
        _
    $region32: #{resnet3d_recognizer_forward.5} parent=5 // pred_fallthru
      _
    %p243 = scmp.le.s32.totalorder 1, %s12
    %p244 = scmp.lt.s32.totalorder %s12, 3
    %p245 = pnand %p243, %p244
    %p246 = pneg %p245
    // Predicated region
    $region41: #{resnet3d_recognizer_forward.5} parent=5 // pred_check
      _
    $region42: #{resnet3d_recognizer_forward.5} parent=5 // pred_check_branch
      %248 = sbr.rel (%p245) target = $region44
    $region43: #{resnet3d_recognizer_forward.5} parent=5 // pred_region
      %s249 = ssub.s32 %s12, 1
      %s250 = smul.u32 64, %s22
      %p251 = scmp.lt.s32.totalorder %s21, 1
      %s252 = scalar_select %p251, %s21, 1
      %p253 = scmp.lt.s32.totalorder %s250, 63
      %s254 = scalar_select %p253, %s250, 63
      %s255 = smul.addr %s254, 4
      %s256 = smul.addr %s252, 256
      %s257 = sadd.s32 %s255, %s256
      %s258 = smul.addr %s257, 4
      %s259 = scalar_lea.vmem %s0, %s258
      %p260 = pneg %p52
      %p261 = pneg %p49
      %p262 = pneg %p73
      %p263 = pneg %p70
      %p264 = pneg %p94
      %p265 = pneg %p91
      %s266 = smul.u32 64, %s22
      %p267 = scmp.lt.s32.totalorder %s21, 1
      %s268 = scalar_select %p267, %s21, 1
      %p269 = scmp.lt.s32.totalorder %s266, 63
      %s270 = scalar_select %p269, %s266, 63
      %s271 = smul.addr %s268, 64
      %s272 = sadd.s32 %s270, %s271
      %s273 = smul.addr %s272, 4
      %s274 = scalar_lea.vmem %s3, %s273
      %p275 = pneg %p122
      %p276 = pneg %p119
      %p277 = pneg %p143
      %p278 = pneg %p140
      %p279 = pneg %p164
      %p280 = pneg %p161
      %p281 = pneg %p185
      %p282 = pneg %p182
      %s283 = smul.u32 64, %s22
      %p284 = scmp.lt.s32.totalorder %s21, 1
      %s285 = scalar_select %p284, %s21, 1
      %p286 = scmp.lt.s32.totalorder %s283, 63
      %s287 = scalar_select %p286, %s283, 63
      %s288 = smul.addr %s287, 4
      %s289 = smul.addr %s285, 256
      %s290 = sadd.s32 %s288, %s289
      %s291 = smul.addr %s290, 4
      %s292 = scalar_lea.vmem %s0, %s291
      %s293 = smul.u32 64, %s22
      %s294 = smul.u32 64, %s22
      %p295 = scmp.lt.s32.totalorder %s21, 1
      %s296 = scalar_select %p295, %s21, 1
      %p297 = scmp.lt.s32.totalorder %s294, 63
      %s298 = scalar_select %p297, %s294, 63
      %s299 = smul.addr %s296, 64
      %s300 = sadd.s32 %s298, %s299
      %s301 = smul.addr %s300, 4
      %s302 = scalar_lea.vmem %s3, %s301
      %s303 = smul.u32 64, %s22
      %p304 = scmp.eq.s32.totalorder %s21, 0
      %p305 = scmp.eq.s32.totalorder %s22, 0
      %p306 = pnand %p304, %p305
      %p307 = pneg %p306
      // Predicated region
      $region45: #{resnet3d_recognizer_forward.5} parent=43 // pred_check
        _
      $region46: #{resnet3d_recognizer_forward.5} parent=43 // pred_check_branch
        %309 = sbr.rel (%p306) target = $region48
      $region47: #{resnet3d_recognizer_forward.5} parent=43 // pred_region
        %310 = vst [vmem:[#allocation2] sm:$0xff] 0.0
      $region48: #{resnet3d_recognizer_forward.5} parent=43 // pred_fallthru
        _
      %v311 = vld [vmem:[%s292] sm:$0xff]
      %v312 = vld [vmem:[%s292 + $0x8] sm:$0xff]
      %v313 = vld [vmem:[%s292 + $0x10] sm:$0xff]
      %v314 = vld [vmem:[%s292 + $0x18] sm:$0xff]
      %v315 = vld [vmem:[%s292 + $0x20] sm:$0xff]
      %v316 = vld [vmem:[%s292 + $0x28] sm:$0xff]
      %v317 = vld [vmem:[%s292 + $0x30] sm:$0xff]
      %v318 = vld [vmem:[%s292 + $0x38] sm:$0xff]
      %v319 = vld [vmem:[%s292 + $0x40] sm:$0xff]
      %v320 = vld [vmem:[%s292 + $0x48] sm:$0xff]
      %v321 = vld [vmem:[%s292 + $0x50] sm:$0xff]
      %v322 = vld [vmem:[%s292 + $0x58] sm:$0xff]
      %v323 = vld [vmem:[%s292 + $0x60] sm:$0xff]
      %v324 = vld [vmem:[%s292 + $0x68] sm:$0xff]
      %v325 = vld [vmem:[%s292 + $0x70] sm:$0xff]
      %v326 = vld [vmem:[%s292 + $0x78] sm:$0xff]
      %v327 = vld [vmem:[%s292 + $0x80] sm:$0xff]
      %v328 = vld [vmem:[%s292 + $0x88] sm:$0xff]
      %v329 = vld [vmem:[%s292 + $0x90] sm:$0xff]
      %v330 = vld [vmem:[%s292 + $0x98] sm:$0xff]
      %v331 = vld [vmem:[%s292 + $0xa0] sm:$0xff]
      %v332 = vld [vmem:[%s292 + $0xa8] sm:$0xff]
      %v333 = vld [vmem:[%s292 + $0xb0] sm:$0xff]
      %v334 = vld [vmem:[%s292 + $0xb8] sm:$0xff]
      %v335 = vld [vmem:[%s292 + $0xc0] sm:$0xff]
      %v336 = vld [vmem:[%s292 + $0xc8] sm:$0xff]
      %v337 = vld [vmem:[%s292 + $0xd0] sm:$0xff]
      %v338 = vld [vmem:[%s292 + $0xd8] sm:$0xff]
      %v339 = vld [vmem:[%s292 + $0xe0] sm:$0xff]
      %v340 = vld [vmem:[%s292 + $0xe8] sm:$0xff]
      %v341 = vld [vmem:[%s292 + $0xf0] sm:$0xff]
      %v342 = vld [vmem:[%s292 + $0xf8] sm:$0xff]
      %v343 = vld [vmem:[%s292 + $0x100] sm:$0xff]
      %v344 = vld [vmem:[%s292 + $0x108] sm:$0xff]
      %v345 = vld [vmem:[%s292 + $0x110] sm:$0xff]
      %v346 = vld [vmem:[%s292 + $0x118] sm:$0xff]
      %v347 = vld [vmem:[%s292 + $0x120] sm:$0xff]
      %v348 = vld [vmem:[%s292 + $0x128] sm:$0xff]
      %v349 = vld [vmem:[%s292 + $0x130] sm:$0xff]
      %v350 = vld [vmem:[%s292 + $0x138] sm:$0xff]
      %v351 = vld [vmem:[%s292 + $0x140] sm:$0xff]
      %v352 = vld [vmem:[%s292 + $0x148] sm:$0xff]
      %v353 = vld [vmem:[%s292 + $0x150] sm:$0xff]
      %v354 = vld [vmem:[%s292 + $0x158] sm:$0xff]
      %v355 = vld [vmem:[%s292 + $0x160] sm:$0xff]
      %v356 = vld [vmem:[%s292 + $0x168] sm:$0xff]
      %v357 = vld [vmem:[%s292 + $0x170] sm:$0xff]
      %v358 = vld [vmem:[%s292 + $0x178] sm:$0xff]
      %v359 = vld [vmem:[%s292 + $0x180] sm:$0xff]
      %v360 = vld [vmem:[%s292 + $0x188] sm:$0xff]
      %v361 = vld [vmem:[%s292 + $0x190] sm:$0xff]
      %v362 = vld [vmem:[%s292 + $0x198] sm:$0xff]
      %v363 = vld [vmem:[%s292 + $0x1a0] sm:$0xff]
      %v364 = vld [vmem:[%s292 + $0x1a8] sm:$0xff]
      %v365 = vld [vmem:[%s292 + $0x1b0] sm:$0xff]
      %v366 = vld [vmem:[%s292 + $0x1b8] sm:$0xff]
      %v367 = vld [vmem:[%s292 + $0x1c0] sm:$0xff]
      %v368 = vld [vmem:[%s292 + $0x1c8] sm:$0xff]
      %v369 = vld [vmem:[%s292 + $0x1d0] sm:$0xff]
      %v370 = vld [vmem:[%s292 + $0x1d8] sm:$0xff]
      %v371 = vld [vmem:[%s292 + $0x1e0] sm:$0xff]
      %v372 = vld [vmem:[%s292 + $0x1e8] sm:$0xff]
      %v373 = vld [vmem:[%s292 + $0x1f0] sm:$0xff]
      %v374 = vld [vmem:[%s292 + $0x1f8] sm:$0xff]
      %v375 = vld [vmem:[%s292 + $0x200] sm:$0xff]
      %v376 = vld [vmem:[%s292 + $0x208] sm:$0xff]
      %v377 = vld [vmem:[%s292 + $0x210] sm:$0xff]
      %v378 = vld [vmem:[%s292 + $0x218] sm:$0xff]
      %v379 = vld [vmem:[%s292 + $0x220] sm:$0xff]
      %v380 = vld [vmem:[%s292 + $0x228] sm:$0xff]
      %v381 = vld [vmem:[%s292 + $0x230] sm:$0xff]
      %v382 = vld [vmem:[%s292 + $0x238] sm:$0xff]
      %v383 = vld [vmem:[%s292 + $0x240] sm:$0xff]
      %v384 = vld [vmem:[%s292 + $0x248] sm:$0xff]
      %v385 = vld [vmem:[%s292 + $0x250] sm:$0xff]
      %v386 = vld [vmem:[%s292 + $0x258] sm:$0xff]
      %v387 = vld [vmem:[%s292 + $0x260] sm:$0xff]
      %v388 = vld [vmem:[%s292 + $0x268] sm:$0xff]
      %v389 = vld [vmem:[%s292 + $0x270] sm:$0xff]
      %v390 = vld [vmem:[%s292 + $0x278] sm:$0xff]
      %v391 = vld [vmem:[%s292 + $0x280] sm:$0xff]
      %v392 = vld [vmem:[%s292 + $0x288] sm:$0xff]
      %v393 = vld [vmem:[%s292 + $0x290] sm:$0xff]
      %v394 = vld [vmem:[%s292 + $0x298] sm:$0xff]
      %v395 = vld [vmem:[%s292 + $0x2a0] sm:$0xff]
      %v396 = vld [vmem:[%s292 + $0x2a8] sm:$0xff]
      %v397 = vld [vmem:[%s292 + $0x2b0] sm:$0xff]
      %v398 = vld [vmem:[%s292 + $0x2b8] sm:$0xff]
      %v399 = vld [vmem:[%s292 + $0x2c0] sm:$0xff]
      %v400 = vld [vmem:[%s292 + $0x2c8] sm:$0xff]
      %v401 = vld [vmem:[%s292 + $0x2d0] sm:$0xff]
      %v402 = vld [vmem:[%s292 + $0x2d8] sm:$0xff]
      %v403 = vld [vmem:[%s292 + $0x2e0] sm:$0xff]
      %v404 = vld [vmem:[%s292 + $0x2e8] sm:$0xff]
      %v405 = vld [vmem:[%s292 + $0x2f0] sm:$0xff]
      %v406 = vld [vmem:[%s292 + $0x2f8] sm:$0xff]
      %v407 = vld [vmem:[%s292 + $0x300] sm:$0xff]
      %v408 = vld [vmem:[%s292 + $0x308] sm:$0xff]
      %v409 = vld [vmem:[%s292 + $0x310] sm:$0xff]
      %v410 = vld [vmem:[%s292 + $0x318] sm:$0xff]
      %v411 = vld [vmem:[%s292 + $0x320] sm:$0xff]
      %v412 = vld [vmem:[%s292 + $0x328] sm:$0xff]
      %v413 = vld [vmem:[%s292 + $0x330] sm:$0xff]
      %v414 = vld [vmem:[%s292 + $0x338] sm:$0xff]
      %v415 = vld [vmem:[%s292 + $0x340] sm:$0xff]
      %v416 = vld [vmem:[%s292 + $0x348] sm:$0xff]
      %v417 = vld [vmem:[%s292 + $0x350] sm:$0xff]
      %v418 = vld [vmem:[%s292 + $0x358] sm:$0xff]
      %v419 = vld [vmem:[%s292 + $0x360] sm:$0xff]
      %v420 = vld [vmem:[%s292 + $0x368] sm:$0xff]
      %v421 = vld [vmem:[%s292 + $0x370] sm:$0xff]
      %v422 = vld [vmem:[%s292 + $0x378] sm:$0xff]
      %v423 = vld [vmem:[%s292 + $0x380] sm:$0xff]
      %v424 = vld [vmem:[%s292 + $0x388] sm:$0xff]
      %v425 = vld [vmem:[%s292 + $0x390] sm:$0xff]
      %v426 = vld [vmem:[%s292 + $0x398] sm:$0xff]
      %v427 = vld [vmem:[%s292 + $0x3a0] sm:$0xff]
      %v428 = vld [vmem:[%s292 + $0x3a8] sm:$0xff]
      %v429 = vld [vmem:[%s292 + $0x3b0] sm:$0xff]
      %v430 = vld [vmem:[%s292 + $0x3b8] sm:$0xff]
      %v431 = vld [vmem:[%s292 + $0x3c0] sm:$0xff]
      %v432 = vld [vmem:[%s292 + $0x3c8] sm:$0xff]
      %v433 = vld [vmem:[%s292 + $0x3d0] sm:$0xff]
      %v434 = vld [vmem:[%s292 + $0x3d8] sm:$0xff]
      %v435 = vld [vmem:[%s292 + $0x3e0] sm:$0xff]
      %v436 = vld [vmem:[%s292 + $0x3e8] sm:$0xff]
      %v437 = vld [vmem:[%s292 + $0x3f0] sm:$0xff]
      %v438 = vld [vmem:[%s292 + $0x3f8] sm:$0xff]
      %v439 = vld [vmem:[%s1] sm:$0xf]
      %v440 = vld [vmem:[%s1 + $0x4] sm:$0xf]
      %v441 = vld [vmem:[%s1 + $0x8] sm:$0xf]
      %v442 = vld [vmem:[%s1 + $0xc] sm:$0xf]
      %v443 = vld [vmem:[%s1 + $0x10] sm:$0xf]
      %v444 = vld [vmem:[%s1 + $0x14] sm:$0xf]
      %v445 = vld [vmem:[%s1 + $0x18] sm:$0xf]
      %v446 = vld [vmem:[%s1 + $0x1c] sm:$0xf]
      %v447 = vld [vmem:[%s1 + $0x20] sm:$0xf]
      %v448 = vld [vmem:[%s1 + $0x24] sm:$0xf]
      %v449 = vld [vmem:[%s1 + $0x28] sm:$0xf]
      %v450 = vld [vmem:[%s1 + $0x2c] sm:$0xf]
      %v451 = vld [vmem:[%s1 + $0x30] sm:$0xf]
      %v452 = vld [vmem:[%s1 + $0x34] sm:$0xf]
      %v453 = vld [vmem:[%s1 + $0x38] sm:$0xf]
      %v454 = vld [vmem:[%s1 + $0x3c] sm:$0xf]
      %v455 = vld [vmem:[%s1 + $0x40] sm:$0xf]
      %v456 = vld [vmem:[%s1 + $0x44] sm:$0xf]
      %v457 = vld [vmem:[%s1 + $0x48] sm:$0xf]
      %v458 = vld [vmem:[%s1 + $0x4c] sm:$0xf]
      %v459 = vld [vmem:[%s1 + $0x50] sm:$0xf]
      %v460 = vld [vmem:[%s1 + $0x54] sm:$0xf]
      %v461 = vld [vmem:[%s1 + $0x58] sm:$0xf]
      %v462 = vld [vmem:[%s1 + $0x5c] sm:$0xf]
      %v463 = vld [vmem:[%s1 + $0x60] sm:$0xf]
      %v464 = vld [vmem:[%s1 + $0x64] sm:$0xf]
      %v465 = vld [vmem:[%s1 + $0x68] sm:$0xf]
      %v466 = vld [vmem:[%s1 + $0x6c] sm:$0xf]
      %v467 = vld [vmem:[%s1 + $0x70] sm:$0xf]
      %v468 = vld [vmem:[%s1 + $0x74] sm:$0xf]
      %v469 = vld [vmem:[%s1 + $0x78] sm:$0xf]
      %v470 = vld [vmem:[%s1 + $0x7c] sm:$0xf]
      %v471 = vld [vmem:[%s1 + $0x80] sm:$0xf]
      %v472 = vld [vmem:[%s1 + $0x84] sm:$0xf]
      %v473 = vld [vmem:[%s1 + $0x88] sm:$0xf]
      %v474 = vld [vmem:[%s1 + $0x8c] sm:$0xf]
      %v475 = vld [vmem:[%s1 + $0x90] sm:$0xf]
      %v476 = vld [vmem:[%s1 + $0x94] sm:$0xf]
      %v477 = vld [vmem:[%s1 + $0x98] sm:$0xf]
      %v478 = vld [vmem:[%s1 + $0x9c] sm:$0xf]
      %v479 = vld [vmem:[%s1 + $0xa0] sm:$0xf]
      %v480 = vld [vmem:[%s1 + $0xa4] sm:$0xf]
      %v481 = vld [vmem:[%s1 + $0xa8] sm:$0xf]
      %v482 = vld [vmem:[%s1 + $0xac] sm:$0xf]
      %v483 = vld [vmem:[%s1 + $0xb0] sm:$0xf]
      %v484 = vld [vmem:[%s1 + $0xb4] sm:$0xf]
      %v485 = vld [vmem:[%s1 + $0xb8] sm:$0xf]
      %v486 = vld [vmem:[%s1 + $0xbc] sm:$0xf]
      %v487 = vld [vmem:[%s1 + $0xc0] sm:$0xf]
      %v488 = vld [vmem:[%s1 + $0xc4] sm:$0xf]
      %v489 = vld [vmem:[%s1 + $0xc8] sm:$0xf]
      %v490 = vld [vmem:[%s1 + $0xcc] sm:$0xf]
      %v491 = vld [vmem:[%s1 + $0xd0] sm:$0xf]
      %v492 = vld [vmem:[%s1 + $0xd4] sm:$0xf]
      %v493 = vld [vmem:[%s1 + $0xd8] sm:$0xf]
      %v494 = vld [vmem:[%s1 + $0xdc] sm:$0xf]
      %v495 = vld [vmem:[%s1 + $0xe0] sm:$0xf]
      %v496 = vld [vmem:[%s1 + $0xe4] sm:$0xf]
      %v497 = vld [vmem:[%s1 + $0xe8] sm:$0xf]
      %v498 = vld [vmem:[%s1 + $0xec] sm:$0xf]
      %v499 = vld [vmem:[%s1 + $0xf0] sm:$0xf]
      %v500 = vld [vmem:[%s1 + $0xf4] sm:$0xf]
      %v501 = vld [vmem:[%s1 + $0xf8] sm:$0xf]
      %v502 = vld [vmem:[%s1 + $0xfc] sm:$0xf]
      %v503 = vld [vmem:[%s2] sm:$0x1]
      %v505 = vperm.slane %v503, 0
      %v635 = vunpack.c.l.b16 %v311
      %v636 = vunpack.c.h.b16 %v311
      %v637 = vunpack.c.l.b16 %v312
      %v638 = vunpack.c.h.b16 %v312
      %v639 = vunpack.c.l.b16 %v313
      %v640 = vunpack.c.h.b16 %v313
      %v641 = vunpack.c.l.b16 %v314
      %v642 = vunpack.c.h.b16 %v314
      %v643 = vunpack.c.l.b16 %v315
      %v644 = vunpack.c.h.b16 %v315
      %v645 = vunpack.c.l.b16 %v316
      %v646 = vunpack.c.h.b16 %v316
      %v647 = vunpack.c.l.b16 %v317
      %v648 = vunpack.c.h.b16 %v317
      %v649 = vunpack.c.l.b16 %v318
      %v650 = vunpack.c.h.b16 %v318
      %v651 = vunpack.c.l.b16 %v319
      %v652 = vunpack.c.h.b16 %v319
      %v653 = vunpack.c.l.b16 %v320
      %v654 = vunpack.c.h.b16 %v320
      %v655 = vunpack.c.l.b16 %v321
      %v656 = vunpack.c.h.b16 %v321
      %v657 = vunpack.c.l.b16 %v322
      %v658 = vunpack.c.h.b16 %v322
      %v659 = vunpack.c.l.b16 %v323
      %v660 = vunpack.c.h.b16 %v323
      %v661 = vunpack.c.l.b16 %v324
      %v662 = vunpack.c.h.b16 %v324
      %v663 = vunpack.c.l.b16 %v325
      %v664 = vunpack.c.h.b16 %v325
      %v665 = vunpack.c.l.b16 %v326
      %v666 = vunpack.c.h.b16 %v326
      %v667 = vunpack.c.l.b16 %v327
      %v668 = vunpack.c.h.b16 %v327
      %v669 = vunpack.c.l.b16 %v328
      %v670 = vunpack.c.h.b16 %v328
      %v671 = vunpack.c.l.b16 %v329
      %v672 = vunpack.c.h.b16 %v329
      %v673 = vunpack.c.l.b16 %v330
      %v674 = vunpack.c.h.b16 %v330
      %v675 = vunpack.c.l.b16 %v331
      %v676 = vunpack.c.h.b16 %v331
      %v677 = vunpack.c.l.b16 %v332
      %v678 = vunpack.c.h.b16 %v332
      %v679 = vunpack.c.l.b16 %v333
      %v680 = vunpack.c.h.b16 %v333
      %v681 = vunpack.c.l.b16 %v334
      %v682 = vunpack.c.h.b16 %v334
      %v683 = vunpack.c.l.b16 %v335
      %v684 = vunpack.c.h.b16 %v335
      %v685 = vunpack.c.l.b16 %v336
      %v686 = vunpack.c.h.b16 %v336
      %v687 = vunpack.c.l.b16 %v337
      %v688 = vunpack.c.h.b16 %v337
      %v689 = vunpack.c.l.b16 %v338
      %v690 = vunpack.c.h.b16 %v338
      %v691 = vunpack.c.l.b16 %v339
      %v692 = vunpack.c.h.b16 %v339
      %v693 = vunpack.c.l.b16 %v340
      %v694 = vunpack.c.h.b16 %v340
      %v695 = vunpack.c.l.b16 %v341
      %v696 = vunpack.c.h.b16 %v341
      %v697 = vunpack.c.l.b16 %v342
      %v698 = vunpack.c.h.b16 %v342
      %v699 = vunpack.c.l.b16 %v343
      %v700 = vunpack.c.h.b16 %v343
      %v701 = vunpack.c.l.b16 %v344
      %v702 = vunpack.c.h.b16 %v344
      %v703 = vunpack.c.l.b16 %v345
      %v704 = vunpack.c.h.b16 %v345
      %v705 = vunpack.c.l.b16 %v346
      %v706 = vunpack.c.h.b16 %v346
      %v707 = vunpack.c.l.b16 %v347
      %v708 = vunpack.c.h.b16 %v347
      %v709 = vunpack.c.l.b16 %v348
      %v710 = vunpack.c.h.b16 %v348
      %v711 = vunpack.c.l.b16 %v349
      %v712 = vunpack.c.h.b16 %v349
      %v713 = vunpack.c.l.b16 %v350
      %v714 = vunpack.c.h.b16 %v350
      %v715 = vunpack.c.l.b16 %v351
      %v716 = vunpack.c.h.b16 %v351
      %v717 = vunpack.c.l.b16 %v352
      %v718 = vunpack.c.h.b16 %v352
      %v719 = vunpack.c.l.b16 %v353
      %v720 = vunpack.c.h.b16 %v353
      %v721 = vunpack.c.l.b16 %v354
      %v722 = vunpack.c.h.b16 %v354
      %v723 = vunpack.c.l.b16 %v355
      %v724 = vunpack.c.h.b16 %v355
      %v725 = vunpack.c.l.b16 %v356
      %v726 = vunpack.c.h.b16 %v356
      %v727 = vunpack.c.l.b16 %v357
      %v728 = vunpack.c.h.b16 %v357
      %v729 = vunpack.c.l.b16 %v358
      %v730 = vunpack.c.h.b16 %v358
      %v731 = vunpack.c.l.b16 %v359
      %v732 = vunpack.c.h.b16 %v359
      %v733 = vunpack.c.l.b16 %v360
      %v734 = vunpack.c.h.b16 %v360
      %v735 = vunpack.c.l.b16 %v361
      %v736 = vunpack.c.h.b16 %v361
      %v737 = vunpack.c.l.b16 %v362
      %v738 = vunpack.c.h.b16 %v362
      %v739 = vunpack.c.l.b16 %v363
      %v740 = vunpack.c.h.b16 %v363
      %v741 = vunpack.c.l.b16 %v364
      %v742 = vunpack.c.h.b16 %v364
      %v743 = vunpack.c.l.b16 %v365
      %v744 = vunpack.c.h.b16 %v365
      %v745 = vunpack.c.l.b16 %v366
      %v746 = vunpack.c.h.b16 %v366
      %v747 = vunpack.c.l.b16 %v367
      %v748 = vunpack.c.h.b16 %v367
      %v749 = vunpack.c.l.b16 %v368
      %v750 = vunpack.c.h.b16 %v368
      %v751 = vunpack.c.l.b16 %v369
      %v752 = vunpack.c.h.b16 %v369
      %v753 = vunpack.c.l.b16 %v370
      %v754 = vunpack.c.h.b16 %v370
      %v755 = vunpack.c.l.b16 %v371
      %v756 = vunpack.c.h.b16 %v371
      %v757 = vunpack.c.l.b16 %v372
      %v758 = vunpack.c.h.b16 %v372
      %v759 = vunpack.c.l.b16 %v373
      %v760 = vunpack.c.h.b16 %v373
      %v761 = vunpack.c.l.b16 %v374
      %v762 = vunpack.c.h.b16 %v374
      %v763 = vunpack.c.l.b16 %v375
      %v764 = vunpack.c.h.b16 %v375
      %v765 = vunpack.c.l.b16 %v376
      %v766 = vunpack.c.h.b16 %v376
      %v767 = vunpack.c.l.b16 %v377
      %v768 = vunpack.c.h.b16 %v377
      %v769 = vunpack.c.l.b16 %v378
      %v770 = vunpack.c.h.b16 %v378
      %v771 = vunpack.c.l.b16 %v379
      %v772 = vunpack.c.h.b16 %v379
      %v773 = vunpack.c.l.b16 %v380
      %v774 = vunpack.c.h.b16 %v380
      %v775 = vunpack.c.l.b16 %v381
      %v776 = vunpack.c.h.b16 %v381
      %v777 = vunpack.c.l.b16 %v382
      %v778 = vunpack.c.h.b16 %v382
      %v779 = vunpack.c.l.b16 %v383
      %v780 = vunpack.c.h.b16 %v383
      %v781 = vunpack.c.l.b16 %v384
      %v782 = vunpack.c.h.b16 %v384
      %v783 = vunpack.c.l.b16 %v385
      %v784 = vunpack.c.h.b16 %v385
      %v785 = vunpack.c.l.b16 %v386
      %v786 = vunpack.c.h.b16 %v386
      %v787 = vunpack.c.l.b16 %v387
      %v788 = vunpack.c.h.b16 %v387
      %v789 = vunpack.c.l.b16 %v388
      %v790 = vunpack.c.h.b16 %v388
      %v791 = vunpack.c.l.b16 %v389
      %v792 = vunpack.c.h.b16 %v389
      %v793 = vunpack.c.l.b16 %v390
      %v794 = vunpack.c.h.b16 %v390
      %v795 = vunpack.c.l.b16 %v391
      %v796 = vunpack.c.h.b16 %v391
      %v797 = vunpack.c.l.b16 %v392
      %v798 = vunpack.c.h.b16 %v392
      %v799 = vunpack.c.l.b16 %v393
      %v800 = vunpack.c.h.b16 %v393
      %v801 = vunpack.c.l.b16 %v394
      %v802 = vunpack.c.h.b16 %v394
      %v803 = vunpack.c.l.b16 %v395
      %v804 = vunpack.c.h.b16 %v395
      %v805 = vunpack.c.l.b16 %v396
      %v806 = vunpack.c.h.b16 %v396
      %v807 = vunpack.c.l.b16 %v397
      %v808 = vunpack.c.h.b16 %v397
      %v809 = vunpack.c.l.b16 %v398
      %v810 = vunpack.c.h.b16 %v398
      %v811 = vunpack.c.l.b16 %v399
      %v812 = vunpack.c.h.b16 %v399
      %v813 = vunpack.c.l.b16 %v400
      %v814 = vunpack.c.h.b16 %v400
      %v815 = vunpack.c.l.b16 %v401
      %v816 = vunpack.c.h.b16 %v401
      %v817 = vunpack.c.l.b16 %v402
      %v818 = vunpack.c.h.b16 %v402
      %v819 = vunpack.c.l.b16 %v403
      %v820 = vunpack.c.h.b16 %v403
      %v821 = vunpack.c.l.b16 %v404
      %v822 = vunpack.c.h.b16 %v404
      %v823 = vunpack.c.l.b16 %v405
      %v824 = vunpack.c.h.b16 %v405
      %v825 = vunpack.c.l.b16 %v406
      %v826 = vunpack.c.h.b16 %v406
      %v827 = vunpack.c.l.b16 %v407
      %v828 = vunpack.c.h.b16 %v407
      %v829 = vunpack.c.l.b16 %v408
      %v830 = vunpack.c.h.b16 %v408
      %v831 = vunpack.c.l.b16 %v409
      %v832 = vunpack.c.h.b16 %v409
      %v833 = vunpack.c.l.b16 %v410
      %v834 = vunpack.c.h.b16 %v410
      %v835 = vunpack.c.l.b16 %v411
      %v836 = vunpack.c.h.b16 %v411
      %v837 = vunpack.c.l.b16 %v412
      %v838 = vunpack.c.h.b16 %v412
      %v839 = vunpack.c.l.b16 %v413
      %v840 = vunpack.c.h.b16 %v413
      %v841 = vunpack.c.l.b16 %v414
      %v842 = vunpack.c.h.b16 %v414
      %v843 = vunpack.c.l.b16 %v415
      %v844 = vunpack.c.h.b16 %v415
      %v845 = vunpack.c.l.b16 %v416
      %v846 = vunpack.c.h.b16 %v416
      %v847 = vunpack.c.l.b16 %v417
      %v848 = vunpack.c.h.b16 %v417
      %v849 = vunpack.c.l.b16 %v418
      %v850 = vunpack.c.h.b16 %v418
      %v851 = vunpack.c.l.b16 %v419
      %v852 = vunpack.c.h.b16 %v419
      %v853 = vunpack.c.l.b16 %v420
      %v854 = vunpack.c.h.b16 %v420
      %v855 = vunpack.c.l.b16 %v421
      %v856 = vunpack.c.h.b16 %v421
      %v857 = vunpack.c.l.b16 %v422
      %v858 = vunpack.c.h.b16 %v422
      %v859 = vunpack.c.l.b16 %v423
      %v860 = vunpack.c.h.b16 %v423
      %v861 = vunpack.c.l.b16 %v424
      %v862 = vunpack.c.h.b16 %v424
      %v863 = vunpack.c.l.b16 %v425
      %v864 = vunpack.c.h.b16 %v425
      %v865 = vunpack.c.l.b16 %v426
      %v866 = vunpack.c.h.b16 %v426
      %v867 = vunpack.c.l.b16 %v427
      %v868 = vunpack.c.h.b16 %v427
      %v869 = vunpack.c.l.b16 %v428
      %v870 = vunpack.c.h.b16 %v428
      %v871 = vunpack.c.l.b16 %v429
      %v872 = vunpack.c.h.b16 %v429
      %v873 = vunpack.c.l.b16 %v430
      %v874 = vunpack.c.h.b16 %v430
      %v875 = vunpack.c.l.b16 %v431
      %v876 = vunpack.c.h.b16 %v431
      %v877 = vunpack.c.l.b16 %v432
      %v878 = vunpack.c.h.b16 %v432
      %v879 = vunpack.c.l.b16 %v433
      %v880 = vunpack.c.h.b16 %v433
      %v881 = vunpack.c.l.b16 %v434
      %v882 = vunpack.c.h.b16 %v434
      %v883 = vunpack.c.l.b16 %v435
      %v884 = vunpack.c.h.b16 %v435
      %v885 = vunpack.c.l.b16 %v436
      %v886 = vunpack.c.h.b16 %v436
      %v887 = vunpack.c.l.b16 %v437
      %v888 = vunpack.c.h.b16 %v437
      %v889 = vunpack.c.l.b16 %v438
      %v890 = vunpack.c.h.b16 %v438
      %v891 = vpack.c.b16 %v639, %v635
      %v892 = vpack.c.b16 %v640, %v636
      %v893 = vpack.c.b16 %v641, %v637
      %v894 = vpack.c.b16 %v642, %v638
      %v895 = vpack.c.b16 %v647, %v643
      %v896 = vpack.c.b16 %v648, %v644
      %v897 = vpack.c.b16 %v649, %v645
      %v898 = vpack.c.b16 %v650, %v646
      %v899 = vpack.c.b16 %v655, %v651
      %v900 = vpack.c.b16 %v656, %v652
      %v901 = vpack.c.b16 %v657, %v653
      %v902 = vpack.c.b16 %v658, %v654
      %v903 = vpack.c.b16 %v663, %v659
      %v904 = vpack.c.b16 %v664, %v660
      %v905 = vpack.c.b16 %v665, %v661
      %v906 = vpack.c.b16 %v666, %v662
      %v907 = vpack.c.b16 %v671, %v667
      %v908 = vpack.c.b16 %v672, %v668
      %v909 = vpack.c.b16 %v673, %v669
      %v910 = vpack.c.b16 %v674, %v670
      %v911 = vpack.c.b16 %v679, %v675
      %v912 = vpack.c.b16 %v680, %v676
      %v913 = vpack.c.b16 %v681, %v677
      %v914 = vpack.c.b16 %v682, %v678
      %v915 = vpack.c.b16 %v687, %v683
      %v916 = vpack.c.b16 %v688, %v684
      %v917 = vpack.c.b16 %v689, %v685
      %v918 = vpack.c.b16 %v690, %v686
      %v919 = vpack.c.b16 %v695, %v691
      %v920 = vpack.c.b16 %v696, %v692
      %v921 = vpack.c.b16 %v697, %v693
      %v922 = vpack.c.b16 %v698, %v694
      %v923 = vpack.c.b16 %v703, %v699
      %v924 = vpack.c.b16 %v704, %v700
      %v925 = vpack.c.b16 %v705, %v701
      %v926 = vpack.c.b16 %v706, %v702
      %v927 = vpack.c.b16 %v711, %v707
      %v928 = vpack.c.b16 %v712, %v708
      %v929 = vpack.c.b16 %v713, %v709
      %v930 = vpack.c.b16 %v714, %v710
      %v931 = vpack.c.b16 %v719, %v715
      %v932 = vpack.c.b16 %v720, %v716
      %v933 = vpack.c.b16 %v721, %v717
      %v934 = vpack.c.b16 %v722, %v718
      %v935 = vpack.c.b16 %v727, %v723
      %v936 = vpack.c.b16 %v728, %v724
      %v937 = vpack.c.b16 %v729, %v725
      %v938 = vpack.c.b16 %v730, %v726
      %v939 = vpack.c.b16 %v735, %v731
      %v940 = vpack.c.b16 %v736, %v732
      %v941 = vpack.c.b16 %v737, %v733
      %v942 = vpack.c.b16 %v738, %v734
      %v943 = vpack.c.b16 %v743, %v739
      %v944 = vpack.c.b16 %v744, %v740
      %v945 = vpack.c.b16 %v745, %v741
      %v946 = vpack.c.b16 %v746, %v742
      %v947 = vpack.c.b16 %v751, %v747
      %v948 = vpack.c.b16 %v752, %v748
      %v949 = vpack.c.b16 %v753, %v749
      %v950 = vpack.c.b16 %v754, %v750
      %v951 = vpack.c.b16 %v759, %v755
      %v952 = vpack.c.b16 %v760, %v756
      %v953 = vpack.c.b16 %v761, %v757
      %v954 = vpack.c.b16 %v762, %v758
      %v955 = vpack.c.b16 %v767, %v763
      %v956 = vpack.c.b16 %v768, %v764
      %v957 = vpack.c.b16 %v769, %v765
      %v958 = vpack.c.b16 %v770, %v766
      %v959 = vpack.c.b16 %v775, %v771
      %v960 = vpack.c.b16 %v776, %v772
      %v961 = vpack.c.b16 %v777, %v773
      %v962 = vpack.c.b16 %v778, %v774
      %v963 = vpack.c.b16 %v783, %v779
      %v964 = vpack.c.b16 %v784, %v780
      %v965 = vpack.c.b16 %v785, %v781
      %v966 = vpack.c.b16 %v786, %v782
      %v967 = vpack.c.b16 %v791, %v787
      %v968 = vpack.c.b16 %v792, %v788
      %v969 = vpack.c.b16 %v793, %v789
      %v970 = vpack.c.b16 %v794, %v790
      %v971 = vpack.c.b16 %v799, %v795
      %v972 = vpack.c.b16 %v800, %v796
      %v973 = vpack.c.b16 %v801, %v797
      %v974 = vpack.c.b16 %v802, %v798
      %v975 = vpack.c.b16 %v807, %v803
      %v976 = vpack.c.b16 %v808, %v804
      %v977 = vpack.c.b16 %v809, %v805
      %v978 = vpack.c.b16 %v810, %v806
      %v979 = vpack.c.b16 %v815, %v811
      %v980 = vpack.c.b16 %v816, %v812
      %v981 = vpack.c.b16 %v817, %v813
      %v982 = vpack.c.b16 %v818, %v814
      %v983 = vpack.c.b16 %v823, %v819
      %v984 = vpack.c.b16 %v824, %v820
      %v985 = vpack.c.b16 %v825, %v821
      %v986 = vpack.c.b16 %v826, %v822
      %v987 = vpack.c.b16 %v831, %v827
      %v988 = vpack.c.b16 %v832, %v828
      %v989 = vpack.c.b16 %v833, %v829
      %v990 = vpack.c.b16 %v834, %v830
      %v991 = vpack.c.b16 %v839, %v835
      %v992 = vpack.c.b16 %v840, %v836
      %v993 = vpack.c.b16 %v841, %v837
      %v994 = vpack.c.b16 %v842, %v838
      %v995 = vpack.c.b16 %v847, %v843
      %v996 = vpack.c.b16 %v848, %v844
      %v997 = vpack.c.b16 %v849, %v845
      %v998 = vpack.c.b16 %v850, %v846
      %v999 = vpack.c.b16 %v855, %v851
      %v1000 = vpack.c.b16 %v856, %v852
      %v1001 = vpack.c.b16 %v857, %v853
      %v1002 = vpack.c.b16 %v858, %v854
      %v1003 = vpack.c.b16 %v863, %v859
      %v1004 = vpack.c.b16 %v864, %v860
      %v1005 = vpack.c.b16 %v865, %v861
      %v1006 = vpack.c.b16 %v866, %v862
      %v1007 = vpack.c.b16 %v871, %v867
      %v1008 = vpack.c.b16 %v872, %v868
      %v1009 = vpack.c.b16 %v873, %v869
      %v1010 = vpack.c.b16 %v874, %v870
      %v1011 = vpack.c.b16 %v879, %v875
      %v1012 = vpack.c.b16 %v880, %v876
      %v1013 = vpack.c.b16 %v881, %v877
      %v1014 = vpack.c.b16 %v882, %v878
      %v1015 = vpack.c.b16 %v887, %v883
      %v1016 = vpack.c.b16 %v888, %v884
      %v1017 = vpack.c.b16 %v889, %v885
      %v1018 = vpack.c.b16 %v890, %v886
      %v1211 = vunpack.c.l.b16 %v439
      %v1212 = vunpack.c.l.b16 %v440
      %v1213 = vunpack.c.l.b16 %v441
      %v1214 = vunpack.c.l.b16 %v442
      %v1215 = vunpack.c.l.b16 %v443
      %v1216 = vunpack.c.l.b16 %v444
      %v1217 = vunpack.c.l.b16 %v445
      %v1218 = vunpack.c.l.b16 %v446
      %v1219 = vunpack.c.l.b16 %v447
      %v1220 = vunpack.c.l.b16 %v448
      %v1221 = vunpack.c.l.b16 %v449
      %v1222 = vunpack.c.l.b16 %v450
      %v1223 = vunpack.c.l.b16 %v451
      %v1224 = vunpack.c.l.b16 %v452
      %v1225 = vunpack.c.l.b16 %v453
      %v1226 = vunpack.c.l.b16 %v454
      %v1227 = vunpack.c.l.b16 %v455
      %v1228 = vunpack.c.l.b16 %v456
      %v1229 = vunpack.c.l.b16 %v457
      %v1230 = vunpack.c.l.b16 %v458
      %v1231 = vunpack.c.l.b16 %v459
      %v1232 = vunpack.c.l.b16 %v460
      %v1233 = vunpack.c.l.b16 %v461
      %v1234 = vunpack.c.l.b16 %v462
      %v1235 = vunpack.c.l.b16 %v463
      %v1236 = vunpack.c.l.b16 %v464
      %v1237 = vunpack.c.l.b16 %v465
      %v1238 = vunpack.c.l.b16 %v466
      %v1239 = vunpack.c.l.b16 %v467
      %v1240 = vunpack.c.l.b16 %v468
      %v1241 = vunpack.c.l.b16 %v469
      %v1242 = vunpack.c.l.b16 %v470
      %v1243 = vunpack.c.l.b16 %v471
      %v1244 = vunpack.c.l.b16 %v472
      %v1245 = vunpack.c.l.b16 %v473
      %v1246 = vunpack.c.l.b16 %v474
      %v1247 = vunpack.c.l.b16 %v475
      %v1248 = vunpack.c.l.b16 %v476
      %v1249 = vunpack.c.l.b16 %v477
      %v1250 = vunpack.c.l.b16 %v478
      %v1251 = vunpack.c.l.b16 %v479
      %v1252 = vunpack.c.l.b16 %v480
      %v1253 = vunpack.c.l.b16 %v481
      %v1254 = vunpack.c.l.b16 %v482
      %v1255 = vunpack.c.l.b16 %v483
      %v1256 = vunpack.c.l.b16 %v484
      %v1257 = vunpack.c.l.b16 %v485
      %v1258 = vunpack.c.l.b16 %v486
      %v1259 = vunpack.c.l.b16 %v487
      %v1260 = vunpack.c.l.b16 %v488
      %v1261 = vunpack.c.l.b16 %v489
      %v1262 = vunpack.c.l.b16 %v490
      %v1263 = vunpack.c.l.b16 %v491
      %v1264 = vunpack.c.l.b16 %v492
      %v1265 = vunpack.c.l.b16 %v493
      %v1266 = vunpack.c.l.b16 %v494
      %v1267 = vunpack.c.l.b16 %v495
      %v1268 = vunpack.c.l.b16 %v496
      %v1269 = vunpack.c.l.b16 %v497
      %v1270 = vunpack.c.l.b16 %v498
      %v1271 = vunpack.c.l.b16 %v499
      %v1272 = vunpack.c.l.b16 %v500
      %v1273 = vunpack.c.l.b16 %v501
      %v1274 = vunpack.c.l.b16 %v502
      %v1275 = vpack.c.b16 %v1212, %v1211
      %v1276 = vpack.c.b16 %v1214, %v1213
      %v1277 = vpack.c.b16 %v1216, %v1215
      %v1278 = vpack.c.b16 %v1218, %v1217
      %v1279 = vpack.c.b16 %v1220, %v1219
      %v1280 = vpack.c.b16 %v1222, %v1221
      %v1281 = vpack.c.b16 %v1224, %v1223
      %v1282 = vpack.c.b16 %v1226, %v1225
      %v1283 = vpack.c.b16 %v1228, %v1227
      %v1284 = vpack.c.b16 %v1230, %v1229
      %v1285 = vpack.c.b16 %v1232, %v1231
      %v1286 = vpack.c.b16 %v1234, %v1233
      %v1287 = vpack.c.b16 %v1236, %v1235
      %v1288 = vpack.c.b16 %v1238, %v1237
      %v1289 = vpack.c.b16 %v1240, %v1239
      %v1290 = vpack.c.b16 %v1242, %v1241
      %v1291 = vpack.c.b16 %v1244, %v1243
      %v1292 = vpack.c.b16 %v1246, %v1245
      %v1293 = vpack.c.b16 %v1248, %v1247
      %v1294 = vpack.c.b16 %v1250, %v1249
      %v1295 = vpack.c.b16 %v1252, %v1251
      %v1296 = vpack.c.b16 %v1254, %v1253
      %v1297 = vpack.c.b16 %v1256, %v1255
      %v1298 = vpack.c.b16 %v1258, %v1257
      %v1299 = vpack.c.b16 %v1260, %v1259
      %v1300 = vpack.c.b16 %v1262, %v1261
      %v1301 = vpack.c.b16 %v1264, %v1263
      %v1302 = vpack.c.b16 %v1266, %v1265
      %v1303 = vpack.c.b16 %v1268, %v1267
      %v1304 = vpack.c.b16 %v1270, %v1269
      %v1305 = vpack.c.b16 %v1272, %v1271
      %v1306 = vpack.c.b16 %v1274, %v1273
      %1339 = vmatpush.bf16.msra.mxu0 %v1282
      %1340 = vmatpush.bf16.msra.mxu0 %v1281
      %1341 = vmatpush.bf16.msra.mxu0 %v1280
      %1342 = vmatpush.bf16.msra.mxu0 %v1279
      %1343 = vmatpush.bf16.msra.mxu0 %v1278
      %1344 = vmatpush.bf16.msra.mxu0 %v1277
      %1345 = vmatpush.bf16.msra.mxu0 %v1276
      %1346 = vmatpush.bf16.msra.mxu0 %v1275
      %1347 = vmatmul.bf16.gmra.mxu0 %v891
      %v1348 = vpop.f32.mrf.mxu0
      %v1349 = vadd.f32 %v505, %v1348
      %v1350 = vpop.f32.mrf.mxu0
      %v1351 = vadd.f32 %v505, %v1350
      %1352 = vmatmul.bf16.gmra.mxu0 %v895
      %v1353 = vpop.f32.mrf.mxu0
      %v1354 = vadd.f32 %v505, %v1353
      %v1355 = vpop.f32.mrf.mxu0
      %v1356 = vadd.f32 %v505, %v1355
      %1357 = vmatmul.bf16.gmra.mxu0 %v899
      %v1358 = vpop.f32.mrf.mxu0
      %v1359 = vadd.f32 %v505, %v1358
      %v1360 = vpop.f32.mrf.mxu0
      %v1361 = vadd.f32 %v505, %v1360
      %1362 = vmatmul.bf16.gmra.mxu0 %v903
      %v1363 = vpop.f32.mrf.mxu0
      %v1364 = vadd.f32 %v505, %v1363
      %v1365 = vpop.f32.mrf.mxu0
      %v1366 = vadd.f32 %v505, %v1365
      %1367 = vmatmul.bf16.gmra.mxu0 %v907
      %v1368 = vpop.f32.mrf.mxu0
      %v1369 = vadd.f32 %v505, %v1368
      %v1370 = vpop.f32.mrf.mxu0
      %v1371 = vadd.f32 %v505, %v1370
      %1372 = vmatmul.bf16.gmra.mxu0 %v911
      %v1373 = vpop.f32.mrf.mxu0
      %v1374 = vadd.f32 %v505, %v1373
      %v1375 = vpop.f32.mrf.mxu0
      %v1376 = vadd.f32 %v505, %v1375
      %1377 = vmatmul.bf16.gmra.mxu0 %v915
      %v1378 = vpop.f32.mrf.mxu0
      %v1379 = vadd.f32 %v505, %v1378
      %v1380 = vpop.f32.mrf.mxu0
      %v1381 = vadd.f32 %v505, %v1380
      %1382 = vmatmul.bf16.gmra.mxu0 %v919
      %v1383 = vpop.f32.mrf.mxu0
      %v1384 = vadd.f32 %v505, %v1383
      %v1385 = vpop.f32.mrf.mxu0
      %v1386 = vadd.f32 %v505, %v1385
      %1387 = vmatmul.bf16.gmra.mxu0 %v923
      %v1388 = vpop.f32.mrf.mxu0
      %v1389 = vadd.f32 %v505, %v1388
      %v1390 = vpop.f32.mrf.mxu0
      %v1391 = vadd.f32 %v505, %v1390
      %1392 = vmatmul.bf16.gmra.mxu0 %v927
      %v1393 = vpop.f32.mrf.mxu0
      %v1394 = vadd.f32 %v505, %v1393
      %v1395 = vpop.f32.mrf.mxu0
      %v1396 = vadd.f32 %v505, %v1395
      %1397 = vmatmul.bf16.gmra.mxu0 %v931
      %v1398 = vpop.f32.mrf.mxu0
      %v1399 = vadd.f32 %v505, %v1398
      %v1400 = vpop.f32.mrf.mxu0
      %v1401 = vadd.f32 %v505, %v1400
      %1402 = vmatmul.bf16.gmra.mxu0 %v935
      %v1403 = vpop.f32.mrf.mxu0
      %v1404 = vadd.f32 %v505, %v1403
      %v1405 = vpop.f32.mrf.mxu0
      %v1406 = vadd.f32 %v505, %v1405
      %1407 = vmatmul.bf16.gmra.mxu0 %v939
      %v1408 = vpop.f32.mrf.mxu0
      %v1409 = vadd.f32 %v505, %v1408
      %v1410 = vpop.f32.mrf.mxu0
      %v1411 = vadd.f32 %v505, %v1410
      %1412 = vmatmul.bf16.gmra.mxu0 %v943
      %v1413 = vpop.f32.mrf.mxu0
      %v1414 = vadd.f32 %v505, %v1413
      %v1415 = vpop.f32.mrf.mxu0
      %v1416 = vadd.f32 %v505, %v1415
      %1417 = vmatmul.bf16.gmra.mxu0 %v947
      %v1418 = vpop.f32.mrf.mxu0
      %v1419 = vadd.f32 %v505, %v1418
      %v1420 = vpop.f32.mrf.mxu0
      %v1421 = vadd.f32 %v505, %v1420
      %1422 = vmatmul.bf16.gmra.mxu0 %v951
      %v1423 = vpop.f32.mrf.mxu0
      %v1424 = vadd.f32 %v505, %v1423
      %v1425 = vpop.f32.mrf.mxu0
      %v1426 = vadd.f32 %v505, %v1425
      %1427 = vmatmul.bf16.gmra.mxu0 %v955
      %v1428 = vpop.f32.mrf.mxu0
      %v1429 = vadd.f32 %v505, %v1428
      %v1430 = vpop.f32.mrf.mxu0
      %v1431 = vadd.f32 %v505, %v1430
      %1432 = vmatmul.bf16.gmra.mxu0 %v959
      %v1433 = vpop.f32.mrf.mxu0
      %v1434 = vadd.f32 %v505, %v1433
      %v1435 = vpop.f32.mrf.mxu0
      %v1436 = vadd.f32 %v505, %v1435
      %1437 = vmatmul.bf16.gmra.mxu0 %v963
      %v1438 = vpop.f32.mrf.mxu0
      %v1439 = vadd.f32 %v505, %v1438
      %v1440 = vpop.f32.mrf.mxu0
      %v1441 = vadd.f32 %v505, %v1440
      %1442 = vmatmul.bf16.gmra.mxu0 %v967
      %v1443 = vpop.f32.mrf.mxu0
      %v1444 = vadd.f32 %v505, %v1443
      %v1445 = vpop.f32.mrf.mxu0
      %v1446 = vadd.f32 %v505, %v1445
      %1447 = vmatmul.bf16.gmra.mxu0 %v971
      %v1448 = vpop.f32.mrf.mxu0
      %v1449 = vadd.f32 %v505, %v1448
      %v1450 = vpop.f32.mrf.mxu0
      %v1451 = vadd.f32 %v505, %v1450
      %1452 = vmatmul.bf16.gmra.mxu0 %v975
      %v1453 = vpop.f32.mrf.mxu0
      %v1454 = vadd.f32 %v505, %v1453
      %v1455 = vpop.f32.mrf.mxu0
      %v1456 = vadd.f32 %v505, %v1455
      %1457 = vmatmul.bf16.gmra.mxu0 %v979
      %v1458 = vpop.f32.mrf.mxu0
      %v1459 = vadd.f32 %v505, %v1458
      %v1460 = vpop.f32.mrf.mxu0
      %v1461 = vadd.f32 %v505, %v1460
      %1462 = vmatmul.bf16.gmra.mxu0 %v983
      %v1463 = vpop.f32.mrf.mxu0
      %v1464 = vadd.f32 %v505, %v1463
      %v1465 = vpop.f32.mrf.mxu0
      %v1466 = vadd.f32 %v505, %v1465
      %1467 = vmatmul.bf16.gmra.mxu0 %v987
      %v1468 = vpop.f32.mrf.mxu0
      %v1469 = vadd.f32 %v505, %v1468
      %v1470 = vpop.f32.mrf.mxu0
      %v1471 = vadd.f32 %v505, %v1470
      %1472 = vmatmul.bf16.gmra.mxu0 %v991
      %v1473 = vpop.f32.mrf.mxu0
      %v1474 = vadd.f32 %v505, %v1473
      %v1475 = vpop.f32.mrf.mxu0
      %v1476 = vadd.f32 %v505, %v1475
      %1477 = vmatmul.bf16.gmra.mxu0 %v995
      %v1478 = vpop.f32.mrf.mxu0
      %v1479 = vadd.f32 %v505, %v1478
      %v1480 = vpop.f32.mrf.mxu0
      %v1481 = vadd.f32 %v505, %v1480
      %1482 = vmatmul.bf16.gmra.mxu0 %v999
      %v1483 = vpop.f32.mrf.mxu0
      %v1484 = vadd.f32 %v505, %v1483
      %v1485 = vpop.f32.mrf.mxu0
      %v1486 = vadd.f32 %v505, %v1485
      %1487 = vmatmul.bf16.gmra.mxu0 %v1003
      %v1488 = vpop.f32.mrf.mxu0
      %v1489 = vadd.f32 %v505, %v1488
      %v1490 = vpop.f32.mrf.mxu0
      %v1491 = vadd.f32 %v505, %v1490
      %1492 = vmatmul.bf16.gmra.mxu0 %v1007
      %v1493 = vpop.f32.mrf.mxu0
      %v1494 = vadd.f32 %v505, %v1493
      %v1495 = vpop.f32.mrf.mxu0
      %v1496 = vadd.f32 %v505, %v1495
      %1497 = vmatmul.bf16.gmra.mxu0 %v1011
      %v1498 = vpop.f32.mrf.mxu0
      %v1499 = vadd.f32 %v505, %v1498
      %v1500 = vpop.f32.mrf.mxu0
      %v1501 = vadd.f32 %v505, %v1500
      %1502 = vmatmul.bf16.gmra.mxu0 %v1015
      %v1503 = vpop.f32.mrf.mxu0
      %v1504 = vadd.f32 %v505, %v1503
      %v1505 = vpop.f32.mrf.mxu0
      %v1506 = vadd.f32 %v505, %v1505
      %1507 = vdwg.mxu0
      %1508 = vmatpush.bf16.msra.mxu0 %v1290
      %1509 = vmatpush.bf16.msra.mxu0 %v1289
      %1510 = vmatpush.bf16.msra.mxu0 %v1288
      %1511 = vmatpush.bf16.msra.mxu0 %v1287
      %1512 = vmatpush.bf16.msra.mxu0 %v1286
      %1513 = vmatpush.bf16.msra.mxu0 %v1285
      %1514 = vmatpush.bf16.msra.mxu0 %v1284
      %1515 = vmatpush.bf16.msra.mxu0 %v1283
      %1516 = vmatmul.bf16.gmra.mxu0 %v892
      %v1517 = vpop.f32.mrf.mxu0
      %v1518 = vadd.f32 %v1349, %v1517
      %v1519 = vpop.f32.mrf.mxu0
      %v1520 = vadd.f32 %v1351, %v1519
      %1521 = vmatmul.bf16.gmra.mxu0 %v896
      %v1522 = vpop.f32.mrf.mxu0
      %v1523 = vadd.f32 %v1354, %v1522
      %v1524 = vpop.f32.mrf.mxu0
      %v1525 = vadd.f32 %v1356, %v1524
      %1526 = vmatmul.bf16.gmra.mxu0 %v900
      %v1527 = vpop.f32.mrf.mxu0
      %v1528 = vadd.f32 %v1359, %v1527
      %v1529 = vpop.f32.mrf.mxu0
      %v1530 = vadd.f32 %v1361, %v1529
      %1531 = vmatmul.bf16.gmra.mxu0 %v904
      %v1532 = vpop.f32.mrf.mxu0
      %v1533 = vadd.f32 %v1364, %v1532
      %v1534 = vpop.f32.mrf.mxu0
      %v1535 = vadd.f32 %v1366, %v1534
      %1536 = vmatmul.bf16.gmra.mxu0 %v908
      %v1537 = vpop.f32.mrf.mxu0
      %v1538 = vadd.f32 %v1369, %v1537
      %v1539 = vpop.f32.mrf.mxu0
      %v1540 = vadd.f32 %v1371, %v1539
      %1541 = vmatmul.bf16.gmra.mxu0 %v912
      %v1542 = vpop.f32.mrf.mxu0
      %v1543 = vadd.f32 %v1374, %v1542
      %v1544 = vpop.f32.mrf.mxu0
      %v1545 = vadd.f32 %v1376, %v1544
      %1546 = vmatmul.bf16.gmra.mxu0 %v916
      %v1547 = vpop.f32.mrf.mxu0
      %v1548 = vadd.f32 %v1379, %v1547
      %v1549 = vpop.f32.mrf.mxu0
      %v1550 = vadd.f32 %v1381, %v1549
      %1551 = vmatmul.bf16.gmra.mxu0 %v920
      %v1552 = vpop.f32.mrf.mxu0
      %v1553 = vadd.f32 %v1384, %v1552
      %v1554 = vpop.f32.mrf.mxu0
      %v1555 = vadd.f32 %v1386, %v1554
      %1556 = vmatmul.bf16.gmra.mxu0 %v924
      %v1557 = vpop.f32.mrf.mxu0
      %v1558 = vadd.f32 %v1389, %v1557
      %v1559 = vpop.f32.mrf.mxu0
      %v1560 = vadd.f32 %v1391, %v1559
      %1561 = vmatmul.bf16.gmra.mxu0 %v928
      %v1562 = vpop.f32.mrf.mxu0
      %v1563 = vadd.f32 %v1394, %v1562
      %v1564 = vpop.f32.mrf.mxu0
      %v1565 = vadd.f32 %v1396, %v1564
      %1566 = vmatmul.bf16.gmra.mxu0 %v932
      %v1567 = vpop.f32.mrf.mxu0
      %v1568 = vadd.f32 %v1399, %v1567
      %v1569 = vpop.f32.mrf.mxu0
      %v1570 = vadd.f32 %v1401, %v1569
      %1571 = vmatmul.bf16.gmra.mxu0 %v936
      %v1572 = vpop.f32.mrf.mxu0
      %v1573 = vadd.f32 %v1404, %v1572
      %v1574 = vpop.f32.mrf.mxu0
      %v1575 = vadd.f32 %v1406, %v1574
      %1576 = vmatmul.bf16.gmra.mxu0 %v940
      %v1577 = vpop.f32.mrf.mxu0
      %v1578 = vadd.f32 %v1409, %v1577
      %v1579 = vpop.f32.mrf.mxu0
      %v1580 = vadd.f32 %v1411, %v1579
      %1581 = vmatmul.bf16.gmra.mxu0 %v944
      %v1582 = vpop.f32.mrf.mxu0
      %v1583 = vadd.f32 %v1414, %v1582
      %v1584 = vpop.f32.mrf.mxu0
      %v1585 = vadd.f32 %v1416, %v1584
      %1586 = vmatmul.bf16.gmra.mxu0 %v948
      %v1587 = vpop.f32.mrf.mxu0
      %v1588 = vadd.f32 %v1419, %v1587
      %v1589 = vpop.f32.mrf.mxu0
      %v1590 = vadd.f32 %v1421, %v1589
      %1591 = vmatmul.bf16.gmra.mxu0 %v952
      %v1592 = vpop.f32.mrf.mxu0
      %v1593 = vadd.f32 %v1424, %v1592
      %v1594 = vpop.f32.mrf.mxu0
      %v1595 = vadd.f32 %v1426, %v1594
      %1596 = vmatmul.bf16.gmra.mxu0 %v956
      %v1597 = vpop.f32.mrf.mxu0
      %v1598 = vadd.f32 %v1429, %v1597
      %v1599 = vpop.f32.mrf.mxu0
      %v1600 = vadd.f32 %v1431, %v1599
      %1601 = vmatmul.bf16.gmra.mxu0 %v960
      %v1602 = vpop.f32.mrf.mxu0
      %v1603 = vadd.f32 %v1434, %v1602
      %v1604 = vpop.f32.mrf.mxu0
      %v1605 = vadd.f32 %v1436, %v1604
      %1606 = vmatmul.bf16.gmra.mxu0 %v964
      %v1607 = vpop.f32.mrf.mxu0
      %v1608 = vadd.f32 %v1439, %v1607
      %v1609 = vpop.f32.mrf.mxu0
      %v1610 = vadd.f32 %v1441, %v1609
      %1611 = vmatmul.bf16.gmra.mxu0 %v968
      %v1612 = vpop.f32.mrf.mxu0
      %v1613 = vadd.f32 %v1444, %v1612
      %v1614 = vpop.f32.mrf.mxu0
      %v1615 = vadd.f32 %v1446, %v1614
      %1616 = vmatmul.bf16.gmra.mxu0 %v972
      %v1617 = vpop.f32.mrf.mxu0
      %v1618 = vadd.f32 %v1449, %v1617
      %v1619 = vpop.f32.mrf.mxu0
      %v1620 = vadd.f32 %v1451, %v1619
      %1621 = vmatmul.bf16.gmra.mxu0 %v976
      %v1622 = vpop.f32.mrf.mxu0
      %v1623 = vadd.f32 %v1454, %v1622
      %v1624 = vpop.f32.mrf.mxu0
      %v1625 = vadd.f32 %v1456, %v1624
      %1626 = vmatmul.bf16.gmra.mxu0 %v980
      %v1627 = vpop.f32.mrf.mxu0
      %v1628 = vadd.f32 %v1459, %v1627
      %v1629 = vpop.f32.mrf.mxu0
      %v1630 = vadd.f32 %v1461, %v1629
      %1631 = vmatmul.bf16.gmra.mxu0 %v984
      %v1632 = vpop.f32.mrf.mxu0
      %v1633 = vadd.f32 %v1464, %v1632
      %v1634 = vpop.f32.mrf.mxu0
      %v1635 = vadd.f32 %v1466, %v1634
      %1636 = vmatmul.bf16.gmra.mxu0 %v988
      %v1637 = vpop.f32.mrf.mxu0
      %v1638 = vadd.f32 %v1469, %v1637
      %v1639 = vpop.f32.mrf.mxu0
      %v1640 = vadd.f32 %v1471, %v1639
      %1641 = vmatmul.bf16.gmra.mxu0 %v992
      %v1642 = vpop.f32.mrf.mxu0
      %v1643 = vadd.f32 %v1474, %v1642
      %v1644 = vpop.f32.mrf.mxu0
      %v1645 = vadd.f32 %v1476, %v1644
      %1646 = vmatmul.bf16.gmra.mxu0 %v996
      %v1647 = vpop.f32.mrf.mxu0
      %v1648 = vadd.f32 %v1479, %v1647
      %v1649 = vpop.f32.mrf.mxu0
      %v1650 = vadd.f32 %v1481, %v1649
      %1651 = vmatmul.bf16.gmra.mxu0 %v1000
      %v1652 = vpop.f32.mrf.mxu0
      %v1653 = vadd.f32 %v1484, %v1652
      %v1654 = vpop.f32.mrf.mxu0
      %v1655 = vadd.f32 %v1486, %v1654
      %1656 = vmatmul.bf16.gmra.mxu0 %v1004
      %v1657 = vpop.f32.mrf.mxu0
      %v1658 = vadd.f32 %v1489, %v1657
      %v1659 = vpop.f32.mrf.mxu0
      %v1660 = vadd.f32 %v1491, %v1659
      %1661 = vmatmul.bf16.gmra.mxu0 %v1008
      %v1662 = vpop.f32.mrf.mxu0
      %v1663 = vadd.f32 %v1494, %v1662
      %v1664 = vpop.f32.mrf.mxu0
      %v1665 = vadd.f32 %v1496, %v1664
      %1666 = vmatmul.bf16.gmra.mxu0 %v1012
      %v1667 = vpop.f32.mrf.mxu0
      %v1668 = vadd.f32 %v1499, %v1667
      %v1669 = vpop.f32.mrf.mxu0
      %v1670 = vadd.f32 %v1501, %v1669
      %1671 = vmatmul.bf16.gmra.mxu0 %v1016
      %v1672 = vpop.f32.mrf.mxu0
      %v1673 = vadd.f32 %v1504, %v1672
      %v1674 = vpop.f32.mrf.mxu0
      %v1675 = vadd.f32 %v1506, %v1674
      %1676 = vdwg.mxu0
      %1677 = vmatpush.bf16.msra.mxu0 %v1298
      %1678 = vmatpush.bf16.msra.mxu0 %v1297
      %1679 = vmatpush.bf16.msra.mxu0 %v1296
      %1680 = vmatpush.bf16.msra.mxu0 %v1295
      %1681 = vmatpush.bf16.msra.mxu0 %v1294
      %1682 = vmatpush.bf16.msra.mxu0 %v1293
      %1683 = vmatpush.bf16.msra.mxu0 %v1292
      %1684 = vmatpush.bf16.msra.mxu0 %v1291
      %1685 = vmatmul.bf16.gmra.mxu0 %v893
      %v1686 = vpop.f32.mrf.mxu0
      %v1687 = vadd.f32 %v1518, %v1686
      %v1688 = vpop.f32.mrf.mxu0
      %v1689 = vadd.f32 %v1520, %v1688
      %1690 = vmatmul.bf16.gmra.mxu0 %v897
      %v1691 = vpop.f32.mrf.mxu0
      %v1692 = vadd.f32 %v1523, %v1691
      %v1693 = vpop.f32.mrf.mxu0
      %v1694 = vadd.f32 %v1525, %v1693
      %1695 = vmatmul.bf16.gmra.mxu0 %v901
      %v1696 = vpop.f32.mrf.mxu0
      %v1697 = vadd.f32 %v1528, %v1696
      %v1698 = vpop.f32.mrf.mxu0
      %v1699 = vadd.f32 %v1530, %v1698
      %1700 = vmatmul.bf16.gmra.mxu0 %v905
      %v1701 = vpop.f32.mrf.mxu0
      %v1702 = vadd.f32 %v1533, %v1701
      %v1703 = vpop.f32.mrf.mxu0
      %v1704 = vadd.f32 %v1535, %v1703
      %1705 = vmatmul.bf16.gmra.mxu0 %v909
      %v1706 = vpop.f32.mrf.mxu0
      %v1707 = vadd.f32 %v1538, %v1706
      %v1708 = vpop.f32.mrf.mxu0
      %v1709 = vadd.f32 %v1540, %v1708
      %1710 = vmatmul.bf16.gmra.mxu0 %v913
      %v1711 = vpop.f32.mrf.mxu0
      %v1712 = vadd.f32 %v1543, %v1711
      %v1713 = vpop.f32.mrf.mxu0
      %v1714 = vadd.f32 %v1545, %v1713
      %1715 = vmatmul.bf16.gmra.mxu0 %v917
      %v1716 = vpop.f32.mrf.mxu0
      %v1717 = vadd.f32 %v1548, %v1716
      %v1718 = vpop.f32.mrf.mxu0
      %v1719 = vadd.f32 %v1550, %v1718
      %1720 = vmatmul.bf16.gmra.mxu0 %v921
      %v1721 = vpop.f32.mrf.mxu0
      %v1722 = vadd.f32 %v1553, %v1721
      %v1723 = vpop.f32.mrf.mxu0
      %v1724 = vadd.f32 %v1555, %v1723
      %1725 = vmatmul.bf16.gmra.mxu0 %v925
      %v1726 = vpop.f32.mrf.mxu0
      %v1727 = vadd.f32 %v1558, %v1726
      %v1728 = vpop.f32.mrf.mxu0
      %v1729 = vadd.f32 %v1560, %v1728
      %1730 = vmatmul.bf16.gmra.mxu0 %v929
      %v1731 = vpop.f32.mrf.mxu0
      %v1732 = vadd.f32 %v1563, %v1731
      %v1733 = vpop.f32.mrf.mxu0
      %v1734 = vadd.f32 %v1565, %v1733
      %1735 = vmatmul.bf16.gmra.mxu0 %v933
      %v1736 = vpop.f32.mrf.mxu0
      %v1737 = vadd.f32 %v1568, %v1736
      %v1738 = vpop.f32.mrf.mxu0
      %v1739 = vadd.f32 %v1570, %v1738
      %1740 = vmatmul.bf16.gmra.mxu0 %v937
      %v1741 = vpop.f32.mrf.mxu0
      %v1742 = vadd.f32 %v1573, %v1741
      %v1743 = vpop.f32.mrf.mxu0
      %v1744 = vadd.f32 %v1575, %v1743
      %1745 = vmatmul.bf16.gmra.mxu0 %v941
      %v1746 = vpop.f32.mrf.mxu0
      %v1747 = vadd.f32 %v1578, %v1746
      %v1748 = vpop.f32.mrf.mxu0
      %v1749 = vadd.f32 %v1580, %v1748
      %1750 = vmatmul.bf16.gmra.mxu0 %v945
      %v1751 = vpop.f32.mrf.mxu0
      %v1752 = vadd.f32 %v1583, %v1751
      %v1753 = vpop.f32.mrf.mxu0
      %v1754 = vadd.f32 %v1585, %v1753
      %1755 = vmatmul.bf16.gmra.mxu0 %v949
      %v1756 = vpop.f32.mrf.mxu0
      %v1757 = vadd.f32 %v1588, %v1756
      %v1758 = vpop.f32.mrf.mxu0
      %v1759 = vadd.f32 %v1590, %v1758
      %1760 = vmatmul.bf16.gmra.mxu0 %v953
      %v1761 = vpop.f32.mrf.mxu0
      %v1762 = vadd.f32 %v1593, %v1761
      %v1763 = vpop.f32.mrf.mxu0
      %v1764 = vadd.f32 %v1595, %v1763
      %1765 = vmatmul.bf16.gmra.mxu0 %v957
      %v1766 = vpop.f32.mrf.mxu0
      %v1767 = vadd.f32 %v1598, %v1766
      %v1768 = vpop.f32.mrf.mxu0
      %v1769 = vadd.f32 %v1600, %v1768
      %1770 = vmatmul.bf16.gmra.mxu0 %v961
      %v1771 = vpop.f32.mrf.mxu0
      %v1772 = vadd.f32 %v1603, %v1771
      %v1773 = vpop.f32.mrf.mxu0
      %v1774 = vadd.f32 %v1605, %v1773
      %1775 = vmatmul.bf16.gmra.mxu0 %v965
      %v1776 = vpop.f32.mrf.mxu0
      %v1777 = vadd.f32 %v1608, %v1776
      %v1778 = vpop.f32.mrf.mxu0
      %v1779 = vadd.f32 %v1610, %v1778
      %1780 = vmatmul.bf16.gmra.mxu0 %v969
      %v1781 = vpop.f32.mrf.mxu0
      %v1782 = vadd.f32 %v1613, %v1781
      %v1783 = vpop.f32.mrf.mxu0
      %v1784 = vadd.f32 %v1615, %v1783
      %1785 = vmatmul.bf16.gmra.mxu0 %v973
      %v1786 = vpop.f32.mrf.mxu0
      %v1787 = vadd.f32 %v1618, %v1786
      %v1788 = vpop.f32.mrf.mxu0
      %v1789 = vadd.f32 %v1620, %v1788
      %1790 = vmatmul.bf16.gmra.mxu0 %v977
      %v1791 = vpop.f32.mrf.mxu0
      %v1792 = vadd.f32 %v1623, %v1791
      %v1793 = vpop.f32.mrf.mxu0
      %v1794 = vadd.f32 %v1625, %v1793
      %1795 = vmatmul.bf16.gmra.mxu0 %v981
      %v1796 = vpop.f32.mrf.mxu0
      %v1797 = vadd.f32 %v1628, %v1796
      %v1798 = vpop.f32.mrf.mxu0
      %v1799 = vadd.f32 %v1630, %v1798
      %1800 = vmatmul.bf16.gmra.mxu0 %v985
      %v1801 = vpop.f32.mrf.mxu0
      %v1802 = vadd.f32 %v1633, %v1801
      %v1803 = vpop.f32.mrf.mxu0
      %v1804 = vadd.f32 %v1635, %v1803
      %1805 = vmatmul.bf16.gmra.mxu0 %v989
      %v1806 = vpop.f32.mrf.mxu0
      %v1807 = vadd.f32 %v1638, %v1806
      %v1808 = vpop.f32.mrf.mxu0
      %v1809 = vadd.f32 %v1640, %v1808
      %1810 = vmatmul.bf16.gmra.mxu0 %v993
      %v1811 = vpop.f32.mrf.mxu0
      %v1812 = vadd.f32 %v1643, %v1811
      %v1813 = vpop.f32.mrf.mxu0
      %v1814 = vadd.f32 %v1645, %v1813
      %1815 = vmatmul.bf16.gmra.mxu0 %v997
      %v1816 = vpop.f32.mrf.mxu0
      %v1817 = vadd.f32 %v1648, %v1816
      %v1818 = vpop.f32.mrf.mxu0
      %v1819 = vadd.f32 %v1650, %v1818
      %1820 = vmatmul.bf16.gmra.mxu0 %v1001
      %v1821 = vpop.f32.mrf.mxu0
      %v1822 = vadd.f32 %v1653, %v1821
      %v1823 = vpop.f32.mrf.mxu0
      %v1824 = vadd.f32 %v1655, %v1823
      %1825 = vmatmul.bf16.gmra.mxu0 %v1005
      %v1826 = vpop.f32.mrf.mxu0
      %v1827 = vadd.f32 %v1658, %v1826
      %v1828 = vpop.f32.mrf.mxu0
      %v1829 = vadd.f32 %v1660, %v1828
      %1830 = vmatmul.bf16.gmra.mxu0 %v1009
      %v1831 = vpop.f32.mrf.mxu0
      %v1832 = vadd.f32 %v1663, %v1831
      %v1833 = vpop.f32.mrf.mxu0
      %v1834 = vadd.f32 %v1665, %v1833
      %1835 = vmatmul.bf16.gmra.mxu0 %v1013
      %v1836 = vpop.f32.mrf.mxu0
      %v1837 = vadd.f32 %v1668, %v1836
      %v1838 = vpop.f32.mrf.mxu0
      %v1839 = vadd.f32 %v1670, %v1838
      %1840 = vmatmul.bf16.gmra.mxu0 %v1017
      %v1841 = vpop.f32.mrf.mxu0
      %v1842 = vadd.f32 %v1673, %v1841
      %v1843 = vpop.f32.mrf.mxu0
      %v1844 = vadd.f32 %v1675, %v1843
      %1845 = vdwg.mxu0
      %1846 = vmatpush.bf16.msra.mxu0 %v1306
      %1847 = vmatpush.bf16.msra.mxu0 %v1305
      %1848 = vmatpush.bf16.msra.mxu0 %v1304
      %1849 = vmatpush.bf16.msra.mxu0 %v1303
      %1850 = vmatpush.bf16.msra.mxu0 %v1302
      %1851 = vmatpush.bf16.msra.mxu0 %v1301
      %1852 = vmatpush.bf16.msra.mxu0 %v1300
      %1853 = vmatpush.bf16.msra.mxu0 %v1299
      %1854 = vmatmul.bf16.gmra.mxu0 %v894
      %v1855 = vpop.f32.mrf.mxu0
      %v1856 = vadd.f32 %v1687, %v1855
      %v1857 = vpop.f32.mrf.mxu0
      %v1858 = vadd.f32 %v1689, %v1857
      %1859 = vmatmul.bf16.gmra.mxu0 %v898
      %v1860 = vpop.f32.mrf.mxu0
      %v1861 = vadd.f32 %v1692, %v1860
      %v1862 = vpop.f32.mrf.mxu0
      %v1863 = vadd.f32 %v1694, %v1862
      %1864 = vmatmul.bf16.gmra.mxu0 %v902
      %v1865 = vpop.f32.mrf.mxu0
      %v1866 = vadd.f32 %v1697, %v1865
      %v1867 = vpop.f32.mrf.mxu0
      %v1868 = vadd.f32 %v1699, %v1867
      %1869 = vmatmul.bf16.gmra.mxu0 %v906
      %v1870 = vpop.f32.mrf.mxu0
      %v1871 = vadd.f32 %v1702, %v1870
      %v1872 = vpop.f32.mrf.mxu0
      %v1873 = vadd.f32 %v1704, %v1872
      %1874 = vmatmul.bf16.gmra.mxu0 %v910
      %v1875 = vpop.f32.mrf.mxu0
      %v1876 = vadd.f32 %v1707, %v1875
      %v1877 = vpop.f32.mrf.mxu0
      %v1878 = vadd.f32 %v1709, %v1877
      %1879 = vmatmul.bf16.gmra.mxu0 %v914
      %v1880 = vpop.f32.mrf.mxu0
      %v1881 = vadd.f32 %v1712, %v1880
      %v1882 = vpop.f32.mrf.mxu0
      %v1883 = vadd.f32 %v1714, %v1882
      %1884 = vmatmul.bf16.gmra.mxu0 %v918
      %v1885 = vpop.f32.mrf.mxu0
      %v1886 = vadd.f32 %v1717, %v1885
      %v1887 = vpop.f32.mrf.mxu0
      %v1888 = vadd.f32 %v1719, %v1887
      %1889 = vmatmul.bf16.gmra.mxu0 %v922
      %v1890 = vpop.f32.mrf.mxu0
      %v1891 = vadd.f32 %v1722, %v1890
      %v1892 = vpop.f32.mrf.mxu0
      %v1893 = vadd.f32 %v1724, %v1892
      %1894 = vmatmul.bf16.gmra.mxu0 %v926
      %v1895 = vpop.f32.mrf.mxu0
      %v1896 = vadd.f32 %v1727, %v1895
      %v1897 = vpop.f32.mrf.mxu0
      %v1898 = vadd.f32 %v1729, %v1897
      %1899 = vmatmul.bf16.gmra.mxu0 %v930
      %v1900 = vpop.f32.mrf.mxu0
      %v1901 = vadd.f32 %v1732, %v1900
      %v1902 = vpop.f32.mrf.mxu0
      %v1903 = vadd.f32 %v1734, %v1902
      %1904 = vmatmul.bf16.gmra.mxu0 %v934
      %v1905 = vpop.f32.mrf.mxu0
      %v1906 = vadd.f32 %v1737, %v1905
      %v1907 = vpop.f32.mrf.mxu0
      %v1908 = vadd.f32 %v1739, %v1907
      %1909 = vmatmul.bf16.gmra.mxu0 %v938
      %v1910 = vpop.f32.mrf.mxu0
      %v1911 = vadd.f32 %v1742, %v1910
      %v1912 = vpop.f32.mrf.mxu0
      %v1913 = vadd.f32 %v1744, %v1912
      %1914 = vmatmul.bf16.gmra.mxu0 %v942
      %v1915 = vpop.f32.mrf.mxu0
      %v1916 = vadd.f32 %v1747, %v1915
      %v1917 = vpop.f32.mrf.mxu0
      %v1918 = vadd.f32 %v1749, %v1917
      %1919 = vmatmul.bf16.gmra.mxu0 %v946
      %v1920 = vpop.f32.mrf.mxu0
      %v1921 = vadd.f32 %v1752, %v1920
      %v1922 = vpop.f32.mrf.mxu0
      %v1923 = vadd.f32 %v1754, %v1922
      %1924 = vmatmul.bf16.gmra.mxu0 %v950
      %v1925 = vpop.f32.mrf.mxu0
      %v1926 = vadd.f32 %v1757, %v1925
      %v1927 = vpop.f32.mrf.mxu0
      %v1928 = vadd.f32 %v1759, %v1927
      %1929 = vmatmul.bf16.gmra.mxu0 %v954
      %v1930 = vpop.f32.mrf.mxu0
      %v1931 = vadd.f32 %v1762, %v1930
      %v1932 = vpop.f32.mrf.mxu0
      %v1933 = vadd.f32 %v1764, %v1932
      %1934 = vmatmul.bf16.gmra.mxu0 %v958
      %v1935 = vpop.f32.mrf.mxu0
      %v1936 = vadd.f32 %v1767, %v1935
      %v1937 = vpop.f32.mrf.mxu0
      %v1938 = vadd.f32 %v1769, %v1937
      %1939 = vmatmul.bf16.gmra.mxu0 %v962
      %v1940 = vpop.f32.mrf.mxu0
      %v1941 = vadd.f32 %v1772, %v1940
      %v1942 = vpop.f32.mrf.mxu0
      %v1943 = vadd.f32 %v1774, %v1942
      %1944 = vmatmul.bf16.gmra.mxu0 %v966
      %v1945 = vpop.f32.mrf.mxu0
      %v1946 = vadd.f32 %v1777, %v1945
      %v1947 = vpop.f32.mrf.mxu0
      %v1948 = vadd.f32 %v1779, %v1947
      %1949 = vmatmul.bf16.gmra.mxu0 %v970
      %v1950 = vpop.f32.mrf.mxu0
      %v1951 = vadd.f32 %v1782, %v1950
      %v1952 = vpop.f32.mrf.mxu0
      %v1953 = vadd.f32 %v1784, %v1952
      %1954 = vmatmul.bf16.gmra.mxu0 %v974
      %v1955 = vpop.f32.mrf.mxu0
      %v1956 = vadd.f32 %v1787, %v1955
      %v1957 = vpop.f32.mrf.mxu0
      %v1958 = vadd.f32 %v1789, %v1957
      %1959 = vmatmul.bf16.gmra.mxu0 %v978
      %v1960 = vpop.f32.mrf.mxu0
      %v1961 = vadd.f32 %v1792, %v1960
      %v1962 = vpop.f32.mrf.mxu0
      %v1963 = vadd.f32 %v1794, %v1962
      %1964 = vmatmul.bf16.gmra.mxu0 %v982
      %v1965 = vpop.f32.mrf.mxu0
      %v1966 = vadd.f32 %v1797, %v1965
      %v1967 = vpop.f32.mrf.mxu0
      %v1968 = vadd.f32 %v1799, %v1967
      %1969 = vmatmul.bf16.gmra.mxu0 %v986
      %v1970 = vpop.f32.mrf.mxu0
      %v1971 = vadd.f32 %v1802, %v1970
      %v1972 = vpop.f32.mrf.mxu0
      %v1973 = vadd.f32 %v1804, %v1972
      %1974 = vmatmul.bf16.gmra.mxu0 %v990
      %v1975 = vpop.f32.mrf.mxu0
      %v1976 = vadd.f32 %v1807, %v1975
      %v1977 = vpop.f32.mrf.mxu0
      %v1978 = vadd.f32 %v1809, %v1977
      %1979 = vmatmul.bf16.gmra.mxu0 %v994
      %v1980 = vpop.f32.mrf.mxu0
      %v1981 = vadd.f32 %v1812, %v1980
      %v1982 = vpop.f32.mrf.mxu0
      %v1983 = vadd.f32 %v1814, %v1982
      %1984 = vmatmul.bf16.gmra.mxu0 %v998
      %v1985 = vpop.f32.mrf.mxu0
      %v1986 = vadd.f32 %v1817, %v1985
      %v1987 = vpop.f32.mrf.mxu0
      %v1988 = vadd.f32 %v1819, %v1987
      %1989 = vmatmul.bf16.gmra.mxu0 %v1002
      %v1990 = vpop.f32.mrf.mxu0
      %v1991 = vadd.f32 %v1822, %v1990
      %v1992 = vpop.f32.mrf.mxu0
      %v1993 = vadd.f32 %v1824, %v1992
      %1994 = vmatmul.bf16.gmra.mxu0 %v1006
      %v1995 = vpop.f32.mrf.mxu0
      %v1996 = vadd.f32 %v1827, %v1995
      %v1997 = vpop.f32.mrf.mxu0
      %v1998 = vadd.f32 %v1829, %v1997
      %1999 = vmatmul.bf16.gmra.mxu0 %v1010
      %v2000 = vpop.f32.mrf.mxu0
      %v2001 = vadd.f32 %v1832, %v2000
      %v2002 = vpop.f32.mrf.mxu0
      %v2003 = vadd.f32 %v1834, %v2002
      %2004 = vmatmul.bf16.gmra.mxu0 %v1014
      %v2005 = vpop.f32.mrf.mxu0
      %v2006 = vadd.f32 %v1837, %v2005
      %v2007 = vpop.f32.mrf.mxu0
      %v2008 = vadd.f32 %v1839, %v2007
      %2009 = vmatmul.bf16.gmra.mxu0 %v1018
      %v2010 = vpop.f32.mrf.mxu0
      %v2011 = vadd.f32 %v1842, %v2010
      %v2012 = vpop.f32.mrf.mxu0
      %v2013 = vadd.f32 %v1844, %v2012
      %2014 = vdwg.mxu0
      %v2015 = vld [vmem:[%s302] sm:$0xf]
      %v2016 = vld [vmem:[%s302 + $0x4] sm:$0xf]
      %v2017 = vld [vmem:[%s302 + $0x8] sm:$0xf]
      %v2018 = vld [vmem:[%s302 + $0xc] sm:$0xf]
      %v2019 = vld [vmem:[%s302 + $0x10] sm:$0xf]
      %v2020 = vld [vmem:[%s302 + $0x14] sm:$0xf]
      %v2021 = vld [vmem:[%s302 + $0x18] sm:$0xf]
      %v2022 = vld [vmem:[%s302 + $0x1c] sm:$0xf]
      %v2023 = vld [vmem:[%s302 + $0x20] sm:$0xf]
      %v2024 = vld [vmem:[%s302 + $0x24] sm:$0xf]
      %v2025 = vld [vmem:[%s302 + $0x28] sm:$0xf]
      %v2026 = vld [vmem:[%s302 + $0x2c] sm:$0xf]
      %v2027 = vld [vmem:[%s302 + $0x30] sm:$0xf]
      %v2028 = vld [vmem:[%s302 + $0x34] sm:$0xf]
      %v2029 = vld [vmem:[%s302 + $0x38] sm:$0xf]
      %v2030 = vld [vmem:[%s302 + $0x3c] sm:$0xf]
      %v2031 = vld [vmem:[%s302 + $0x40] sm:$0xf]
      %v2032 = vld [vmem:[%s302 + $0x44] sm:$0xf]
      %v2033 = vld [vmem:[%s302 + $0x48] sm:$0xf]
      %v2034 = vld [vmem:[%s302 + $0x4c] sm:$0xf]
      %v2035 = vld [vmem:[%s302 + $0x50] sm:$0xf]
      %v2036 = vld [vmem:[%s302 + $0x54] sm:$0xf]
      %v2037 = vld [vmem:[%s302 + $0x58] sm:$0xf]
      %v2038 = vld [vmem:[%s302 + $0x5c] sm:$0xf]
      %v2039 = vld [vmem:[%s302 + $0x60] sm:$0xf]
      %v2040 = vld [vmem:[%s302 + $0x64] sm:$0xf]
      %v2041 = vld [vmem:[%s302 + $0x68] sm:$0xf]
      %v2042 = vld [vmem:[%s302 + $0x6c] sm:$0xf]
      %v2043 = vld [vmem:[%s302 + $0x70] sm:$0xf]
      %v2044 = vld [vmem:[%s302 + $0x74] sm:$0xf]
      %v2045 = vld [vmem:[%s302 + $0x78] sm:$0xf]
      %v2046 = vld [vmem:[%s302 + $0x7c] sm:$0xf]
      %v2047 = vld [vmem:[%s302 + $0x80] sm:$0xf]
      %v2048 = vld [vmem:[%s302 + $0x84] sm:$0xf]
      %v2049 = vld [vmem:[%s302 + $0x88] sm:$0xf]
      %v2050 = vld [vmem:[%s302 + $0x8c] sm:$0xf]
      %v2051 = vld [vmem:[%s302 + $0x90] sm:$0xf]
      %v2052 = vld [vmem:[%s302 + $0x94] sm:$0xf]
      %v2053 = vld [vmem:[%s302 + $0x98] sm:$0xf]
      %v2054 = vld [vmem:[%s302 + $0x9c] sm:$0xf]
      %v2055 = vld [vmem:[%s302 + $0xa0] sm:$0xf]
      %v2056 = vld [vmem:[%s302 + $0xa4] sm:$0xf]
      %v2057 = vld [vmem:[%s302 + $0xa8] sm:$0xf]
      %v2058 = vld [vmem:[%s302 + $0xac] sm:$0xf]
      %v2059 = vld [vmem:[%s302 + $0xb0] sm:$0xf]
      %v2060 = vld [vmem:[%s302 + $0xb4] sm:$0xf]
      %v2061 = vld [vmem:[%s302 + $0xb8] sm:$0xf]
      %v2062 = vld [vmem:[%s302 + $0xbc] sm:$0xf]
      %v2063 = vld [vmem:[%s302 + $0xc0] sm:$0xf]
      %v2064 = vld [vmem:[%s302 + $0xc4] sm:$0xf]
      %v2065 = vld [vmem:[%s302 + $0xc8] sm:$0xf]
      %v2066 = vld [vmem:[%s302 + $0xcc] sm:$0xf]
      %v2067 = vld [vmem:[%s302 + $0xd0] sm:$0xf]
      %v2068 = vld [vmem:[%s302 + $0xd4] sm:$0xf]
      %v2069 = vld [vmem:[%s302 + $0xd8] sm:$0xf]
      %v2070 = vld [vmem:[%s302 + $0xdc] sm:$0xf]
      %v2071 = vld [vmem:[%s302 + $0xe0] sm:$0xf]
      %v2072 = vld [vmem:[%s302 + $0xe4] sm:$0xf]
      %v2073 = vld [vmem:[%s302 + $0xe8] sm:$0xf]
      %v2074 = vld [vmem:[%s302 + $0xec] sm:$0xf]
      %v2075 = vld [vmem:[%s302 + $0xf0] sm:$0xf]
      %v2076 = vld [vmem:[%s302 + $0xf4] sm:$0xf]
      %v2077 = vld [vmem:[%s302 + $0xf8] sm:$0xf]
      %v2078 = vld [vmem:[%s302 + $0xfc] sm:$0xf]
      %v2079 = vunpack.c.l.bf16 %v2015
      %v2080 = vunpack.c.l.bf16 %v2016
      %v2081 = vunpack.c.l.bf16 %v2017
      %v2082 = vunpack.c.l.bf16 %v2018
      %v2083 = vunpack.c.l.bf16 %v2019
      %v2084 = vunpack.c.l.bf16 %v2020
      %v2085 = vunpack.c.l.bf16 %v2021
      %v2086 = vunpack.c.l.bf16 %v2022
      %v2087 = vunpack.c.l.bf16 %v2023
      %v2088 = vunpack.c.l.bf16 %v2024
      %v2089 = vunpack.c.l.bf16 %v2025
      %v2090 = vunpack.c.l.bf16 %v2026
      %v2091 = vunpack.c.l.bf16 %v2027
      %v2092 = vunpack.c.l.bf16 %v2028
      %v2093 = vunpack.c.l.bf16 %v2029
      %v2094 = vunpack.c.l.bf16 %v2030
      %v2095 = vunpack.c.l.bf16 %v2031
      %v2096 = vunpack.c.l.bf16 %v2032
      %v2097 = vunpack.c.l.bf16 %v2033
      %v2098 = vunpack.c.l.bf16 %v2034
      %v2099 = vunpack.c.l.bf16 %v2035
      %v2100 = vunpack.c.l.bf16 %v2036
      %v2101 = vunpack.c.l.bf16 %v2037
      %v2102 = vunpack.c.l.bf16 %v2038
      %v2103 = vunpack.c.l.bf16 %v2039
      %v2104 = vunpack.c.l.bf16 %v2040
      %v2105 = vunpack.c.l.bf16 %v2041
      %v2106 = vunpack.c.l.bf16 %v2042
      %v2107 = vunpack.c.l.bf16 %v2043
      %v2108 = vunpack.c.l.bf16 %v2044
      %v2109 = vunpack.c.l.bf16 %v2045
      %v2110 = vunpack.c.l.bf16 %v2046
      %v2111 = vunpack.c.l.bf16 %v2047
      %v2112 = vunpack.c.l.bf16 %v2048
      %v2113 = vunpack.c.l.bf16 %v2049
      %v2114 = vunpack.c.l.bf16 %v2050
      %v2115 = vunpack.c.l.bf16 %v2051
      %v2116 = vunpack.c.l.bf16 %v2052
      %v2117 = vunpack.c.l.bf16 %v2053
      %v2118 = vunpack.c.l.bf16 %v2054
      %v2119 = vunpack.c.l.bf16 %v2055
      %v2120 = vunpack.c.l.bf16 %v2056
      %v2121 = vunpack.c.l.bf16 %v2057
      %v2122 = vunpack.c.l.bf16 %v2058
      %v2123 = vunpack.c.l.bf16 %v2059
      %v2124 = vunpack.c.l.bf16 %v2060
      %v2125 = vunpack.c.l.bf16 %v2061
      %v2126 = vunpack.c.l.bf16 %v2062
      %v2127 = vunpack.c.l.bf16 %v2063
      %v2128 = vunpack.c.l.bf16 %v2064
      %v2129 = vunpack.c.l.bf16 %v2065
      %v2130 = vunpack.c.l.bf16 %v2066
      %v2131 = vunpack.c.l.bf16 %v2067
      %v2132 = vunpack.c.l.bf16 %v2068
      %v2133 = vunpack.c.l.bf16 %v2069
      %v2134 = vunpack.c.l.bf16 %v2070
      %v2135 = vunpack.c.l.bf16 %v2071
      %v2136 = vunpack.c.l.bf16 %v2072
      %v2137 = vunpack.c.l.bf16 %v2073
      %v2138 = vunpack.c.l.bf16 %v2074
      %v2139 = vunpack.c.l.bf16 %v2075
      %v2140 = vunpack.c.l.bf16 %v2076
      %v2141 = vunpack.c.l.bf16 %v2077
      %v2142 = vunpack.c.l.bf16 %v2078
      %v2143 = vadd.f32 %v1856, %v2079
      %v2144 = vadd.f32 %v1858, %v2080
      %v2145 = vadd.f32 %v1861, %v2081
      %v2146 = vadd.f32 %v1863, %v2082
      %v2147 = vadd.f32 %v1866, %v2083
      %v2148 = vadd.f32 %v1868, %v2084
      %v2149 = vadd.f32 %v1871, %v2085
      %v2150 = vadd.f32 %v1873, %v2086
      %v2151 = vadd.f32 %v1876, %v2087
      %v2152 = vadd.f32 %v1878, %v2088
      %v2153 = vadd.f32 %v1881, %v2089
      %v2154 = vadd.f32 %v1883, %v2090
      %v2155 = vadd.f32 %v1886, %v2091
      %v2156 = vadd.f32 %v1888, %v2092
      %v2157 = vadd.f32 %v1891, %v2093
      %v2158 = vadd.f32 %v1893, %v2094
      %v2159 = vadd.f32 %v1896, %v2095
      %v2160 = vadd.f32 %v1898, %v2096
      %v2161 = vadd.f32 %v1901, %v2097
      %v2162 = vadd.f32 %v1903, %v2098
      %v2163 = vadd.f32 %v1906, %v2099
      %v2164 = vadd.f32 %v1908, %v2100
      %v2165 = vadd.f32 %v1911, %v2101
      %v2166 = vadd.f32 %v1913, %v2102
      %v2167 = vadd.f32 %v1916, %v2103
      %v2168 = vadd.f32 %v1918, %v2104
      %v2169 = vadd.f32 %v1921, %v2105
      %v2170 = vadd.f32 %v1923, %v2106
      %v2171 = vadd.f32 %v1926, %v2107
      %v2172 = vadd.f32 %v1928, %v2108
      %v2173 = vadd.f32 %v1931, %v2109
      %v2174 = vadd.f32 %v1933, %v2110
      %v2175 = vadd.f32 %v1936, %v2111
      %v2176 = vadd.f32 %v1938, %v2112
      %v2177 = vadd.f32 %v1941, %v2113
      %v2178 = vadd.f32 %v1943, %v2114
      %v2179 = vadd.f32 %v1946, %v2115
      %v2180 = vadd.f32 %v1948, %v2116
      %v2181 = vadd.f32 %v1951, %v2117
      %v2182 = vadd.f32 %v1953, %v2118
      %v2183 = vadd.f32 %v1956, %v2119
      %v2184 = vadd.f32 %v1958, %v2120
      %v2185 = vadd.f32 %v1961, %v2121
      %v2186 = vadd.f32 %v1963, %v2122
      %v2187 = vadd.f32 %v1966, %v2123
      %v2188 = vadd.f32 %v1968, %v2124
      %v2189 = vadd.f32 %v1971, %v2125
      %v2190 = vadd.f32 %v1973, %v2126
      %v2191 = vadd.f32 %v1976, %v2127
      %v2192 = vadd.f32 %v1978, %v2128
      %v2193 = vadd.f32 %v1981, %v2129
      %v2194 = vadd.f32 %v1983, %v2130
      %v2195 = vadd.f32 %v1986, %v2131
      %v2196 = vadd.f32 %v1988, %v2132
      %v2197 = vadd.f32 %v1991, %v2133
      %v2198 = vadd.f32 %v1993, %v2134
      %v2199 = vadd.f32 %v1996, %v2135
      %v2200 = vadd.f32 %v1998, %v2136
      %v2201 = vadd.f32 %v2001, %v2137
      %v2202 = vadd.f32 %v2003, %v2138
      %v2203 = vadd.f32 %v2006, %v2139
      %v2204 = vadd.f32 %v2008, %v2140
      %v2205 = vadd.f32 %v2011, %v2141
      %v2206 = vadd.f32 %v2013, %v2142
      %v2207 = vmax.f32 %v2143, 0.0
      %v2208 = vmax.f32 %v2144, 0.0
      %v2209 = vmax.f32 %v2145, 0.0
      %v2210 = vmax.f32 %v2146, 0.0
      %v2211 = vmax.f32 %v2147, 0.0
      %v2212 = vmax.f32 %v2148, 0.0
      %v2213 = vmax.f32 %v2149, 0.0
      %v2214 = vmax.f32 %v2150, 0.0
      %v2215 = vmax.f32 %v2151, 0.0
      %v2216 = vmax.f32 %v2152, 0.0
      %v2217 = vmax.f32 %v2153, 0.0
      %v2218 = vmax.f32 %v2154, 0.0
      %v2219 = vmax.f32 %v2155, 0.0
      %v2220 = vmax.f32 %v2156, 0.0
      %v2221 = vmax.f32 %v2157, 0.0
      %v2222 = vmax.f32 %v2158, 0.0
      %v2223 = vmax.f32 %v2159, 0.0
      %v2224 = vmax.f32 %v2160, 0.0
      %v2225 = vmax.f32 %v2161, 0.0
      %v2226 = vmax.f32 %v2162, 0.0
      %v2227 = vmax.f32 %v2163, 0.0
      %v2228 = vmax.f32 %v2164, 0.0
      %v2229 = vmax.f32 %v2165, 0.0
      %v2230 = vmax.f32 %v2166, 0.0
      %v2231 = vmax.f32 %v2167, 0.0
      %v2232 = vmax.f32 %v2168, 0.0
      %v2233 = vmax.f32 %v2169, 0.0
      %v2234 = vmax.f32 %v2170, 0.0
      %v2235 = vmax.f32 %v2171, 0.0
      %v2236 = vmax.f32 %v2172, 0.0
      %v2237 = vmax.f32 %v2173, 0.0
      %v2238 = vmax.f32 %v2174, 0.0
      %v2239 = vmax.f32 %v2175, 0.0
      %v2240 = vmax.f32 %v2176, 0.0
      %v2241 = vmax.f32 %v2177, 0.0
      %v2242 = vmax.f32 %v2178, 0.0
      %v2243 = vmax.f32 %v2179, 0.0
      %v2244 = vmax.f32 %v2180, 0.0
      %v2245 = vmax.f32 %v2181, 0.0
      %v2246 = vmax.f32 %v2182, 0.0
      %v2247 = vmax.f32 %v2183, 0.0
      %v2248 = vmax.f32 %v2184, 0.0
      %v2249 = vmax.f32 %v2185, 0.0
      %v2250 = vmax.f32 %v2186, 0.0
      %v2251 = vmax.f32 %v2187, 0.0
      %v2252 = vmax.f32 %v2188, 0.0
      %v2253 = vmax.f32 %v2189, 0.0
      %v2254 = vmax.f32 %v2190, 0.0
      %v2255 = vmax.f32 %v2191, 0.0
      %v2256 = vmax.f32 %v2192, 0.0
      %v2257 = vmax.f32 %v2193, 0.0
      %v2258 = vmax.f32 %v2194, 0.0
      %v2259 = vmax.f32 %v2195, 0.0
      %v2260 = vmax.f32 %v2196, 0.0
      %v2261 = vmax.f32 %v2197, 0.0
      %v2262 = vmax.f32 %v2198, 0.0
      %v2263 = vmax.f32 %v2199, 0.0
      %v2264 = vmax.f32 %v2200, 0.0
      %v2265 = vmax.f32 %v2201, 0.0
      %v2266 = vmax.f32 %v2202, 0.0
      %v2267 = vmax.f32 %v2203, 0.0
      %v2268 = vmax.f32 %v2204, 0.0
      %v2269 = vmax.f32 %v2205, 0.0
      %v2270 = vmax.f32 %v2206, 0.0
      %v2271 = vlaneseq
      %v2272 = vshrl.u32 %v2271, 7
      %v2273 = vstv %s21
      %vm2274 = vcmp.eq.s32.totalorder %v2272, %v2273
      %v2275 = vsel %vm2274, 1, 0
      %v2276 = vcvt.s32.f32 %v2275
      %v2277 = vld [vmem:[#allocation2] sm:$0xff]
      %v2278 = vadd.f32 %v2207, %v2208
      %v2279 = vadd.f32 %v2278, %v2209
      %v2280 = vadd.f32 %v2279, %v2210
      %v2281 = vadd.f32 %v2280, %v2211
      %v2282 = vadd.f32 %v2281, %v2212
      %v2283 = vadd.f32 %v2282, %v2213
      %v2284 = vadd.f32 %v2283, %v2214
      %v2285 = vadd.f32 %v2284, %v2215
      %v2286 = vadd.f32 %v2285, %v2216
      %v2287 = vadd.f32 %v2286, %v2217
      %v2288 = vadd.f32 %v2287, %v2218
      %v2289 = vadd.f32 %v2288, %v2219
      %v2290 = vadd.f32 %v2289, %v2220
      %v2291 = vadd.f32 %v2290, %v2221
      %v2292 = vadd.f32 %v2291, %v2222
      %v2293 = vadd.f32 %v2292, %v2223
      %v2294 = vadd.f32 %v2293, %v2224
      %v2295 = vadd.f32 %v2294, %v2225
      %v2296 = vadd.f32 %v2295, %v2226
      %v2297 = vadd.f32 %v2296, %v2227
      %v2298 = vadd.f32 %v2297, %v2228
      %v2299 = vadd.f32 %v2298, %v2229
      %v2300 = vadd.f32 %v2299, %v2230
      %v2301 = vadd.f32 %v2300, %v2231
      %v2302 = vadd.f32 %v2301, %v2232
      %v2303 = vadd.f32 %v2302, %v2233
      %v2304 = vadd.f32 %v2303, %v2234
      %v2305 = vadd.f32 %v2304, %v2235
      %v2306 = vadd.f32 %v2305, %v2236
      %v2307 = vadd.f32 %v2306, %v2237
      %v2308 = vadd.f32 %v2307, %v2238
      %v2309 = vadd.f32 %v2308, %v2239
      %v2310 = vadd.f32 %v2309, %v2240
      %v2311 = vadd.f32 %v2310, %v2241
      %v2312 = vadd.f32 %v2311, %v2242
      %v2313 = vadd.f32 %v2312, %v2243
      %v2314 = vadd.f32 %v2313, %v2244
      %v2315 = vadd.f32 %v2314, %v2245
      %v2316 = vadd.f32 %v2315, %v2246
      %v2317 = vadd.f32 %v2316, %v2247
      %v2318 = vadd.f32 %v2317, %v2248
      %v2319 = vadd.f32 %v2318, %v2249
      %v2320 = vadd.f32 %v2319, %v2250
      %v2321 = vadd.f32 %v2320, %v2251
      %v2322 = vadd.f32 %v2321, %v2252
      %v2323 = vadd.f32 %v2322, %v2253
      %v2324 = vadd.f32 %v2323, %v2254
      %v2325 = vadd.f32 %v2324, %v2255
      %v2326 = vadd.f32 %v2325, %v2256
      %v2327 = vadd.f32 %v2326, %v2257
      %v2328 = vadd.f32 %v2327, %v2258
      %v2329 = vadd.f32 %v2328, %v2259
      %v2330 = vadd.f32 %v2329, %v2260
      %v2331 = vadd.f32 %v2330, %v2261
      %v2332 = vadd.f32 %v2331, %v2262
      %v2333 = vadd.f32 %v2332, %v2263
      %v2334 = vadd.f32 %v2333, %v2264
      %v2335 = vadd.f32 %v2334, %v2265
      %v2336 = vadd.f32 %v2335, %v2266
      %v2337 = vadd.f32 %v2336, %v2267
      %v2338 = vadd.f32 %v2337, %v2268
      %v2339 = vadd.f32 %v2338, %v2269
      %v2340 = vadd.f32 %v2339, %v2270
      %v2341 = vrot.slane %v2340, 4
      %v2342 = vadd.f32 %v2340, %v2341
      %v2343 = vrot.slane %v2342, 2
      %v2344 = vadd.f32 %v2342, %v2343
      %v2345 = vrot.slane %v2344, 1
      %v2346 = vadd.f32 %v2344, %v2345
      %v2347 = vmul.f32 %v2276, %v2346
      %v2348 = vadd.f32 %v2277, %v2347
      %2349 = vst [vmem:[#allocation2] sm:$0xff] %v2348
      %p2350 = scmp.eq.s32.totalorder %s21, 1
      %p2351 = pnand %p2350, %p305
      %p2352 = pneg %p2351
      // Predicated region
      $region49: #{resnet3d_recognizer_forward.5} parent=43 // pred_check
        _
      $region50: #{resnet3d_recognizer_forward.5} parent=43 // pred_check_branch
        %2354 = sbr.rel (%p2351) target = $region52
      $region51: #{resnet3d_recognizer_forward.5} parent=43 // pred_region
        %v2355 = vld [vmem:[#allocation2] sm:$0xff]
        %v2356 = vmul.f32 %v2355, 0.001953125
        %v2357 = vld [vmem:[%s4] sm:$0xff]
        %v2358 = vld [vmem:[%s4 + $0x8] sm:$0xff]
        %v2359 = vld [vmem:[%s4 + $0x10] sm:$0xff]
        %v2360 = vld [vmem:[%s4 + $0x18] sm:$0xff]
        %v2361 = vld [vmem:[%s4 + $0x20] sm:$0xff]
        %v2362 = vld [vmem:[%s4 + $0x28] sm:$0xff]
        %v2363 = vld [vmem:[%s4 + $0x30] sm:$0xff]
        %v2364 = vld [vmem:[%s4 + $0x38] sm:$0xff]
        %v2365 = vld [vmem:[%s4 + $0x40] sm:$0xff]
        %v2366 = vld [vmem:[%s4 + $0x48] sm:$0xff]
        %v2367 = vld [vmem:[%s4 + $0x50] sm:$0xff]
        %v2368 = vld [vmem:[%s4 + $0x58] sm:$0xff]
        %v2369 = vld [vmem:[%s4 + $0x60] sm:$0xff]
        %v2370 = vld [vmem:[%s4 + $0x68] sm:$0xff]
        %v2371 = vld [vmem:[%s4 + $0x70] sm:$0xff]
        %v2372 = vld [vmem:[%s4 + $0x78] sm:$0xff]
        %v2373 = vld [vmem:[%s5] sm:$0x1]
        %v2375 = vperm.slane %v2373, 0
        %2377 = vmatpush.msra.mxu0 %v2372
        %2378 = vmatpush.msra.mxu0 %v2371
        %2379 = vmatpush.msra.mxu0 %v2370
        %2380 = vmatpush.msra.mxu0 %v2369
        %2381 = vmatpush.msra.mxu0 %v2368
        %2382 = vmatpush.msra.mxu0 %v2367
        %2383 = vmatpush.msra.mxu0 %v2366
        %2384 = vmatpush.msra.mxu0 %v2365
        %2385 = vmatpush.msra.mxu0 %v2364
        %2386 = vmatpush.msra.mxu0 %v2363
        %2387 = vmatpush.msra.mxu0 %v2362
        %2388 = vmatpush.msra.mxu0 %v2361
        %2389 = vmatpush.msra.mxu0 %v2360
        %2390 = vmatpush.msra.mxu0 %v2359
        %2391 = vmatpush.msra.mxu0 %v2358
        %2392 = vmatpush.msra.mxu0 %v2357
        %2393 = vmatmul.f32.gmra.mxu0 %v2356
        %v2394 = vpop.f32.mrf.mxu0
        %v2395 = vadd.f32 %v2375, %v2394
        %2396 = vdwg.mxu0
        %2397 = vst [vmem:[%s6] sm:$0xff] %v2395
      $region52: #{resnet3d_recognizer_forward.5} parent=43 // pred_fallthru
        _
      // Predicated region
      $region53: #{resnet3d_recognizer_forward.5} parent=43 // pred_check
        %p2398 = pneg %p182
      $region54: #{resnet3d_recognizer_forward.5} parent=43 // pred_check_branch
        %2400 = sbr.rel (%p2398) target = $region56
      $region55: #{resnet3d_recognizer_forward.5} parent=43 // pred_region
        _
      $region56: #{resnet3d_recognizer_forward.5} parent=43 // pred_fallthru
        _
      // Predicated region
      $region57: #{resnet3d_recognizer_forward.5} parent=43 // pred_check
        %p2401 = pneg %p182
      $region58: #{resnet3d_recognizer_forward.5} parent=43 // pred_check_branch
        %2403 = sbr.rel (%p2401) target = $region60
      $region59: #{resnet3d_recognizer_forward.5} parent=43 // pred_region
        _
      $region60: #{resnet3d_recognizer_forward.5} parent=43 // pred_fallthru
        _
    $region44: #{resnet3d_recognizer_forward.5} parent=5 // pred_fallthru
      _
    %p2404 = scmp.le.s32.totalorder 2, %s12
    // Predicated region
    $region61: #{resnet3d_recognizer_forward.5} parent=5 // pred_check
      %p2405 = pneg %p2404
    $region62: #{resnet3d_recognizer_forward.5} parent=5 // pred_check_branch
      %2407 = sbr.rel (%p2405) target = $region64
    $region63: #{resnet3d_recognizer_forward.5} parent=5 // pred_region
      %s2408 = ssub.s32 %s12, 2
    $region64: #{resnet3d_recognizer_forward.5} parent=5 // pred_fallthru
      _
  $region6: #{resnet3d_recognizer_forward.5} parent=0 // loop_footer
    %s16 = sadd.s32 1, %s12
  $region7: #{resnet3d_recognizer_forward.5} parent=0 // loop_footer_branch
    %11 = sbr.rel target = $region3
  $region8: #{resnet3d_recognizer_forward.5} parent=0 // loop_exit
    _

</llo_original>
